<compile_context>
chip_gen: v7x
topology: tpu7x:2x2x1
jax: 0.10.0
libtpu: 0.0.40
codegen_flags: <defaults>
</compile_context>

<pallas_src>
import functools

import jax
import jax.numpy as jnp
from jax.experimental import pallas as pl
from jax.experimental.pallas import tpu as pltpu


def _round_up(x, m):
    return (x + m - 1) // m * m


def _bottleneck_kernel(x_ref, w1_ref, s1_ref, b1_ref,
                       w2_ref, s2_ref, b2_ref,
                       w3_ref, s3_ref, b3_ref,
                       o_ref, pad_ref,
                       *, H, W, Cp, Pp):
    # ---- zero ONLY the 1-wide halo of the conv2 scratch (interior is fully
    #      overwritten below every grid step; doing it every step keeps it
    #      correct when the parallel grid axis is sharded across cores). ----
    zrow = jnp.zeros((1, W + 2, Pp), jnp.float32)
    zcol = jnp.zeros((H + 2, 1, Pp), jnp.float32)
    pad_ref[0:1, :, :] = zrow
    pad_ref[H + 1:H + 2, :, :] = zrow
    pad_ref[:, 0:1, :] = zcol
    pad_ref[:, W + 1:W + 2, :] = zcol

    # ---- load input tile (one batch element), flatten spatial dims ----
    x = x_ref[...].reshape(H * W, Cp)                         # (HW, Cp), lane-dense

    # ---- conv1 (1x1) == channel matmul, + folded BN1 + ReLU ----
    h = jnp.dot(x, w1_ref[...], preferred_element_type=jnp.float32)   # (HW, Pp)
    h = jnp.maximum(h * s1_ref[...] + b1_ref[...], 0.0)

    # ---- conv2 (3x3, stride=1, pad=1): write into zero-halo scratch, gather
    #      the 9 taps, lane-concat into a single (HW, 9*Pp) im2col tile and run
    #      ONE K=9*Pp matmul against the pre-reshaped (9*Pp, Pp) weight. ----
    pad_ref[1:H + 1, 1:W + 1, :] = h.reshape(H, W, Pp)
    patches = [pad_ref[kh:kh + H, kw:kw + W, :].reshape(H * W, Pp)
               for kh in range(3) for kw in range(3)]
    im2col = jnp.concatenate(patches, axis=-1)                # (HW, 9*Pp)
    h2 = jnp.dot(im2col, w2_ref[...], preferred_element_type=jnp.float32)
    h2 = jnp.maximum(h2 * s2_ref[...] + b2_ref[...], 0.0)     # (HW, Pp)

    # ---- conv3 (1x1) + BN3, identity residual, final ReLU ----
    h3 = jnp.dot(h2, w3_ref[...], preferred_element_type=jnp.float32)  # (HW, Cp)
    h3 = h3 * s3_ref[...] + b3_ref[...]
    out = jnp.maximum(h3 + x, 0.0)
    o_ref[...] = out.reshape(1, H, W, Cp).astype(o_ref.dtype)   # lane-dense store


def bottleneck_pallas(x_nchw, params):
    """x_nchw: (N, Cin, H, W) float32.  params: dict of folded (unpadded) weights."""
    N, Cin, H, W = x_nchw.shape
    w1, s1, b1 = params["w1"], params["s1"], params["b1"]       # (Cin,P),(1,P),(1,P)
    w2, s2, b2 = params["w2"], params["s2"], params["b2"]       # (3,3,P,P),(1,P),(1,P)
    w3, s3, b3 = params["w3"], params["s3"], params["b3"]       # (P,Cout),(1,Cout),(1,Cout)
    P = w1.shape[1]
    Cout = w3.shape[1]
    assert Cout == Cin, "identity residual requires in_planes == planes * expansion"

    LANE = 128
    Cp = _round_up(Cin, LANE)     # padded residual/in/out channel width
    Pp = _round_up(P, LANE)       # padded bottleneck ("planes") channel width

    # ---- pad parameters to lane-dense channel widths (zeros -> padded output
    #      channels are exactly 0 and do not perturb the real ones) ----
    pad2 = lambda a, r, c: jnp.pad(a, ((0, r - a.shape[0]), (0, c - a.shape[1])))
    w1p = pad2(w1, Cp, Pp)
    s1p, b1p = pad2(s1, 1, Pp), pad2(b1, 1, Pp)
    w2p = jnp.pad(w2, ((0, 0), (0, 0), (0, Pp - P), (0, Pp - P)))
    w2p = w2p.reshape(9 * Pp, Pp)          # K-major order (kh, kw, cin) matches im2col
    s2p, b2p = pad2(s2, 1, Pp), pad2(b2, 1, Pp)
    w3p = pad2(w3, Pp, Cp)
    s3p, b3p = pad2(s3, 1, Cp), pad2(b3, 1, Cp)

    # NCHW -> NHWC (channels on the lane dim) and zero-pad channels to Cp.
    x = jnp.transpose(x_nchw, (0, 2, 3, 1)).astype(jnp.float32)
    x = jnp.pad(x, ((0, 0), (0, 0), (0, 0), (0, Cp - Cin)))

    # Constant index maps -> weight blocks are not re-fetched across grid steps.
    full = lambda a: pl.BlockSpec(a.shape, lambda n: (0,) * a.ndim)

    kernel = functools.partial(_bottleneck_kernel, H=H, W=W, Cp=Cp, Pp=Pp)

    out_nhwc = pl.pallas_call(
        kernel,
        out_shape=jax.ShapeDtypeStruct((N, H, W, Cp), jnp.float32),
        grid_spec=pltpu.PrefetchScalarGridSpec(
            num_scalar_prefetch=0,
            grid=(N,),                       # M = H*W = 256 rows per step
            in_specs=[
                pl.BlockSpec((1, H, W, Cp), lambda n: (n, 0, 0, 0)),
                full(w1p), full(s1p), full(b1p),
                full(w2p), full(s2p), full(b2p),
                full(w3p), full(s3p), full(b3p),
            ],
            out_specs=pl.BlockSpec((1, H, W, Cp), lambda n: (n, 0, 0, 0)),
            scratch_shapes=[pltpu.VMEM((H + 2, W + 2, Pp), jnp.float32)],
        ),
        compiler_params=pltpu.CompilerParams(
            dimension_semantics=("parallel",),        # megacore over batch on v7x
            vmem_limit_bytes=32 * 1024 * 1024),       # explicit budget (v5e/v7x safe)
    )(x, w1p, s1p, b1p, w2p, s2p, b2p, w3p, s3p, b3p)

    out = out_nhwc[..., :Cout]                        # drop padded channels
    return jnp.transpose(out, (0, 3, 1, 2))           # back to NCHW


def _fold_bn(gamma, beta, mean, var, eps=1e-5):
    scale = gamma / jnp.sqrt(var + eps)
    bias = beta - mean * scale
    return scale[None, :], bias[None, :]


def _make_params(key, in_planes, planes, expansion=4):
    out_planes = planes * expansion
    ks = jax.random.split(key, 15)
    # PyTorch conv weight layouts: (Cout, Cin, kH, kW)
    w1_t = jax.random.normal(ks[0], (planes, in_planes, 1, 1), jnp.float32) * 0.1
    w2_t = jax.random.normal(ks[1], (planes, planes, 3, 3), jnp.float32) * 0.1
    w3_t = jax.random.normal(ks[2], (out_planes, planes, 1, 1), jnp.float32) * 0.1
    # BN params (inference-mode running stats) -- independent keys for mean/var
    g1 = jax.random.uniform(ks[3], (planes,), minval=0.5, maxval=1.5)
    b1 = jax.random.normal(ks[4], (planes,)) * 0.1
    m1 = jax.random.normal(ks[5], (planes,)) * 0.1
    v1 = jax.random.uniform(ks[6], (planes,), minval=0.5, maxval=1.5)
    g2 = jax.random.uniform(ks[7], (planes,), minval=0.5, maxval=1.5)
    b2 = jax.random.normal(ks[8], (planes,)) * 0.1
    m2 = jax.random.normal(ks[9], (planes,)) * 0.1
    v2 = jax.random.uniform(ks[10], (planes,), minval=0.5, maxval=1.5)
    g3 = jax.random.uniform(ks[11], (out_planes,), minval=0.5, maxval=1.5)
    b3 = jax.random.normal(ks[12], (out_planes,)) * 0.1
    m3 = jax.random.normal(ks[13], (out_planes,)) * 0.1
    v3 = jax.random.uniform(ks[14], (out_planes,), minval=0.5, maxval=1.5)

    s1, bb1 = _fold_bn(g1, b1, m1, v1)
    s2, bb2 = _fold_bn(g2, b2, m2, v2)
    s3, bb3 = _fold_bn(g3, b3, m3, v3)

    return dict(
        # conv1 1x1:  (Cin, P) so that  y = x @ w1
        w1=jnp.transpose(w1_t.reshape(planes, in_planes), (1, 0)),
        s1=s1, b1=bb1,
        # conv2 3x3: HWIO (kh, kw, Cin, Cout)
        w2=jnp.transpose(w2_t, (2, 3, 1, 0)),
        s2=s2, b2=bb2,
        # conv3 1x1: (P, Cout)
        w3=jnp.transpose(w3_t.reshape(out_planes, planes), (1, 0)),
        s3=s3, b3=bb3,
    )


def _reference(x_nchw, params):
    """Pure-JAX reference (NHWC convs, unpadded) for correctness checking."""
    x = jnp.transpose(x_nchw, (0, 2, 3, 1))
    h = jnp.einsum("nhwc,cp->nhwp", x, params["w1"])
    h = jnp.maximum(h * params["s1"][0] + params["b1"][0], 0.0)
    h = jax.lax.conv_general_dilated(
        h, params["w2"], window_strides=(1, 1), padding="SAME",
        dimension_numbers=("NHWC", "HWIO", "NHWC"))
    h = jnp.maximum(h * params["s2"][0] + params["b2"][0], 0.0)
    h = jnp.einsum("nhwp,pq->nhwq", h, params["w3"])
    h = h * params["s3"][0] + params["b3"][0]
    h = jnp.maximum(h + x, 0.0)
    return jnp.transpose(h, (0, 3, 1, 2))


if __name__ == "__main__":
    key = jax.random.PRNGKey(0)
    k_x, k_p = jax.random.split(key)

    # Bottleneck(in_planes=16, planes=4, stride=1, downsample=None)
    in_planes, planes = 16, 4
    N, H, W = 2, 16, 16
    x = jax.random.normal(k_x, (N, in_planes, H, W), jnp.float32)

    params = _make_params(k_p, in_planes, planes)

    out = bottleneck_pallas(x, params)
    out = jax.block_until_ready(out)

    ref = _reference(x, params)
    assert out.shape == (N, in_planes, H, W)
    assert jnp.allclose(out, ref, atol=5e-4, rtol=5e-4), "mismatch vs reference"

    print("KERNEL_OK")
</pallas_src>

<mosaic_0001>
module attributes {stable_mosaic.version = 11 : i64} {
  func.func @_bottleneck_kernel(%arg0: i32, %arg1: memref<1x16x16x128xf32, #tpu.memory_space<vmem>>, %arg2: memref<128x128xf32, #tpu.memory_space<vmem>>, %arg3: memref<1x128xf32, #tpu.memory_space<vmem>>, %arg4: memref<1x128xf32, #tpu.memory_space<vmem>>, %arg5: memref<1152x128xf32, #tpu.memory_space<vmem>>, %arg6: memref<1x128xf32, #tpu.memory_space<vmem>>, %arg7: memref<1x128xf32, #tpu.memory_space<vmem>>, %arg8: memref<128x128xf32, #tpu.memory_space<vmem>>, %arg9: memref<1x128xf32, #tpu.memory_space<vmem>>, %arg10: memref<1x128xf32, #tpu.memory_space<vmem>>, %arg11: memref<1x16x16x128xf32, #tpu.memory_space<vmem>>, %arg12: memref<18x18x128xf32, #tpu.memory_space<vmem>>) attributes {dimension_semantics = [#tpu.dimension_semantics<parallel>], iteration_bounds = array<i64: 2>, scalar_prefetch = 0 : i64, scratch_operands = 1 : i64, tpu.core_type = #tpu.core_type<tc>, window_params = [{transform_indices = @transform_0, window_bounds = array<i64: 1, 16, 16, 128>}, {pipeline_mode = #tpu.pipeline_mode<synchronous>, transform_indices = @transform_1, window_bounds = array<i64: 128, 128>}, {pipeline_mode = #tpu.pipeline_mode<synchronous>, transform_indices = @transform_2, window_bounds = array<i64: 1, 128>}, {pipeline_mode = #tpu.pipeline_mode<synchronous>, transform_indices = @transform_3, window_bounds = array<i64: 1, 128>}, {pipeline_mode = #tpu.pipeline_mode<synchronous>, transform_indices = @transform_4, window_bounds = array<i64: 1152, 128>}, {pipeline_mode = #tpu.pipeline_mode<synchronous>, transform_indices = @transform_5, window_bounds = array<i64: 1, 128>}, {pipeline_mode = #tpu.pipeline_mode<synchronous>, transform_indices = @transform_6, window_bounds = array<i64: 1, 128>}, {pipeline_mode = #tpu.pipeline_mode<synchronous>, transform_indices = @transform_7, window_bounds = array<i64: 128, 128>}, {pipeline_mode = #tpu.pipeline_mode<synchronous>, transform_indices = @transform_8, window_bounds = array<i64: 1, 128>}, {pipeline_mode = #tpu.pipeline_mode<synchronous>, transform_indices = @transform_9, window_bounds = array<i64: 1, 128>}, {transform_indices = @transform_10, window_bounds = array<i64: 1, 16, 16, 128>}]} {
    %cst = arith.constant 0.000000e+00 : f32
    %0 = vector.broadcast %cst : f32 to vector<1x18x128xf32>
    %cst_0 = arith.constant 0.000000e+00 : f32
    %1 = vector.broadcast %cst_0 : f32 to vector<18x1x128xf32>
    %c0 = arith.constant 0 : index
    %c0_1 = arith.constant 0 : index
    %c0_2 = arith.constant 0 : index
    %2 = vector.load %arg12[%c0, %c0_1, %c0_2] : memref<18x18x128xf32, #tpu.memory_space<vmem>>, vector<1x18x128xf32>
    tpu.vector_store %arg12[%c0, %c0_1, %c0_2], %0 {strides = array<i32>} : memref<18x18x128xf32, #tpu.memory_space<vmem>>, vector<1x18x128xf32>,
    %c17 = arith.constant 17 : index
    %c0_3 = arith.constant 0 : index
    %c0_4 = arith.constant 0 : index
    %3 = vector.load %arg12[%c17, %c0_3, %c0_4] : memref<18x18x128xf32, #tpu.memory_space<vmem>>, vector<1x18x128xf32>
    tpu.vector_store %arg12[%c17, %c0_3, %c0_4], %0 {strides = array<i32>} : memref<18x18x128xf32, #tpu.memory_space<vmem>>, vector<1x18x128xf32>,
    %c0_5 = arith.constant 0 : index
    %c0_6 = arith.constant 0 : index
    %c0_7 = arith.constant 0 : index
    %4 = vector.load %arg12[%c0_5, %c0_6, %c0_7] : memref<18x18x128xf32, #tpu.memory_space<vmem>>, vector<18x1x128xf32>
    tpu.vector_store %arg12[%c0_5, %c0_6, %c0_7], %1 {strides = array<i32>} : memref<18x18x128xf32, #tpu.memory_space<vmem>>, vector<18x1x128xf32>,
    %c0_8 = arith.constant 0 : index
    %c17_9 = arith.constant 17 : index
    %c0_10 = arith.constant 0 : index
    %5 = vector.load %arg12[%c0_8, %c17_9, %c0_10] : memref<18x18x128xf32, #tpu.memory_space<vmem>>, vector<18x1x128xf32>
    tpu.vector_store %arg12[%c0_8, %c17_9, %c0_10], %1 {strides = array<i32>} : memref<18x18x128xf32, #tpu.memory_space<vmem>>, vector<18x1x128xf32>,
    %c0_11 = arith.constant 0 : index
    %c0_12 = arith.constant 0 : index
    %c0_13 = arith.constant 0 : index
    %c0_14 = arith.constant 0 : index
    %6 = vector.load %arg1[%c0_11, %c0_12, %c0_13, %c0_14] : memref<1x16x16x128xf32, #tpu.memory_space<vmem>>, vector<1x16x16x128xf32>
    %7 = vector.shape_cast %6 : vector<1x16x16x128xf32> to vector<256x128xf32>
    %c0_15 = arith.constant 0 : index
    %c0_16 = arith.constant 0 : index
    %8 = vector.load %arg2[%c0_15, %c0_16] : memref<128x128xf32, #tpu.memory_space<vmem>>, vector<128x128xf32>
    %cst_17 = arith.constant dense<0.000000e+00> : vector<256x128xf32>
    %9 = tpu.matmul %7, %8, %cst_17 {dimension_numbers = #tpu.dot_dimension_numbers<[1], [0], [0], [1], [0, 0, 1, 1], [], []>} : vector<256x128xf32>, vector<128x128xf32>, vector<256x128xf32> -> vector<256x128xf32>
    %c0_18 = arith.constant 0 : index
    %c0_19 = arith.constant 0 : index
    %10 = vector.load %arg3[%c0_18, %c0_19] : memref<1x128xf32, #tpu.memory_space<vmem>>, vector<1x128xf32>
    %11 = vector.broadcast %10 : vector<1x128xf32> to vector<256x128xf32>
    %12 = arith.mulf %9, %11 : vector<256x128xf32>
    %c0_20 = arith.constant 0 : index
    %c0_21 = arith.constant 0 : index
    %13 = vector.load %arg4[%c0_20, %c0_21] : memref<1x128xf32, #tpu.memory_space<vmem>>, vector<1x128xf32>
    %14 = vector.broadcast %13 : vector<1x128xf32> to vector<256x128xf32>
    %15 = arith.addf %12, %14 : vector<256x128xf32>
    %cst_22 = arith.constant 0.000000e+00 : f32
    %16 = vector.broadcast %cst_22 : f32 to vector<256x128xf32>
    %17 = arith.maximumf %15, %16 : vector<256x128xf32>
    %18 = vector.shape_cast %17 : vector<256x128xf32> to vector<16x16x128xf32>
    %c1 = arith.constant 1 : index
    %c1_23 = arith.constant 1 : index
    %c0_24 = arith.constant 0 : index
    %19 = vector.load %arg12[%c1, %c1_23, %c0_24] : memref<18x18x128xf32, #tpu.memory_space<vmem>>, vector<16x16x128xf32>
    tpu.vector_store %arg12[%c1, %c1_23, %c0_24], %18 {strides = array<i32>} : memref<18x18x128xf32, #tpu.memory_space<vmem>>, vector<16x16x128xf32>,
    %c0_25 = arith.constant 0 : index
    %c0_26 = arith.constant 0 : index
    %c0_27 = arith.constant 0 : index
    %20 = vector.load %arg12[%c0_25, %c0_26, %c0_27] : memref<18x18x128xf32, #tpu.memory_space<vmem>>, vector<16x16x128xf32>
    %21 = vector.shape_cast %20 : vector<16x16x128xf32> to vector<256x128xf32>
    %c0_28 = arith.constant 0 : index
    %c1_29 = arith.constant 1 : index
    %c0_30 = arith.constant 0 : index
    %22 = vector.load %arg12[%c0_28, %c1_29, %c0_30] : memref<18x18x128xf32, #tpu.memory_space<vmem>>, vector<16x16x128xf32>
    %23 = vector.shape_cast %22 : vector<16x16x128xf32> to vector<256x128xf32>
    %c0_31 = arith.constant 0 : index
    %c2 = arith.constant 2 : index
    %c0_32 = arith.constant 0 : index
    %24 = vector.load %arg12[%c0_31, %c2, %c0_32] : memref<18x18x128xf32, #tpu.memory_space<vmem>>, vector<16x16x128xf32>
    %25 = vector.shape_cast %24 : vector<16x16x128xf32> to vector<256x128xf32>
    %c1_33 = arith.constant 1 : index
    %c0_34 = arith.constant 0 : index
    %c0_35 = arith.constant 0 : index
    %26 = vector.load %arg12[%c1_33, %c0_34, %c0_35] : memref<18x18x128xf32, #tpu.memory_space<vmem>>, vector<16x16x128xf32>
    %27 = vector.shape_cast %26 : vector<16x16x128xf32> to vector<256x128xf32>
    %c1_36 = arith.constant 1 : index
    %c1_37 = arith.constant 1 : index
    %c0_38 = arith.constant 0 : index
    %28 = vector.load %arg12[%c1_36, %c1_37, %c0_38] : memref<18x18x128xf32, #tpu.memory_space<vmem>>, vector<16x16x128xf32>
    %29 = vector.shape_cast %28 : vector<16x16x128xf32> to vector<256x128xf32>
    %c1_39 = arith.constant 1 : index
    %c2_40 = arith.constant 2 : index
    %c0_41 = arith.constant 0 : index
    %30 = vector.load %arg12[%c1_39, %c2_40, %c0_41] : memref<18x18x128xf32, #tpu.memory_space<vmem>>, vector<16x16x128xf32>
    %31 = vector.shape_cast %30 : vector<16x16x128xf32> to vector<256x128xf32>
    %c2_42 = arith.constant 2 : index
    %c0_43 = arith.constant 0 : index
    %c0_44 = arith.constant 0 : index
    %32 = vector.load %arg12[%c2_42, %c0_43, %c0_44] : memref<18x18x128xf32, #tpu.memory_space<vmem>>, vector<16x16x128xf32>
    %33 = vector.shape_cast %32 : vector<16x16x128xf32> to vector<256x128xf32>
    %c2_45 = arith.constant 2 : index
    %c1_46 = arith.constant 1 : index
    %c0_47 = arith.constant 0 : index
    %34 = vector.load %arg12[%c2_45, %c1_46, %c0_47] : memref<18x18x128xf32, #tpu.memory_space<vmem>>, vector<16x16x128xf32>
    %35 = vector.shape_cast %34 : vector<16x16x128xf32> to vector<256x128xf32>
    %c2_48 = arith.constant 2 : index
    %c2_49 = arith.constant 2 : index
    %c0_50 = arith.constant 0 : index
    %36 = vector.load %arg12[%c2_48, %c2_49, %c0_50] : memref<18x18x128xf32, #tpu.memory_space<vmem>>, vector<16x16x128xf32>
    %37 = vector.shape_cast %36 : vector<16x16x128xf32> to vector<256x128xf32>
    %38 = tpu.concatenate %21, %23, %25, %27, %29, %31, %33, %35, %37 in 1 : vector<256x128xf32>, vector<256x128xf32>, vector<256x128xf32>, vector<256x128xf32>, vector<256x128xf32>, vector<256x128xf32>, vector<256x128xf32>, vector<256x128xf32>, vector<256x128xf32> -> vector<256x1152xf32>
    %c0_51 = arith.constant 0 : index
    %c0_52 = arith.constant 0 : index
    %39 = vector.load %arg5[%c0_51, %c0_52] : memref<1152x128xf32, #tpu.memory_space<vmem>>, vector<1152x128xf32>
    %cst_53 = arith.constant dense<0.000000e+00> : vector<256x128xf32>
    %40 = tpu.matmul %38, %39, %cst_53 {dimension_numbers = #tpu.dot_dimension_numbers<[1], [0], [0], [1], [0, 0, 1, 1], [], []>} : vector<256x1152xf32>, vector<1152x128xf32>, vector<256x128xf32> -> vector<256x128xf32>
    %c0_54 = arith.constant 0 : index
    %c0_55 = arith.constant 0 : index
    %41 = vector.load %arg6[%c0_54, %c0_55] : memref<1x128xf32, #tpu.memory_space<vmem>>, vector<1x128xf32>
    %42 = vector.broadcast %41 : vector<1x128xf32> to vector<256x128xf32>
    %43 = arith.mulf %40, %42 : vector<256x128xf32>
    %c0_56 = arith.constant 0 : index
    %c0_57 = arith.constant 0 : index
    %44 = vector.load %arg7[%c0_56, %c0_57] : memref<1x128xf32, #tpu.memory_space<vmem>>, vector<1x128xf32>
    %45 = vector.broadcast %44 : vector<1x128xf32> to vector<256x128xf32>
    %46 = arith.addf %43, %45 : vector<256x128xf32>
    %cst_58 = arith.constant 0.000000e+00 : f32
    %47 = vector.broadcast %cst_58 : f32 to vector<256x128xf32>
    %48 = arith.maximumf %46, %47 : vector<256x128xf32>
    %c0_59 = arith.constant 0 : index
    %c0_60 = arith.constant 0 : index
    %49 = vector.load %arg8[%c0_59, %c0_60] : memref<128x128xf32, #tpu.memory_space<vmem>>, vector<128x128xf32>
    %cst_61 = arith.constant dense<0.000000e+00> : vector<256x128xf32>
    %50 = tpu.matmul %48, %49, %cst_61 {dimension_numbers = #tpu.dot_dimension_numbers<[1], [0], [0], [1], [0, 0, 1, 1], [], []>} : vector<256x128xf32>, vector<128x128xf32>, vector<256x128xf32> -> vector<256x128xf32>
    %c0_62 = arith.constant 0 : index
    %c0_63 = arith.constant 0 : index
    %51 = vector.load %arg9[%c0_62, %c0_63] : memref<1x128xf32, #tpu.memory_space<vmem>>, vector<1x128xf32>
    %52 = vector.broadcast %51 : vector<1x128xf32> to vector<256x128xf32>
    %53 = arith.mulf %50, %52 : vector<256x128xf32>
    %c0_64 = arith.constant 0 : index
    %c0_65 = arith.constant 0 : index
    %54 = vector.load %arg10[%c0_64, %c0_65] : memref<1x128xf32, #tpu.memory_space<vmem>>, vector<1x128xf32>
    %55 = vector.broadcast %54 : vector<1x128xf32> to vector<256x128xf32>
    %56 = arith.addf %53, %55 : vector<256x128xf32>
    %57 = arith.addf %56, %7 : vector<256x128xf32>
    %cst_66 = arith.constant 0.000000e+00 : f32
    %58 = vector.broadcast %cst_66 : f32 to vector<256x128xf32>
    %59 = arith.maximumf %57, %58 : vector<256x128xf32>
    %60 = vector.shape_cast %59 : vector<256x128xf32> to vector<1x16x16x128xf32>
    %c0_67 = arith.constant 0 : index
    %c0_68 = arith.constant 0 : index
    %c0_69 = arith.constant 0 : index
    %c0_70 = arith.constant 0 : index
    %61 = vector.load %arg11[%c0_67, %c0_68, %c0_69, %c0_70] : memref<1x16x16x128xf32, #tpu.memory_space<vmem>>, vector<1x16x16x128xf32>
    tpu.vector_store %arg11[%c0_67, %c0_68, %c0_69, %c0_70], %60 {strides = array<i32>} : memref<1x16x16x128xf32, #tpu.memory_space<vmem>>, vector<1x16x16x128xf32>,
    return
  }
  func.func @transform_0(%arg0: i32) -> (i32, i32, i32, i32) {
    %c0_i32 = arith.constant 0 : i32
    %c0_i32_0 = arith.constant 0 : i32
    %c0_i32_1 = arith.constant 0 : i32
    %c0_i32_2 = arith.constant 0 : i32
    return %arg0, %c0_i32, %c0_i32_0, %c0_i32_1 : i32, i32, i32, i32
  }
  func.func @transform_1(%arg0: i32) -> (i32, i32) {
    %c0_i32 = arith.constant 0 : i32
    %c0_i32_0 = arith.constant 0 : i32
    %c0_i32_1 = arith.constant 0 : i32
    return %c0_i32, %c0_i32_0 : i32, i32
  }
  func.func @transform_2(%arg0: i32) -> (i32, i32) {
    %c0_i32 = arith.constant 0 : i32
    %c0_i32_0 = arith.constant 0 : i32
    %c0_i32_1 = arith.constant 0 : i32
    return %c0_i32, %c0_i32_0 : i32, i32
  }
  func.func @transform_3(%arg0: i32) -> (i32, i32) {
    %c0_i32 = arith.constant 0 : i32
    %c0_i32_0 = arith.constant 0 : i32
    %c0_i32_1 = arith.constant 0 : i32
    return %c0_i32, %c0_i32_0 : i32, i32
  }
  func.func @transform_4(%arg0: i32) -> (i32, i32) {
    %c0_i32 = arith.constant 0 : i32
    %c0_i32_0 = arith.constant 0 : i32
    %c0_i32_1 = arith.constant 0 : i32
    return %c0_i32, %c0_i32_0 : i32, i32
  }
  func.func @transform_5(%arg0: i32) -> (i32, i32) {
    %c0_i32 = arith.constant 0 : i32
    %c0_i32_0 = arith.constant 0 : i32
    %c0_i32_1 = arith.constant 0 : i32
    return %c0_i32, %c0_i32_0 : i32, i32
  }
  func.func @transform_6(%arg0: i32) -> (i32, i32) {
    %c0_i32 = arith.constant 0 : i32
    %c0_i32_0 = arith.constant 0 : i32
    %c0_i32_1 = arith.constant 0 : i32
    return %c0_i32, %c0_i32_0 : i32, i32
  }
  func.func @transform_7(%arg0: i32) -> (i32, i32) {
    %c0_i32 = arith.constant 0 : i32
    %c0_i32_0 = arith.constant 0 : i32
    %c0_i32_1 = arith.constant 0 : i32
    return %c0_i32, %c0_i32_0 : i32, i32
  }
  func.func @transform_8(%arg0: i32) -> (i32, i32) {
    %c0_i32 = arith.constant 0 : i32
    %c0_i32_0 = arith.constant 0 : i32
    %c0_i32_1 = arith.constant 0 : i32
    return %c0_i32, %c0_i32_0 : i32, i32
  }
  func.func @transform_9(%arg0: i32) -> (i32, i32) {
    %c0_i32 = arith.constant 0 : i32
    %c0_i32_0 = arith.constant 0 : i32
    %c0_i32_1 = arith.constant 0 : i32
    return %c0_i32, %c0_i32_0 : i32, i32
  }
  func.func @transform_10(%arg0: i32) -> (i32, i32, i32, i32) {
    %c0_i32 = arith.constant 0 : i32
    %c0_i32_0 = arith.constant 0 : i32
    %c0_i32_1 = arith.constant 0 : i32
    %c0_i32_2 = arith.constant 0 : i32
    return %arg0, %c0_i32, %c0_i32_0, %c0_i32_1 : i32, i32, i32, i32
  }
}

</mosaic_0001>

<llo_original>
// kernel: tpu_custom_call.1
$region0: #{tpu_custom_call.1}
  #allocation0 [shape = 'u32[]', space=smem, size = 0x4, offset = 0x4, fixed_abs, tag = 'smem constant byte address 0x4 - core index']
  #allocation1 [shape = 'u32[144,128]{1,0:T(1,128)}', space=vmem, size = 0x12000, scoped, tag = 'internal scratch']
  #allocation2 [shape = 'f32[18,18,128]{2,1,0:T(8,128)}', space=vmem, size = 0x36000, scoped, tag = 'scratch operand']
  %s0 = inlined_call_operand.hbm [shape: f32[2,16,16,128], index: 0, kind: input, shape index: {}]
  %s1 = inlined_call_operand.hbm [shape: f32[128,128], index: 1, kind: input, shape index: {}]
  %s2 = inlined_call_operand.vmem [shape: f32[1,128], index: 2, kind: input, shape index: {}]
  %s3 = inlined_call_operand.vmem [shape: f32[1,128], index: 3, kind: input, shape index: {}]
  %s4 = inlined_call_operand.hbm [shape: f32[1152,128], index: 4, kind: input, shape index: {}]
  %s5 = inlined_call_operand.vmem [shape: f32[1,128], index: 5, kind: input, shape index: {}]
  %s6 = inlined_call_operand.vmem [shape: f32[1,128], index: 6, kind: input, shape index: {}]
  %s7 = inlined_call_operand.hbm [shape: f32[128,128], index: 7, kind: input, shape index: {}]
  %s8 = inlined_call_operand.vmem [shape: f32[1,128], index: 8, kind: input, shape index: {}]
  %s9 = inlined_call_operand.vmem [shape: f32[1,128], index: 9, kind: input, shape index: {}]
  %s10 = inlined_call_operand.hbm [shape: f32[2,16,16,128], index: 10, kind: output, shape index: {}]
  %s11 = sld [smem:[#allocation0]]
  $region89: #{tpu_custom_call.1} parent=0
    _
  %s13 = ssub.s32 1, %s11
  %s14 = scalar_select 0, %s13, %s11
  $region1: #{tpu_custom_call.1} parent=0
    #allocation3 [shape = 'u8[262144]{0}', space=vmem, size = 0x40000, scoped, tag = 'input window, operand 0']
    #allocation4 [shape = 's32[2]{0}', space=sflag, size = 0x8, scoped, tag = 'scoped memory for tpu_custom_call.1']
    #allocation5 [shape = 's32[2]{0}', space=sflag, size = 0x8, scoped, tag = 'scoped memory for tpu_custom_call.1']
    #allocation6 [shape = 'u8[65536]{0}', space=vmem, size = 0x10000, scoped, tag = 'input window, operand 1, single buffered']
    #allocation7 [shape = 's32[1]{0}', space=sflag, size = 0x4, scoped, tag = 'scoped memory for tpu_custom_call.1']
    #allocation8 [shape = 'u8[589824]{0}', space=vmem, size = 0x90000, scoped, tag = 'input window, operand 4, single buffered']
    #allocation9 [shape = 'u8[65536]{0}', space=vmem, size = 0x10000, scoped, tag = 'input window, operand 7, single buffered']
    #allocation10 [shape = 's32[1]{0}', space=sflag, size = 0x4, scoped, tag = 'scoped memory for tpu_custom_call.1']
    #allocation11 [shape = 'u8[262144]{0}', space=vmem, size = 0x40000, scoped, tag = 'output window, operand 0']
    %15 = vsyncpa [#allocation4], 0
    %s16 = scalar_lea.sflag [#allocation4], 1
    %17 = vsyncpa %s16, 0
    %18 = vsyncpa [#allocation7], 0
    %19 = vsyncpa [#allocation10], 0
    %20 = vsyncpa [#allocation5], 0
    %s21 = scalar_lea.sflag [#allocation5], 1
    %22 = vsyncpa %s21, 0
    loop: start=0, step=1, limit=4
    $region2: #{tpu_custom_call.1} parent=1 // loop_pre_header
      _
    $region3: #{tpu_custom_call.1} parent=1 // loop_header
      %s24 = sphi 0, %s28
      %p25 = scmp.ge.s32.totalorder %s24, 4
      %s34 = sphi 0, %s36
      %s37 = sphi 0, %s34
      %s38 = sphi 0, %s37
      %s54 = sphi 0, %s38
      %s58 = sphi 0, %s58
      %s60 = sphi 0, %s58
      %s61 = sphi 0, %s60
      %s75 = sphi 0, %s61
      %s79 = sphi 0, %s79
      %s81 = sphi 0, %s79
      %s82 = sphi 0, %s81
      %s96 = sphi 0, %s82
      %s100 = sphi 0, %s100
      %s102 = sphi 0, %s100
      %s103 = sphi 0, %s102
      %s117 = sphi 0, %s103
      %s121 = sphi 0, %s121
      %s123 = sphi 0, %s121
      %s124 = sphi 0, %s123
      %s138 = sphi 0, %s124
      %s142 = sphi 0, %s142
      %s144 = sphi 0, %s142
      %s145 = sphi 0, %s144
      %s159 = sphi 0, %s145
      %s163 = sphi 0, %s163
      %s165 = sphi 0, %s163
      %s166 = sphi 0, %s165
      %s180 = sphi 0, %s166
      %s184 = sphi 0, %s184
      %s186 = sphi 0, %s184
      %s187 = sphi 0, %s186
      %s201 = sphi 0, %s187
      %s205 = sphi 0, %s205
      %s207 = sphi 0, %s205
      %s208 = sphi 0, %s207
      %s222 = sphi 0, %s208
      %s226 = sphi 0, %s226
      %s228 = sphi 0, %s226
      %s229 = sphi 0, %s228
      %s243 = sphi 0, %s229
      %s249 = sphi 0, %s251
      %s252 = sphi 0, %s249
      %s253 = sphi 0, %s252
      %s269 = sphi 0, %s253
    $region4: #{tpu_custom_call.1} parent=1 // loop_header_branch
      %27 = sbr.rel (%p25) target = $region8
    $region5: #{tpu_custom_call.1} parent=1 // loop_body
      %s29 = ssub.s32 %s24, 1
      %s30 = ssub.s32 %s24, 2
      %s31 = sadd.s32 %s24, 1
      %s32 = ssub.s32 %s24, %s31
      %p33 = scmp.eq.s32.totalorder %s32, 0
      %s35 = sadd.s32 %s34, 1
      %s36 = scalar_select %p33, %s34, %s35
      %p39 = pneg %p33
      %p40 = scmp.eq.s32.totalorder %s24, 1
      %p41 = por %p39, %p40
      %p42 = scmp.ne.s32.totalorder %s34, %s37
      %p43 = scmp.eq.s32.totalorder %s24, 0
      %p44 = por %p42, %p43
      %p45 = scmp.ne.s32.totalorder %s34, %s37
      %p46 = scmp.eq.s32.totalorder %s29, 1
      %p47 = por %p45, %p46
      %p48 = scmp.ne.s32.totalorder %s37, %s38
      %p49 = scmp.eq.s32.totalorder %s29, 0
      %p50 = por %p48, %p49
      %p51 = scmp.ne.s32.totalorder %s37, %s38
      %p52 = scmp.eq.s32.totalorder %s30, 1
      %p53 = por %p51, %p52
      %p55 = scmp.ne.s32.totalorder %s38, %s54
      %p56 = scmp.eq.s32.totalorder %s30, 0
      %p57 = por %p55, %p56
      %s59 = sadd.s32 %s58, 1
      %p62 = scmp.eq.s32.totalorder %s24, 1
      %p63 = scmp.ne.s32.totalorder %s58, %s60
      %p64 = scmp.eq.s32.totalorder %s24, 0
      %p65 = por %p63, %p64
      %p66 = scmp.ne.s32.totalorder %s58, %s60
      %p67 = scmp.eq.s32.totalorder %s29, 1
      %p68 = por %p66, %p67
      %p69 = scmp.ne.s32.totalorder %s60, %s61
      %p70 = scmp.eq.s32.totalorder %s29, 0
      %p71 = por %p69, %p70
      %p72 = scmp.ne.s32.totalorder %s60, %s61
      %p73 = scmp.eq.s32.totalorder %s30, 1
      %p74 = por %p72, %p73
      %p76 = scmp.ne.s32.totalorder %s61, %s75
      %p77 = scmp.eq.s32.totalorder %s30, 0
      %p78 = por %p76, %p77
      %s80 = sadd.s32 %s79, 1
      %p83 = scmp.eq.s32.totalorder %s24, 1
      %p84 = scmp.ne.s32.totalorder %s79, %s81
      %p85 = scmp.eq.s32.totalorder %s24, 0
      %p86 = por %p84, %p85
      %p87 = scmp.ne.s32.totalorder %s79, %s81
      %p88 = scmp.eq.s32.totalorder %s29, 1
      %p89 = por %p87, %p88
      %p90 = scmp.ne.s32.totalorder %s81, %s82
      %p91 = scmp.eq.s32.totalorder %s29, 0
      %p92 = por %p90, %p91
      %p93 = scmp.ne.s32.totalorder %s81, %s82
      %p94 = scmp.eq.s32.totalorder %s30, 1
      %p95 = por %p93, %p94
      %p97 = scmp.ne.s32.totalorder %s82, %s96
      %p98 = scmp.eq.s32.totalorder %s30, 0
      %p99 = por %p97, %p98
      %s101 = sadd.s32 %s100, 1
      %p104 = scmp.eq.s32.totalorder %s24, 1
      %p105 = scmp.ne.s32.totalorder %s100, %s102
      %p106 = scmp.eq.s32.totalorder %s24, 0
      %p107 = por %p105, %p106
      %p108 = scmp.ne.s32.totalorder %s100, %s102
      %p109 = scmp.eq.s32.totalorder %s29, 1
      %p110 = por %p108, %p109
      %p111 = scmp.ne.s32.totalorder %s102, %s103
      %p112 = scmp.eq.s32.totalorder %s29, 0
      %p113 = por %p111, %p112
      %p114 = scmp.ne.s32.totalorder %s102, %s103
      %p115 = scmp.eq.s32.totalorder %s30, 1
      %p116 = por %p114, %p115
      %p118 = scmp.ne.s32.totalorder %s103, %s117
      %p119 = scmp.eq.s32.totalorder %s30, 0
      %p120 = por %p118, %p119
      %s122 = sadd.s32 %s121, 1
      %p125 = scmp.eq.s32.totalorder %s24, 1
      %p126 = scmp.ne.s32.totalorder %s121, %s123
      %p127 = scmp.eq.s32.totalorder %s24, 0
      %p128 = por %p126, %p127
      %p129 = scmp.ne.s32.totalorder %s121, %s123
      %p130 = scmp.eq.s32.totalorder %s29, 1
      %p131 = por %p129, %p130
      %p132 = scmp.ne.s32.totalorder %s123, %s124
      %p133 = scmp.eq.s32.totalorder %s29, 0
      %p134 = por %p132, %p133
      %p135 = scmp.ne.s32.totalorder %s123, %s124
      %p136 = scmp.eq.s32.totalorder %s30, 1
      %p137 = por %p135, %p136
      %p139 = scmp.ne.s32.totalorder %s124, %s138
      %p140 = scmp.eq.s32.totalorder %s30, 0
      %p141 = por %p139, %p140
      %s143 = sadd.s32 %s142, 1
      %p146 = scmp.eq.s32.totalorder %s24, 1
      %p147 = scmp.ne.s32.totalorder %s142, %s144
      %p148 = scmp.eq.s32.totalorder %s24, 0
      %p149 = por %p147, %p148
      %p150 = scmp.ne.s32.totalorder %s142, %s144
      %p151 = scmp.eq.s32.totalorder %s29, 1
      %p152 = por %p150, %p151
      %p153 = scmp.ne.s32.totalorder %s144, %s145
      %p154 = scmp.eq.s32.totalorder %s29, 0
      %p155 = por %p153, %p154
      %p156 = scmp.ne.s32.totalorder %s144, %s145
      %p157 = scmp.eq.s32.totalorder %s30, 1
      %p158 = por %p156, %p157
      %p160 = scmp.ne.s32.totalorder %s145, %s159
      %p161 = scmp.eq.s32.totalorder %s30, 0
      %p162 = por %p160, %p161
      %s164 = sadd.s32 %s163, 1
      %p167 = scmp.eq.s32.totalorder %s24, 1
      %p168 = scmp.ne.s32.totalorder %s163, %s165
      %p169 = scmp.eq.s32.totalorder %s24, 0
      %p170 = por %p168, %p169
      %p171 = scmp.ne.s32.totalorder %s163, %s165
      %p172 = scmp.eq.s32.totalorder %s29, 1
      %p173 = por %p171, %p172
      %p174 = scmp.ne.s32.totalorder %s165, %s166
      %p175 = scmp.eq.s32.totalorder %s29, 0
      %p176 = por %p174, %p175
      %p177 = scmp.ne.s32.totalorder %s165, %s166
      %p178 = scmp.eq.s32.totalorder %s30, 1
      %p179 = por %p177, %p178
      %p181 = scmp.ne.s32.totalorder %s166, %s180
      %p182 = scmp.eq.s32.totalorder %s30, 0
      %p183 = por %p181, %p182
      %s185 = sadd.s32 %s184, 1
      %p188 = scmp.eq.s32.totalorder %s24, 1
      %p189 = scmp.ne.s32.totalorder %s184, %s186
      %p190 = scmp.eq.s32.totalorder %s24, 0
      %p191 = por %p189, %p190
      %p192 = scmp.ne.s32.totalorder %s184, %s186
      %p193 = scmp.eq.s32.totalorder %s29, 1
      %p194 = por %p192, %p193
      %p195 = scmp.ne.s32.totalorder %s186, %s187
      %p196 = scmp.eq.s32.totalorder %s29, 0
      %p197 = por %p195, %p196
      %p198 = scmp.ne.s32.totalorder %s186, %s187
      %p199 = scmp.eq.s32.totalorder %s30, 1
      %p200 = por %p198, %p199
      %p202 = scmp.ne.s32.totalorder %s187, %s201
      %p203 = scmp.eq.s32.totalorder %s30, 0
      %p204 = por %p202, %p203
      %s206 = sadd.s32 %s205, 1
      %p209 = scmp.eq.s32.totalorder %s24, 1
      %p210 = scmp.ne.s32.totalorder %s205, %s207
      %p211 = scmp.eq.s32.totalorder %s24, 0
      %p212 = por %p210, %p211
      %p213 = scmp.ne.s32.totalorder %s205, %s207
      %p214 = scmp.eq.s32.totalorder %s29, 1
      %p215 = por %p213, %p214
      %p216 = scmp.ne.s32.totalorder %s207, %s208
      %p217 = scmp.eq.s32.totalorder %s29, 0
      %p218 = por %p216, %p217
      %p219 = scmp.ne.s32.totalorder %s207, %s208
      %p220 = scmp.eq.s32.totalorder %s30, 1
      %p221 = por %p219, %p220
      %p223 = scmp.ne.s32.totalorder %s208, %s222
      %p224 = scmp.eq.s32.totalorder %s30, 0
      %p225 = por %p223, %p224
      %s227 = sadd.s32 %s226, 1
      %p230 = scmp.eq.s32.totalorder %s24, 1
      %p231 = scmp.ne.s32.totalorder %s226, %s228
      %p232 = scmp.eq.s32.totalorder %s24, 0
      %p233 = por %p231, %p232
      %p234 = scmp.ne.s32.totalorder %s226, %s228
      %p235 = scmp.eq.s32.totalorder %s29, 1
      %p236 = por %p234, %p235
      %p237 = scmp.ne.s32.totalorder %s228, %s229
      %p238 = scmp.eq.s32.totalorder %s29, 0
      %p239 = por %p237, %p238
      %p240 = scmp.ne.s32.totalorder %s228, %s229
      %p241 = scmp.eq.s32.totalorder %s30, 1
      %p242 = por %p240, %p241
      %p244 = scmp.ne.s32.totalorder %s229, %s243
      %p245 = scmp.eq.s32.totalorder %s30, 0
      %p246 = por %p244, %p245
      %s247 = ssub.s32 %s24, %s31
      %p248 = scmp.eq.s32.totalorder %s247, 0
      %s250 = sadd.s32 %s249, 1
      %s251 = scalar_select %p248, %s249, %s250
      %p254 = pneg %p248
      %p255 = scmp.eq.s32.totalorder %s24, 1
      %p256 = por %p254, %p255
      %p257 = scmp.ne.s32.totalorder %s249, %s252
      %p258 = scmp.eq.s32.totalorder %s24, 0
      %p259 = por %p257, %p258
      %p260 = scmp.ne.s32.totalorder %s249, %s252
      %p261 = scmp.eq.s32.totalorder %s29, 1
      %p262 = por %p260, %p261
      %p263 = scmp.ne.s32.totalorder %s252, %s253
      %p264 = scmp.eq.s32.totalorder %s29, 0
      %p265 = por %p263, %p264
      %p266 = scmp.ne.s32.totalorder %s252, %s253
      %p267 = scmp.eq.s32.totalorder %s30, 1
      %p268 = por %p266, %p267
      %p270 = scmp.ne.s32.totalorder %s253, %s269
      %p271 = scmp.eq.s32.totalorder %s30, 0
      %p272 = por %p270, %p271
      %p273 = scmp.le.s32.totalorder 1, %s24
      %p274 = scmp.lt.s32.totalorder %s24, 3
      %p275 = pnand %p273, %p274
      %p276 = pneg %p275
      // Predicated region
      $region9: #{tpu_custom_call.1} parent=5 // pred_check
        _
      $region10: #{tpu_custom_call.1} parent=5 // pred_check_branch
        %278 = sbr.rel (%p275) target = $region12
      $region11: #{tpu_custom_call.1} parent=5 // pred_region
        %s279 = ssub.s32 %s24, 1
        // Predicated region
        $region13: #{tpu_custom_call.1} parent=11 // pred_check
          %p280 = pneg %p71
        $region14: #{tpu_custom_call.1} parent=11 // pred_check_branch
          %282 = sbr.rel (%p280) target = $region16
        $region15: #{tpu_custom_call.1} parent=11 // pred_region
          %s284 = ssub.s32 2048, 2048
          %285 = vsyncadd [#allocation7], %s284
          %s286 = sshll.u32 [#allocation6], 4
          %s287 = int_to_ptr.vmem [resolvable:$true] %s286
          %292 = dma.hbm_to_vmem [thread:$0]  %s1, 2048, %s287, [#allocation7], 128, 128, 8
        $region16: #{tpu_custom_call.1} parent=11 // pred_fallthru
          _
        // Predicated region
        $region17: #{tpu_custom_call.1} parent=11 // pred_check
          %p293 = pneg %p92
        $region18: #{tpu_custom_call.1} parent=11 // pred_check_branch
          %295 = sbr.rel (%p293) target = $region20
        $region19: #{tpu_custom_call.1} parent=11 // pred_region
          _
        $region20: #{tpu_custom_call.1} parent=11 // pred_fallthru
          _
        // Predicated region
        $region21: #{tpu_custom_call.1} parent=11 // pred_check
          %p296 = pneg %p113
        $region22: #{tpu_custom_call.1} parent=11 // pred_check_branch
          %298 = sbr.rel (%p296) target = $region24
        $region23: #{tpu_custom_call.1} parent=11 // pred_region
          _
        $region24: #{tpu_custom_call.1} parent=11 // pred_fallthru
          _
        // Predicated region
        $region25: #{tpu_custom_call.1} parent=11 // pred_check
          %p299 = pneg %p134
        $region26: #{tpu_custom_call.1} parent=11 // pred_check_branch
          %301 = sbr.rel (%p299) target = $region28
        $region27: #{tpu_custom_call.1} parent=11 // pred_region
          %s303 = ssub.s32 18432, 18432
          %304 = vsyncadd [#allocation7], %s303
          %s305 = sshll.u32 [#allocation8], 4
          %s306 = int_to_ptr.vmem [resolvable:$true] %s305
          %311 = dma.hbm_to_vmem [thread:$0]  %s4, 18432, %s306, [#allocation7], 128, 128, 8
        $region28: #{tpu_custom_call.1} parent=11 // pred_fallthru
          _
        // Predicated region
        $region29: #{tpu_custom_call.1} parent=11 // pred_check
          %p312 = pneg %p155
        $region30: #{tpu_custom_call.1} parent=11 // pred_check_branch
          %314 = sbr.rel (%p312) target = $region32
        $region31: #{tpu_custom_call.1} parent=11 // pred_region
          _
        $region32: #{tpu_custom_call.1} parent=11 // pred_fallthru
          _
        // Predicated region
        $region33: #{tpu_custom_call.1} parent=11 // pred_check
          %p315 = pneg %p176
        $region34: #{tpu_custom_call.1} parent=11 // pred_check_branch
          %317 = sbr.rel (%p315) target = $region36
        $region35: #{tpu_custom_call.1} parent=11 // pred_region
          _
        $region36: #{tpu_custom_call.1} parent=11 // pred_fallthru
          _
        // Predicated region
        $region37: #{tpu_custom_call.1} parent=11 // pred_check
          %p318 = pneg %p197
        $region38: #{tpu_custom_call.1} parent=11 // pred_check_branch
          %320 = sbr.rel (%p318) target = $region40
        $region39: #{tpu_custom_call.1} parent=11 // pred_region
          %s322 = ssub.s32 2048, 2048
          %323 = vsyncadd [#allocation10], %s322
          %s324 = sshll.u32 [#allocation9], 4
          %s325 = int_to_ptr.vmem [resolvable:$true] %s324
          %330 = dma.hbm_to_vmem [thread:$0]  %s7, 2048, %s325, [#allocation10], 128, 128, 8
        $region40: #{tpu_custom_call.1} parent=11 // pred_fallthru
          _
        // Predicated region
        $region41: #{tpu_custom_call.1} parent=11 // pred_check
          %p331 = pneg %p218
        $region42: #{tpu_custom_call.1} parent=11 // pred_check_branch
          %333 = sbr.rel (%p331) target = $region44
        $region43: #{tpu_custom_call.1} parent=11 // pred_region
          _
        $region44: #{tpu_custom_call.1} parent=11 // pred_fallthru
          _
        // Predicated region
        $region45: #{tpu_custom_call.1} parent=11 // pred_check
          %p334 = pneg %p239
        $region46: #{tpu_custom_call.1} parent=11 // pred_check_branch
          %336 = sbr.rel (%p334) target = $region48
        $region47: #{tpu_custom_call.1} parent=11 // pred_region
          _
        $region48: #{tpu_custom_call.1} parent=11 // pred_fallthru
          _
      $region12: #{tpu_custom_call.1} parent=5 // pred_fallthru
        _
      %p337 = scmp.lt.s32.totalorder %s24, 2
      // Predicated region
      $region49: #{tpu_custom_call.1} parent=5 // pred_check
        %p338 = pneg %p337
      $region50: #{tpu_custom_call.1} parent=5 // pred_check_branch
        %340 = sbr.rel (%p338) target = $region52
      $region51: #{tpu_custom_call.1} parent=5 // pred_region
        // Predicated region
        $region53: #{tpu_custom_call.1} parent=51 // pred_check
          %p341 = pneg %p44
        $region54: #{tpu_custom_call.1} parent=51 // pred_check_branch
          %343 = sbr.rel (%p341) target = $region56
        $region55: #{tpu_custom_call.1} parent=51 // pred_region
          %s344 = sand.u32 %s34, 1
          %s345 = scalar_lea.sflag [#allocation4], %s344
          %s346 = sand.u32 %s34, 1
          %s347 = smul.addr %s346, 256
          %s348 = scalar_lea.vmem [#allocation3], %s347
          %s350 = ssub.s32 4096, 4096
          %351 = vsyncadd %s345, %s350
          %s352 = smul.addr %s24, 32
          %s353 = smul.addr %s352, 128
          %s354 = scalar_lea.hbm %s0, %s353
          %s355 = sshll.u32 %s348, 4
          %s356 = int_to_ptr.vmem [resolvable:$true] %s355
          %361 = dma.hbm_to_vmem [thread:$0]  %s354, 4096, %s356, %s345, 128, 128, 8
        $region56: #{tpu_custom_call.1} parent=51 // pred_fallthru
          _
      $region52: #{tpu_custom_call.1} parent=5 // pred_fallthru
        _
      %p362 = scmp.le.s32.totalorder 1, %s24
      %p363 = scmp.lt.s32.totalorder %s24, 3
      %p364 = pnand %p362, %p363
      %p365 = pneg %p364
      // Predicated region
      $region57: #{tpu_custom_call.1} parent=5 // pred_check
        _
      $region58: #{tpu_custom_call.1} parent=5 // pred_check_branch
        %367 = sbr.rel (%p364) target = $region60
      $region59: #{tpu_custom_call.1} parent=5 // pred_region
        %s368 = ssub.s32 %s24, 1
        %s369 = sand.u32 %s37, 1
        %s370 = scalar_lea.sflag [#allocation4], %s369
        %s371 = sand.u32 %s37, 1
        %s372 = smul.addr %s371, 256
        %s373 = scalar_lea.vmem [#allocation3], %s372
        // Predicated region
        $region61: #{tpu_custom_call.1} parent=59 // pred_check
          %p374 = pneg %p50
        $region62: #{tpu_custom_call.1} parent=59 // pred_check_branch
          %376 = sbr.rel (%p374) target = $region64
        $region63: #{tpu_custom_call.1} parent=59 // pred_region
          %377 = dma.done %s370, 4096
        $region64: #{tpu_custom_call.1} parent=59 // pred_fallthru
          _
        // Predicated region
        $region65: #{tpu_custom_call.1} parent=59 // pred_check
          %p378 = pneg %p71
        $region66: #{tpu_custom_call.1} parent=59 // pred_check_branch
          %380 = sbr.rel (%p378) target = $region68
        $region67: #{tpu_custom_call.1} parent=59 // pred_region
          %381 = dma.done [#allocation7], 2048
        $region68: #{tpu_custom_call.1} parent=59 // pred_fallthru
          _
        // Predicated region
        $region69: #{tpu_custom_call.1} parent=59 // pred_check
          %p382 = pneg %p134
        $region70: #{tpu_custom_call.1} parent=59 // pred_check_branch
          %384 = sbr.rel (%p382) target = $region72
        $region71: #{tpu_custom_call.1} parent=59 // pred_region
          %385 = dma.done [#allocation7], 18432
        $region72: #{tpu_custom_call.1} parent=59 // pred_fallthru
          _
        // Predicated region
        $region73: #{tpu_custom_call.1} parent=59 // pred_check
          %p386 = pneg %p197
        $region74: #{tpu_custom_call.1} parent=59 // pred_check_branch
          %388 = sbr.rel (%p386) target = $region76
        $region75: #{tpu_custom_call.1} parent=59 // pred_region
          %389 = dma.done [#allocation10], 2048
        $region76: #{tpu_custom_call.1} parent=59 // pred_fallthru
          _
        %s390 = sand.u32 %s37, 1
        %s391 = scalar_lea.sflag [#allocation4], %s390
        %s392 = sand.u32 %s37, 1
        %s393 = smul.addr %s392, 256
        %s394 = scalar_lea.vmem [#allocation3], %s393
        %p395 = pneg %p50
        %p396 = pneg %p47
        %p397 = pneg %p71
        %p398 = pneg %p68
        %p399 = pneg %p92
        %p400 = pneg %p89
        %p401 = pneg %p113
        %p402 = pneg %p110
        %p403 = pneg %p134
        %p404 = pneg %p131
        %p405 = pneg %p155
        %p406 = pneg %p152
        %p407 = pneg %p176
        %p408 = pneg %p173
        %p409 = pneg %p197
        %p410 = pneg %p194
        %p411 = pneg %p218
        %p412 = pneg %p215
        %p413 = pneg %p239
        %p414 = pneg %p236
        %p415 = pneg %p265
        %p416 = pneg %p262
        %s417 = sand.u32 %s252, 1
        %s418 = scalar_lea.sflag [#allocation5], %s417
        %s419 = sand.u32 %s252, 1
        %s420 = smul.addr %s419, 256
        %s421 = scalar_lea.vmem [#allocation11], %s420
        %422 = vst [vmem:[#allocation2] sm:$0xff] 0.0
        %423 = vst [vmem:[#allocation2 + $0x8] sm:$0xff] 0.0
        %424 = vst [vmem:[#allocation2 + $0x10] sm:$0x3] 0.0
        %s425 = scalar_lea.vmem [#allocation2], 408
        %426 = vst [vmem:[%s425] sm:$0xff] 0.0
        %427 = vst [vmem:[%s425 + $0x8] sm:$0xff] 0.0
        %428 = vst [vmem:[%s425 + $0x10] sm:$0x3] 0.0
        %429 = vst [vmem:[#allocation2] sm:$0x1] 0.0
        %430 = vst [vmem:[#allocation2 + $0x18] sm:$0x1] 0.0
        %431 = vst [vmem:[#allocation2 + $0x30] sm:$0x1] 0.0
        %432 = vst [vmem:[#allocation2 + $0x48] sm:$0x1] 0.0
        %433 = vst [vmem:[#allocation2 + $0x60] sm:$0x1] 0.0
        %434 = vst [vmem:[#allocation2 + $0x78] sm:$0x1] 0.0
        %435 = vst [vmem:[#allocation2 + $0x90] sm:$0x1] 0.0
        %436 = vst [vmem:[#allocation2 + $0xa8] sm:$0x1] 0.0
        %437 = vst [vmem:[#allocation2 + $0xc0] sm:$0x1] 0.0
        %438 = vst [vmem:[#allocation2 + $0xd8] sm:$0x1] 0.0
        %439 = vst [vmem:[#allocation2 + $0xf0] sm:$0x1] 0.0
        %440 = vst [vmem:[#allocation2 + $0x108] sm:$0x1] 0.0
        %441 = vst [vmem:[#allocation2 + $0x120] sm:$0x1] 0.0
        %442 = vst [vmem:[#allocation2 + $0x138] sm:$0x1] 0.0
        %443 = vst [vmem:[#allocation2 + $0x150] sm:$0x1] 0.0
        %444 = vst [vmem:[#allocation2 + $0x168] sm:$0x1] 0.0
        %445 = vst [vmem:[#allocation2 + $0x180] sm:$0x1] 0.0
        %446 = vst [vmem:[#allocation2 + $0x198] sm:$0x1] 0.0
        %447 = vst [vmem:[#allocation2 + $0x11] sm:$0x1] 0.0
        %448 = vst [vmem:[#allocation2 + $0x29] sm:$0x1] 0.0
        %449 = vst [vmem:[#allocation2 + $0x41] sm:$0x1] 0.0
        %450 = vst [vmem:[#allocation2 + $0x59] sm:$0x1] 0.0
        %451 = vst [vmem:[#allocation2 + $0x71] sm:$0x1] 0.0
        %452 = vst [vmem:[#allocation2 + $0x89] sm:$0x1] 0.0
        %453 = vst [vmem:[#allocation2 + $0xa1] sm:$0x1] 0.0
        %454 = vst [vmem:[#allocation2 + $0xb9] sm:$0x1] 0.0
        %455 = vst [vmem:[#allocation2 + $0xd1] sm:$0x1] 0.0
        %456 = vst [vmem:[#allocation2 + $0xe9] sm:$0x1] 0.0
        %457 = vst [vmem:[#allocation2 + $0x101] sm:$0x1] 0.0
        %458 = vst [vmem:[#allocation2 + $0x119] sm:$0x1] 0.0
        %459 = vst [vmem:[#allocation2 + $0x131] sm:$0x1] 0.0
        %460 = vst [vmem:[#allocation2 + $0x149] sm:$0x1] 0.0
        %461 = vst [vmem:[#allocation2 + $0x161] sm:$0x1] 0.0
        %462 = vst [vmem:[#allocation2 + $0x179] sm:$0x1] 0.0
        %463 = vst [vmem:[#allocation2 + $0x191] sm:$0x1] 0.0
        %464 = vst [vmem:[#allocation2 + $0x1a9] sm:$0x1] 0.0
        %v465 = vld [vmem:[%s373] sm:$0xff]
        %v466 = vld [vmem:[%s373 + $0x8] sm:$0xff]
        %v467 = vld [vmem:[%s373 + $0x10] sm:$0xff]
        %v468 = vld [vmem:[%s373 + $0x18] sm:$0xff]
        %v469 = vld [vmem:[%s373 + $0x20] sm:$0xff]
        %v470 = vld [vmem:[%s373 + $0x28] sm:$0xff]
        %v471 = vld [vmem:[%s373 + $0x30] sm:$0xff]
        %v472 = vld [vmem:[%s373 + $0x38] sm:$0xff]
        %v473 = vld [vmem:[%s373 + $0x40] sm:$0xff]
        %v474 = vld [vmem:[%s373 + $0x48] sm:$0xff]
        %v475 = vld [vmem:[%s373 + $0x50] sm:$0xff]
        %v476 = vld [vmem:[%s373 + $0x58] sm:$0xff]
        %v477 = vld [vmem:[%s373 + $0x60] sm:$0xff]
        %v478 = vld [vmem:[%s373 + $0x68] sm:$0xff]
        %v479 = vld [vmem:[%s373 + $0x70] sm:$0xff]
        %v480 = vld [vmem:[%s373 + $0x78] sm:$0xff]
        %v481 = vld [vmem:[%s373 + $0x80] sm:$0xff]
        %v482 = vld [vmem:[%s373 + $0x88] sm:$0xff]
        %v483 = vld [vmem:[%s373 + $0x90] sm:$0xff]
        %v484 = vld [vmem:[%s373 + $0x98] sm:$0xff]
        %v485 = vld [vmem:[%s373 + $0xa0] sm:$0xff]
        %v486 = vld [vmem:[%s373 + $0xa8] sm:$0xff]
        %v487 = vld [vmem:[%s373 + $0xb0] sm:$0xff]
        %v488 = vld [vmem:[%s373 + $0xb8] sm:$0xff]
        %v489 = vld [vmem:[%s373 + $0xc0] sm:$0xff]
        %v490 = vld [vmem:[%s373 + $0xc8] sm:$0xff]
        %v491 = vld [vmem:[%s373 + $0xd0] sm:$0xff]
        %v492 = vld [vmem:[%s373 + $0xd8] sm:$0xff]
        %v493 = vld [vmem:[%s373 + $0xe0] sm:$0xff]
        %v494 = vld [vmem:[%s373 + $0xe8] sm:$0xff]
        %v495 = vld [vmem:[%s373 + $0xf0] sm:$0xff]
        %v496 = vld [vmem:[%s373 + $0xf8] sm:$0xff]
        %v497 = vld [vmem:[#allocation6] sm:$0xff]
        %v498 = vld [vmem:[#allocation6 + $0x8] sm:$0xff]
        %v499 = vld [vmem:[#allocation6 + $0x10] sm:$0xff]
        %v500 = vld [vmem:[#allocation6 + $0x18] sm:$0xff]
        %v501 = vld [vmem:[#allocation6 + $0x20] sm:$0xff]
        %v502 = vld [vmem:[#allocation6 + $0x28] sm:$0xff]
        %v503 = vld [vmem:[#allocation6 + $0x30] sm:$0xff]
        %v504 = vld [vmem:[#allocation6 + $0x38] sm:$0xff]
        %v505 = vld [vmem:[#allocation6 + $0x40] sm:$0xff]
        %v506 = vld [vmem:[#allocation6 + $0x48] sm:$0xff]
        %v507 = vld [vmem:[#allocation6 + $0x50] sm:$0xff]
        %v508 = vld [vmem:[#allocation6 + $0x58] sm:$0xff]
        %v509 = vld [vmem:[#allocation6 + $0x60] sm:$0xff]
        %v510 = vld [vmem:[#allocation6 + $0x68] sm:$0xff]
        %v511 = vld [vmem:[#allocation6 + $0x70] sm:$0xff]
        %v512 = vld [vmem:[#allocation6 + $0x78] sm:$0xff]
        %513 = vmatprep.subr.mxu0 0.0
        %514 = vmatpush1.msra.mxu0 %v497
        %515 = vmatprep.subr.mxu0 0.0
        %516 = vmatpush1.msra.mxu0 %v498
        %517 = vmatprep.subr.mxu0 0.0
        %518 = vmatpush1.msra.mxu0 %v499
        %519 = vmatprep.subr.mxu0 0.0
        %520 = vmatpush1.msra.mxu0 %v500
        %521 = vmatprep.subr.mxu0 0.0
        %522 = vmatpush1.msra.mxu0 %v501
        %523 = vmatprep.subr.mxu0 0.0
        %524 = vmatpush1.msra.mxu0 %v502
        %525 = vmatprep.subr.mxu0 0.0
        %526 = vmatpush1.msra.mxu0 %v503
        %527 = vmatprep.subr.mxu0 0.0
        %528 = vmatpush1.msra.mxu0 %v504
        %529 = vmatprep.subr.mxu0 0.0
        %530 = vmatpush1.msra.mxu0 %v505
        %531 = vmatprep.subr.mxu0 0.0
        %532 = vmatpush1.msra.mxu0 %v506
        %533 = vmatprep.subr.mxu0 0.0
        %534 = vmatpush1.msra.mxu0 %v507
        %535 = vmatprep.subr.mxu0 0.0
        %536 = vmatpush1.msra.mxu0 %v508
        %537 = vmatprep.subr.mxu0 0.0
        %538 = vmatpush1.msra.mxu0 %v509
        %539 = vmatprep.subr.mxu0 0.0
        %540 = vmatpush1.msra.mxu0 %v510
        %541 = vmatprep.subr.mxu0 0.0
        %542 = vmatpush1.msra.mxu0 %v511
        %543 = vmatprep.subr.mxu0 0.0
        %544 = vmatpush1.msra.mxu0 %v512
        %545 = vmatprep.subr.mxu0 0.0
        %546 = vmatpush1.msra.mxu0 0.0
        %547 = vmatprep.subr.mxu0 0.0
        %548 = vmatpush1.msra.mxu0 0.0
        %549 = vmatprep.subr.mxu0 0.0
        %550 = vmatpush1.msra.mxu0 0.0
        %551 = vmatprep.subr.mxu0 0.0
        %552 = vmatpush1.msra.mxu0 0.0
        %553 = vmatprep.subr.mxu0 0.0
        %554 = vmatpush1.msra.mxu0 0.0
        %555 = vmatprep.subr.mxu0 0.0
        %556 = vmatpush1.msra.mxu0 0.0
        %557 = vmatprep.subr.mxu0 0.0
        %558 = vmatpush1.msra.mxu0 0.0
        %559 = vmatprep.subr.mxu0 0.0
        %560 = vmatpush1.msra.mxu0 0.0
        %561 = vmatprep.subr.mxu0 0.0
        %562 = vmatpush1.msra.mxu0 0.0
        %563 = vmatprep.subr.mxu0 0.0
        %564 = vmatpush1.msra.mxu0 0.0
        %565 = vmatprep.subr.mxu0 0.0
        %566 = vmatpush1.msra.mxu0 0.0
        %567 = vmatprep.subr.mxu0 0.0
        %568 = vmatpush1.msra.mxu0 0.0
        %569 = vmatprep.subr.mxu0 0.0
        %570 = vmatpush1.msra.mxu0 0.0
        %571 = vmatprep.subr.mxu0 0.0
        %572 = vmatpush1.msra.mxu0 0.0
        %573 = vmatprep.subr.mxu0 0.0
        %574 = vmatpush1.msra.mxu0 0.0
        %575 = vmatprep.subr.mxu0 0.0
        %576 = vmatpush1.msra.mxu0 0.0
        %577 = vmatprep.mubr.f32.mxu0 0.0
        %578 = vmatmul.mubr.f32.gmra.mrb[0].mxu0 %v465
        %v579 = vpop.f32.mrb[0].mxu0
        %v580 = vadd.f32 0.0, %v579
        %v581 = vpop.f32.mrb[0].mxu0
        %582 = vmatprep.mubr.f32.mxu0 0.0
        %583 = vmatmul.mubr.f32.gmra.mrb[0].mxu0 %v466
        %v584 = vpop.f32.mrb[0].mxu0
        %v585 = vadd.f32 0.0, %v584
        %v586 = vpop.f32.mrb[0].mxu0
        %587 = vmatprep.mubr.f32.mxu0 0.0
        %588 = vmatmul.mubr.f32.gmra.mrb[0].mxu0 %v467
        %v589 = vpop.f32.mrb[0].mxu0
        %v590 = vadd.f32 0.0, %v589
        %v591 = vpop.f32.mrb[0].mxu0
        %592 = vmatprep.mubr.f32.mxu0 0.0
        %593 = vmatmul.mubr.f32.gmra.mrb[0].mxu0 %v468
        %v594 = vpop.f32.mrb[0].mxu0
        %v595 = vadd.f32 0.0, %v594
        %v596 = vpop.f32.mrb[0].mxu0
        %597 = vmatprep.mubr.f32.mxu0 0.0
        %598 = vmatmul.mubr.f32.gmra.mrb[0].mxu0 %v469
        %v599 = vpop.f32.mrb[0].mxu0
        %v600 = vadd.f32 0.0, %v599
        %v601 = vpop.f32.mrb[0].mxu0
        %602 = vmatprep.mubr.f32.mxu0 0.0
        %603 = vmatmul.mubr.f32.gmra.mrb[0].mxu0 %v470
        %v604 = vpop.f32.mrb[0].mxu0
        %v605 = vadd.f32 0.0, %v604
        %v606 = vpop.f32.mrb[0].mxu0
        %607 = vmatprep.mubr.f32.mxu0 0.0
        %608 = vmatmul.mubr.f32.gmra.mrb[0].mxu0 %v471
        %v609 = vpop.f32.mrb[0].mxu0
        %v610 = vadd.f32 0.0, %v609
        %v611 = vpop.f32.mrb[0].mxu0
        %612 = vmatprep.mubr.f32.mxu0 0.0
        %613 = vmatmul.mubr.f32.gmra.mrb[0].mxu0 %v472
        %v614 = vpop.f32.mrb[0].mxu0
        %v615 = vadd.f32 0.0, %v614
        %v616 = vpop.f32.mrb[0].mxu0
        %617 = vmatprep.mubr.f32.mxu0 0.0
        %618 = vmatmul.mubr.f32.gmra.mrb[0].mxu0 %v473
        %v619 = vpop.f32.mrb[0].mxu0
        %v620 = vadd.f32 0.0, %v619
        %v621 = vpop.f32.mrb[0].mxu0
        %622 = vmatprep.mubr.f32.mxu0 0.0
        %623 = vmatmul.mubr.f32.gmra.mrb[0].mxu0 %v474
        %v624 = vpop.f32.mrb[0].mxu0
        %v625 = vadd.f32 0.0, %v624
        %v626 = vpop.f32.mrb[0].mxu0
        %627 = vmatprep.mubr.f32.mxu0 0.0
        %628 = vmatmul.mubr.f32.gmra.mrb[0].mxu0 %v475
        %v629 = vpop.f32.mrb[0].mxu0
        %v630 = vadd.f32 0.0, %v629
        %v631 = vpop.f32.mrb[0].mxu0
        %632 = vmatprep.mubr.f32.mxu0 0.0
        %633 = vmatmul.mubr.f32.gmra.mrb[0].mxu0 %v476
        %v634 = vpop.f32.mrb[0].mxu0
        %v635 = vadd.f32 0.0, %v634
        %v636 = vpop.f32.mrb[0].mxu0
        %637 = vmatprep.mubr.f32.mxu0 0.0
        %638 = vmatmul.mubr.f32.gmra.mrb[0].mxu0 %v477
        %v639 = vpop.f32.mrb[0].mxu0
        %v640 = vadd.f32 0.0, %v639
        %v641 = vpop.f32.mrb[0].mxu0
        %642 = vmatprep.mubr.f32.mxu0 0.0
        %643 = vmatmul.mubr.f32.gmra.mrb[0].mxu0 %v478
        %v644 = vpop.f32.mrb[0].mxu0
        %v645 = vadd.f32 0.0, %v644
        %v646 = vpop.f32.mrb[0].mxu0
        %647 = vmatprep.mubr.f32.mxu0 0.0
        %648 = vmatmul.mubr.f32.gmra.mrb[0].mxu0 %v479
        %v649 = vpop.f32.mrb[0].mxu0
        %v650 = vadd.f32 0.0, %v649
        %v651 = vpop.f32.mrb[0].mxu0
        %652 = vmatprep.mubr.f32.mxu0 0.0
        %653 = vmatmul.mubr.f32.gmra.mrb[0].mxu0 %v480
        %v654 = vpop.f32.mrb[0].mxu0
        %v655 = vadd.f32 0.0, %v654
        %v656 = vpop.f32.mrb[0].mxu0
        %657 = vmatprep.mubr.f32.mxu0 0.0
        %658 = vmatmul.mubr.f32.gmra.mrb[0].mxu0 %v481
        %v659 = vpop.f32.mrb[0].mxu0
        %v660 = vadd.f32 0.0, %v659
        %v661 = vpop.f32.mrb[0].mxu0
        %662 = vmatprep.mubr.f32.mxu0 0.0
        %663 = vmatmul.mubr.f32.gmra.mrb[0].mxu0 %v482
        %v664 = vpop.f32.mrb[0].mxu0
        %v665 = vadd.f32 0.0, %v664
        %v666 = vpop.f32.mrb[0].mxu0
        %667 = vmatprep.mubr.f32.mxu0 0.0
        %668 = vmatmul.mubr.f32.gmra.mrb[0].mxu0 %v483
        %v669 = vpop.f32.mrb[0].mxu0
        %v670 = vadd.f32 0.0, %v669
        %v671 = vpop.f32.mrb[0].mxu0
        %672 = vmatprep.mubr.f32.mxu0 0.0
        %673 = vmatmul.mubr.f32.gmra.mrb[0].mxu0 %v484
        %v674 = vpop.f32.mrb[0].mxu0
        %v675 = vadd.f32 0.0, %v674
        %v676 = vpop.f32.mrb[0].mxu0
        %677 = vmatprep.mubr.f32.mxu0 0.0
        %678 = vmatmul.mubr.f32.gmra.mrb[0].mxu0 %v485
        %v679 = vpop.f32.mrb[0].mxu0
        %v680 = vadd.f32 0.0, %v679
        %v681 = vpop.f32.mrb[0].mxu0
        %682 = vmatprep.mubr.f32.mxu0 0.0
        %683 = vmatmul.mubr.f32.gmra.mrb[0].mxu0 %v486
        %v684 = vpop.f32.mrb[0].mxu0
        %v685 = vadd.f32 0.0, %v684
        %v686 = vpop.f32.mrb[0].mxu0
        %687 = vmatprep.mubr.f32.mxu0 0.0
        %688 = vmatmul.mubr.f32.gmra.mrb[0].mxu0 %v487
        %v689 = vpop.f32.mrb[0].mxu0
        %v690 = vadd.f32 0.0, %v689
        %v691 = vpop.f32.mrb[0].mxu0
        %692 = vmatprep.mubr.f32.mxu0 0.0
        %693 = vmatmul.mubr.f32.gmra.mrb[0].mxu0 %v488
        %v694 = vpop.f32.mrb[0].mxu0
        %v695 = vadd.f32 0.0, %v694
        %v696 = vpop.f32.mrb[0].mxu0
        %697 = vmatprep.mubr.f32.mxu0 0.0
        %698 = vmatmul.mubr.f32.gmra.mrb[0].mxu0 %v489
        %v699 = vpop.f32.mrb[0].mxu0
        %v700 = vadd.f32 0.0, %v699
        %v701 = vpop.f32.mrb[0].mxu0
        %702 = vmatprep.mubr.f32.mxu0 0.0
        %703 = vmatmul.mubr.f32.gmra.mrb[0].mxu0 %v490
        %v704 = vpop.f32.mrb[0].mxu0
        %v705 = vadd.f32 0.0, %v704
        %v706 = vpop.f32.mrb[0].mxu0
        %707 = vmatprep.mubr.f32.mxu0 0.0
        %708 = vmatmul.mubr.f32.gmra.mrb[0].mxu0 %v491
        %v709 = vpop.f32.mrb[0].mxu0
        %v710 = vadd.f32 0.0, %v709
        %v711 = vpop.f32.mrb[0].mxu0
        %712 = vmatprep.mubr.f32.mxu0 0.0
        %713 = vmatmul.mubr.f32.gmra.mrb[0].mxu0 %v492
        %v714 = vpop.f32.mrb[0].mxu0
        %v715 = vadd.f32 0.0, %v714
        %v716 = vpop.f32.mrb[0].mxu0
        %717 = vmatprep.mubr.f32.mxu0 0.0
        %718 = vmatmul.mubr.f32.gmra.mrb[0].mxu0 %v493
        %v719 = vpop.f32.mrb[0].mxu0
        %v720 = vadd.f32 0.0, %v719
        %v721 = vpop.f32.mrb[0].mxu0
        %722 = vmatprep.mubr.f32.mxu0 0.0
        %723 = vmatmul.mubr.f32.gmra.mrb[0].mxu0 %v494
        %v724 = vpop.f32.mrb[0].mxu0
        %v725 = vadd.f32 0.0, %v724
        %v726 = vpop.f32.mrb[0].mxu0
        %727 = vmatprep.mubr.f32.mxu0 0.0
        %728 = vmatmul.mubr.f32.gmra.mrb[0].mxu0 %v495
        %v729 = vpop.f32.mrb[0].mxu0
        %v730 = vadd.f32 0.0, %v729
        %v731 = vpop.f32.mrb[0].mxu0
        %732 = vmatprep.mubr.f32.mxu0 0.0
        %733 = vmatmul.mubr.f32.gmra.mrb[0].mxu0 %v496
        %v734 = vpop.f32.mrb[0].mxu0
        %v735 = vadd.f32 0.0, %v734
        %v736 = vpop.f32.mrb[0].mxu0
        %737 = vdwg.mxu0
        %v738 = vld [vmem:[%s2] sm:$0x1]
        %v740 = vlaneseq
        %v741 = vshrl.u32 %v740, 7
        %v742 = vsub.s32 0, %v741
        %v743 = vrot.slane %v738, %v742
        %v745 = vmul.f32 %v580, %v743
        %v746 = vmul.f32 %v585, %v743
        %v747 = vmul.f32 %v590, %v743
        %v748 = vmul.f32 %v595, %v743
        %v749 = vmul.f32 %v600, %v743
        %v750 = vmul.f32 %v605, %v743
        %v751 = vmul.f32 %v610, %v743
        %v752 = vmul.f32 %v615, %v743
        %v753 = vmul.f32 %v620, %v743
        %v754 = vmul.f32 %v625, %v743
        %v755 = vmul.f32 %v630, %v743
        %v756 = vmul.f32 %v635, %v743
        %v757 = vmul.f32 %v640, %v743
        %v758 = vmul.f32 %v645, %v743
        %v759 = vmul.f32 %v650, %v743
        %v760 = vmul.f32 %v655, %v743
        %v761 = vmul.f32 %v660, %v743
        %v762 = vmul.f32 %v665, %v743
        %v763 = vmul.f32 %v670, %v743
        %v764 = vmul.f32 %v675, %v743
        %v765 = vmul.f32 %v680, %v743
        %v766 = vmul.f32 %v685, %v743
        %v767 = vmul.f32 %v690, %v743
        %v768 = vmul.f32 %v695, %v743
        %v769 = vmul.f32 %v700, %v743
        %v770 = vmul.f32 %v705, %v743
        %v771 = vmul.f32 %v710, %v743
        %v772 = vmul.f32 %v715, %v743
        %v773 = vmul.f32 %v720, %v743
        %v774 = vmul.f32 %v725, %v743
        %v775 = vmul.f32 %v730, %v743
        %v776 = vmul.f32 %v735, %v743
        %v777 = vld [vmem:[%s3] sm:$0x1]
        %v779 = vlaneseq
        %v780 = vshrl.u32 %v779, 7
        %v781 = vsub.s32 0, %v780
        %v782 = vrot.slane %v777, %v781
        %v784 = vadd.f32 %v745, %v782
        %v785 = vadd.f32 %v746, %v782
        %v786 = vadd.f32 %v747, %v782
        %v787 = vadd.f32 %v748, %v782
        %v788 = vadd.f32 %v749, %v782
        %v789 = vadd.f32 %v750, %v782
        %v790 = vadd.f32 %v751, %v782
        %v791 = vadd.f32 %v752, %v782
        %v792 = vadd.f32 %v753, %v782
        %v793 = vadd.f32 %v754, %v782
        %v794 = vadd.f32 %v755, %v782
        %v795 = vadd.f32 %v756, %v782
        %v796 = vadd.f32 %v757, %v782
        %v797 = vadd.f32 %v758, %v782
        %v798 = vadd.f32 %v759, %v782
        %v799 = vadd.f32 %v760, %v782
        %v800 = vadd.f32 %v761, %v782
        %v801 = vadd.f32 %v762, %v782
        %v802 = vadd.f32 %v763, %v782
        %v803 = vadd.f32 %v764, %v782
        %v804 = vadd.f32 %v765, %v782
        %v805 = vadd.f32 %v766, %v782
        %v806 = vadd.f32 %v767, %v782
        %v807 = vadd.f32 %v768, %v782
        %v808 = vadd.f32 %v769, %v782
        %v809 = vadd.f32 %v770, %v782
        %v810 = vadd.f32 %v771, %v782
        %v811 = vadd.f32 %v772, %v782
        %v812 = vadd.f32 %v773, %v782
        %v813 = vadd.f32 %v774, %v782
        %v814 = vadd.f32 %v775, %v782
        %v815 = vadd.f32 %v776, %v782
        %v816 = vmax.f32 %v784, 0.0
        %v817 = vmax.f32 %v785, 0.0
        %v818 = vmax.f32 %v786, 0.0
        %v819 = vmax.f32 %v787, 0.0
        %v820 = vmax.f32 %v788, 0.0
        %v821 = vmax.f32 %v789, 0.0
        %v822 = vmax.f32 %v790, 0.0
        %v823 = vmax.f32 %v791, 0.0
        %v824 = vmax.f32 %v792, 0.0
        %v825 = vmax.f32 %v793, 0.0
        %v826 = vmax.f32 %v794, 0.0
        %v827 = vmax.f32 %v795, 0.0
        %v828 = vmax.f32 %v796, 0.0
        %v829 = vmax.f32 %v797, 0.0
        %v830 = vmax.f32 %v798, 0.0
        %v831 = vmax.f32 %v799, 0.0
        %v832 = vmax.f32 %v800, 0.0
        %v833 = vmax.f32 %v801, 0.0
        %v834 = vmax.f32 %v802, 0.0
        %v835 = vmax.f32 %v803, 0.0
        %v836 = vmax.f32 %v804, 0.0
        %v837 = vmax.f32 %v805, 0.0
        %v838 = vmax.f32 %v806, 0.0
        %v839 = vmax.f32 %v807, 0.0
        %v840 = vmax.f32 %v808, 0.0
        %v841 = vmax.f32 %v809, 0.0
        %v842 = vmax.f32 %v810, 0.0
        %v843 = vmax.f32 %v811, 0.0
        %v844 = vmax.f32 %v812, 0.0
        %v845 = vmax.f32 %v813, 0.0
        %v846 = vmax.f32 %v814, 0.0
        %v847 = vmax.f32 %v815, 0.0
        %s848 = scalar_lea.vmem [#allocation2], 24
        %849 = vst [vmem:[%s848 + $0x1] sm:$0xff] %v816
        %850 = vst [vmem:[%s848 + $0x9] sm:$0xff] %v817
        %851 = vst [vmem:[%s848 + $0x19] sm:$0xff] %v818
        %852 = vst [vmem:[%s848 + $0x21] sm:$0xff] %v819
        %853 = vst [vmem:[%s848 + $0x31] sm:$0xff] %v820
        %854 = vst [vmem:[%s848 + $0x39] sm:$0xff] %v821
        %855 = vst [vmem:[%s848 + $0x49] sm:$0xff] %v822
        %856 = vst [vmem:[%s848 + $0x51] sm:$0xff] %v823
        %857 = vst [vmem:[%s848 + $0x61] sm:$0xff] %v824
        %858 = vst [vmem:[%s848 + $0x69] sm:$0xff] %v825
        %859 = vst [vmem:[%s848 + $0x79] sm:$0xff] %v826
        %860 = vst [vmem:[%s848 + $0x81] sm:$0xff] %v827
        %861 = vst [vmem:[%s848 + $0x91] sm:$0xff] %v828
        %862 = vst [vmem:[%s848 + $0x99] sm:$0xff] %v829
        %863 = vst [vmem:[%s848 + $0xa9] sm:$0xff] %v830
        %864 = vst [vmem:[%s848 + $0xb1] sm:$0xff] %v831
        %865 = vst [vmem:[%s848 + $0xc1] sm:$0xff] %v832
        %866 = vst [vmem:[%s848 + $0xc9] sm:$0xff] %v833
        %867 = vst [vmem:[%s848 + $0xd9] sm:$0xff] %v834
        %868 = vst [vmem:[%s848 + $0xe1] sm:$0xff] %v835
        %869 = vst [vmem:[%s848 + $0xf1] sm:$0xff] %v836
        %870 = vst [vmem:[%s848 + $0xf9] sm:$0xff] %v837
        %871 = vst [vmem:[%s848 + $0x109] sm:$0xff] %v838
        %872 = vst [vmem:[%s848 + $0x111] sm:$0xff] %v839
        %873 = vst [vmem:[%s848 + $0x121] sm:$0xff] %v840
        %874 = vst [vmem:[%s848 + $0x129] sm:$0xff] %v841
        %875 = vst [vmem:[%s848 + $0x139] sm:$0xff] %v842
        %876 = vst [vmem:[%s848 + $0x141] sm:$0xff] %v843
        %877 = vst [vmem:[%s848 + $0x151] sm:$0xff] %v844
        %878 = vst [vmem:[%s848 + $0x159] sm:$0xff] %v845
        %879 = vst [vmem:[%s848 + $0x169] sm:$0xff] %v846
        %880 = vst [vmem:[%s848 + $0x171] sm:$0xff] %v847
        %v881 = vld [vmem:[#allocation2] sm:$0xff]
        %v882 = vld [vmem:[#allocation2 + $0x8] sm:$0xff]
        %v883 = vld [vmem:[#allocation2 + $0x18] sm:$0xff]
        %v884 = vld [vmem:[#allocation2 + $0x20] sm:$0xff]
        %v885 = vld [vmem:[#allocation2 + $0x30] sm:$0xff]
        %v886 = vld [vmem:[#allocation2 + $0x38] sm:$0xff]
        %v887 = vld [vmem:[#allocation2 + $0x48] sm:$0xff]
        %v888 = vld [vmem:[#allocation2 + $0x50] sm:$0xff]
        %v889 = vld [vmem:[#allocation2 + $0x60] sm:$0xff]
        %v890 = vld [vmem:[#allocation2 + $0x68] sm:$0xff]
        %v891 = vld [vmem:[#allocation2 + $0x78] sm:$0xff]
        %v892 = vld [vmem:[#allocation2 + $0x80] sm:$0xff]
        %v893 = vld [vmem:[#allocation2 + $0x90] sm:$0xff]
        %v894 = vld [vmem:[#allocation2 + $0x98] sm:$0xff]
        %v895 = vld [vmem:[#allocation2 + $0xa8] sm:$0xff]
        %v896 = vld [vmem:[#allocation2 + $0xb0] sm:$0xff]
        %v897 = vld [vmem:[#allocation2 + $0xc0] sm:$0xff]
        %v898 = vld [vmem:[#allocation2 + $0xc8] sm:$0xff]
        %v899 = vld [vmem:[#allocation2 + $0xd8] sm:$0xff]
        %v900 = vld [vmem:[#allocation2 + $0xe0] sm:$0xff]
        %v901 = vld [vmem:[#allocation2 + $0xf0] sm:$0xff]
        %v902 = vld [vmem:[#allocation2 + $0xf8] sm:$0xff]
        %v903 = vld [vmem:[#allocation2 + $0x108] sm:$0xff]
        %v904 = vld [vmem:[#allocation2 + $0x110] sm:$0xff]
        %v905 = vld [vmem:[#allocation2 + $0x120] sm:$0xff]
        %v906 = vld [vmem:[#allocation2 + $0x128] sm:$0xff]
        %v907 = vld [vmem:[#allocation2 + $0x138] sm:$0xff]
        %v908 = vld [vmem:[#allocation2 + $0x140] sm:$0xff]
        %v909 = vld [vmem:[#allocation2 + $0x150] sm:$0xff]
        %v910 = vld [vmem:[#allocation2 + $0x158] sm:$0xff]
        %v911 = vld [vmem:[#allocation2 + $0x168] sm:$0xff]
        %v912 = vld [vmem:[#allocation2 + $0x170] sm:$0xff]
        %v913 = vld [vmem:[#allocation2 + $0x1] sm:$0xff]
        %v914 = vld [vmem:[#allocation2 + $0x9] sm:$0xff]
        %v915 = vld [vmem:[#allocation2 + $0x19] sm:$0xff]
        %v916 = vld [vmem:[#allocation2 + $0x21] sm:$0xff]
        %v917 = vld [vmem:[#allocation2 + $0x31] sm:$0xff]
        %v918 = vld [vmem:[#allocation2 + $0x39] sm:$0xff]
        %v919 = vld [vmem:[#allocation2 + $0x49] sm:$0xff]
        %v920 = vld [vmem:[#allocation2 + $0x51] sm:$0xff]
        %v921 = vld [vmem:[#allocation2 + $0x61] sm:$0xff]
        %v922 = vld [vmem:[#allocation2 + $0x69] sm:$0xff]
        %v923 = vld [vmem:[#allocation2 + $0x79] sm:$0xff]
        %v924 = vld [vmem:[#allocation2 + $0x81] sm:$0xff]
        %v925 = vld [vmem:[#allocation2 + $0x91] sm:$0xff]
        %v926 = vld [vmem:[#allocation2 + $0x99] sm:$0xff]
        %v927 = vld [vmem:[#allocation2 + $0xa9] sm:$0xff]
        %v928 = vld [vmem:[#allocation2 + $0xb1] sm:$0xff]
        %v929 = vld [vmem:[#allocation2 + $0xc1] sm:$0xff]
        %v930 = vld [vmem:[#allocation2 + $0xc9] sm:$0xff]
        %v931 = vld [vmem:[#allocation2 + $0xd9] sm:$0xff]
        %v932 = vld [vmem:[#allocation2 + $0xe1] sm:$0xff]
        %v933 = vld [vmem:[#allocation2 + $0xf1] sm:$0xff]
        %v934 = vld [vmem:[#allocation2 + $0xf9] sm:$0xff]
        %v935 = vld [vmem:[#allocation2 + $0x109] sm:$0xff]
        %v936 = vld [vmem:[#allocation2 + $0x111] sm:$0xff]
        %v937 = vld [vmem:[#allocation2 + $0x121] sm:$0xff]
        %v938 = vld [vmem:[#allocation2 + $0x129] sm:$0xff]
        %v939 = vld [vmem:[#allocation2 + $0x139] sm:$0xff]
        %v940 = vld [vmem:[#allocation2 + $0x141] sm:$0xff]
        %v941 = vld [vmem:[#allocation2 + $0x151] sm:$0xff]
        %v942 = vld [vmem:[#allocation2 + $0x159] sm:$0xff]
        %v943 = vld [vmem:[#allocation2 + $0x169] sm:$0xff]
        %v944 = vld [vmem:[#allocation2 + $0x171] sm:$0xff]
        %v945 = vld [vmem:[#allocation2 + $0x2] sm:$0xff]
        %v946 = vld [vmem:[#allocation2 + $0xa] sm:$0xff]
        %v947 = vld [vmem:[#allocation2 + $0x1a] sm:$0xff]
        %v948 = vld [vmem:[#allocation2 + $0x22] sm:$0xff]
        %v949 = vld [vmem:[#allocation2 + $0x32] sm:$0xff]
        %v950 = vld [vmem:[#allocation2 + $0x3a] sm:$0xff]
        %v951 = vld [vmem:[#allocation2 + $0x4a] sm:$0xff]
        %v952 = vld [vmem:[#allocation2 + $0x52] sm:$0xff]
        %v953 = vld [vmem:[#allocation2 + $0x62] sm:$0xff]
        %v954 = vld [vmem:[#allocation2 + $0x6a] sm:$0xff]
        %v955 = vld [vmem:[#allocation2 + $0x7a] sm:$0xff]
        %v956 = vld [vmem:[#allocation2 + $0x82] sm:$0xff]
        %v957 = vld [vmem:[#allocation2 + $0x92] sm:$0xff]
        %v958 = vld [vmem:[#allocation2 + $0x9a] sm:$0xff]
        %v959 = vld [vmem:[#allocation2 + $0xaa] sm:$0xff]
        %v960 = vld [vmem:[#allocation2 + $0xb2] sm:$0xff]
        %v961 = vld [vmem:[#allocation2 + $0xc2] sm:$0xff]
        %v962 = vld [vmem:[#allocation2 + $0xca] sm:$0xff]
        %v963 = vld [vmem:[#allocation2 + $0xda] sm:$0xff]
        %v964 = vld [vmem:[#allocation2 + $0xe2] sm:$0xff]
        %v965 = vld [vmem:[#allocation2 + $0xf2] sm:$0xff]
        %v966 = vld [vmem:[#allocation2 + $0xfa] sm:$0xff]
        %v967 = vld [vmem:[#allocation2 + $0x10a] sm:$0xff]
        %v968 = vld [vmem:[#allocation2 + $0x112] sm:$0xff]
        %v969 = vld [vmem:[#allocation2 + $0x122] sm:$0xff]
        %v970 = vld [vmem:[#allocation2 + $0x12a] sm:$0xff]
        %v971 = vld [vmem:[#allocation2 + $0x13a] sm:$0xff]
        %v972 = vld [vmem:[#allocation2 + $0x142] sm:$0xff]
        %v973 = vld [vmem:[#allocation2 + $0x152] sm:$0xff]
        %v974 = vld [vmem:[#allocation2 + $0x15a] sm:$0xff]
        %v975 = vld [vmem:[#allocation2 + $0x16a] sm:$0xff]
        %v976 = vld [vmem:[#allocation2 + $0x172] sm:$0xff]
        %v977 = vld [vmem:[%s848] sm:$0xff]
        %v978 = vld [vmem:[%s848 + $0x8] sm:$0xff]
        %v979 = vld [vmem:[%s848 + $0x18] sm:$0xff]
        %v980 = vld [vmem:[%s848 + $0x20] sm:$0xff]
        %v981 = vld [vmem:[%s848 + $0x30] sm:$0xff]
        %v982 = vld [vmem:[%s848 + $0x38] sm:$0xff]
        %v983 = vld [vmem:[%s848 + $0x48] sm:$0xff]
        %v984 = vld [vmem:[%s848 + $0x50] sm:$0xff]
        %v985 = vld [vmem:[%s848 + $0x60] sm:$0xff]
        %v986 = vld [vmem:[%s848 + $0x68] sm:$0xff]
        %v987 = vld [vmem:[%s848 + $0x78] sm:$0xff]
        %v988 = vld [vmem:[%s848 + $0x80] sm:$0xff]
        %v989 = vld [vmem:[%s848 + $0x90] sm:$0xff]
        %v990 = vld [vmem:[%s848 + $0x98] sm:$0xff]
        %v991 = vld [vmem:[%s848 + $0xa8] sm:$0xff]
        %v992 = vld [vmem:[%s848 + $0xb0] sm:$0xff]
        %v993 = vld [vmem:[%s848 + $0xc0] sm:$0xff]
        %v994 = vld [vmem:[%s848 + $0xc8] sm:$0xff]
        %v995 = vld [vmem:[%s848 + $0xd8] sm:$0xff]
        %v996 = vld [vmem:[%s848 + $0xe0] sm:$0xff]
        %v997 = vld [vmem:[%s848 + $0xf0] sm:$0xff]
        %v998 = vld [vmem:[%s848 + $0xf8] sm:$0xff]
        %v999 = vld [vmem:[%s848 + $0x108] sm:$0xff]
        %v1000 = vld [vmem:[%s848 + $0x110] sm:$0xff]
        %v1001 = vld [vmem:[%s848 + $0x120] sm:$0xff]
        %v1002 = vld [vmem:[%s848 + $0x128] sm:$0xff]
        %v1003 = vld [vmem:[%s848 + $0x138] sm:$0xff]
        %v1004 = vld [vmem:[%s848 + $0x140] sm:$0xff]
        %v1005 = vld [vmem:[%s848 + $0x150] sm:$0xff]
        %v1006 = vld [vmem:[%s848 + $0x158] sm:$0xff]
        %v1007 = vld [vmem:[%s848 + $0x168] sm:$0xff]
        %v1008 = vld [vmem:[%s848 + $0x170] sm:$0xff]
        %v1009 = vld [vmem:[%s848 + $0x1] sm:$0xff]
        %v1010 = vld [vmem:[%s848 + $0x9] sm:$0xff]
        %v1011 = vld [vmem:[%s848 + $0x19] sm:$0xff]
        %v1012 = vld [vmem:[%s848 + $0x21] sm:$0xff]
        %v1013 = vld [vmem:[%s848 + $0x31] sm:$0xff]
        %v1014 = vld [vmem:[%s848 + $0x39] sm:$0xff]
        %v1015 = vld [vmem:[%s848 + $0x49] sm:$0xff]
        %v1016 = vld [vmem:[%s848 + $0x51] sm:$0xff]
        %v1017 = vld [vmem:[%s848 + $0x61] sm:$0xff]
        %v1018 = vld [vmem:[%s848 + $0x69] sm:$0xff]
        %v1019 = vld [vmem:[%s848 + $0x79] sm:$0xff]
        %v1020 = vld [vmem:[%s848 + $0x81] sm:$0xff]
        %v1021 = vld [vmem:[%s848 + $0x91] sm:$0xff]
        %v1022 = vld [vmem:[%s848 + $0x99] sm:$0xff]
        %v1023 = vld [vmem:[%s848 + $0xa9] sm:$0xff]
        %v1024 = vld [vmem:[%s848 + $0xb1] sm:$0xff]
        %v1025 = vld [vmem:[%s848 + $0xc1] sm:$0xff]
        %v1026 = vld [vmem:[%s848 + $0xc9] sm:$0xff]
        %v1027 = vld [vmem:[%s848 + $0xd9] sm:$0xff]
        %v1028 = vld [vmem:[%s848 + $0xe1] sm:$0xff]
        %v1029 = vld [vmem:[%s848 + $0xf1] sm:$0xff]
        %v1030 = vld [vmem:[%s848 + $0xf9] sm:$0xff]
        %v1031 = vld [vmem:[%s848 + $0x109] sm:$0xff]
        %v1032 = vld [vmem:[%s848 + $0x111] sm:$0xff]
        %v1033 = vld [vmem:[%s848 + $0x121] sm:$0xff]
        %v1034 = vld [vmem:[%s848 + $0x129] sm:$0xff]
        %v1035 = vld [vmem:[%s848 + $0x139] sm:$0xff]
        %v1036 = vld [vmem:[%s848 + $0x141] sm:$0xff]
        %v1037 = vld [vmem:[%s848 + $0x151] sm:$0xff]
        %v1038 = vld [vmem:[%s848 + $0x159] sm:$0xff]
        %v1039 = vld [vmem:[%s848 + $0x169] sm:$0xff]
        %v1040 = vld [vmem:[%s848 + $0x171] sm:$0xff]
        %v1041 = vld [vmem:[%s848 + $0x2] sm:$0xff]
        %v1042 = vld [vmem:[%s848 + $0xa] sm:$0xff]
        %v1043 = vld [vmem:[%s848 + $0x1a] sm:$0xff]
        %v1044 = vld [vmem:[%s848 + $0x22] sm:$0xff]
        %v1045 = vld [vmem:[%s848 + $0x32] sm:$0xff]
        %v1046 = vld [vmem:[%s848 + $0x3a] sm:$0xff]
        %v1047 = vld [vmem:[%s848 + $0x4a] sm:$0xff]
        %v1048 = vld [vmem:[%s848 + $0x52] sm:$0xff]
        %v1049 = vld [vmem:[%s848 + $0x62] sm:$0xff]
        %v1050 = vld [vmem:[%s848 + $0x6a] sm:$0xff]
        %v1051 = vld [vmem:[%s848 + $0x7a] sm:$0xff]
        %v1052 = vld [vmem:[%s848 + $0x82] sm:$0xff]
        %v1053 = vld [vmem:[%s848 + $0x92] sm:$0xff]
        %v1054 = vld [vmem:[%s848 + $0x9a] sm:$0xff]
        %v1055 = vld [vmem:[%s848 + $0xaa] sm:$0xff]
        %v1056 = vld [vmem:[%s848 + $0xb2] sm:$0xff]
        %v1057 = vld [vmem:[%s848 + $0xc2] sm:$0xff]
        %v1058 = vld [vmem:[%s848 + $0xca] sm:$0xff]
        %v1059 = vld [vmem:[%s848 + $0xda] sm:$0xff]
        %v1060 = vld [vmem:[%s848 + $0xe2] sm:$0xff]
        %v1061 = vld [vmem:[%s848 + $0xf2] sm:$0xff]
        %v1062 = vld [vmem:[%s848 + $0xfa] sm:$0xff]
        %v1063 = vld [vmem:[%s848 + $0x10a] sm:$0xff]
        %v1064 = vld [vmem:[%s848 + $0x112] sm:$0xff]
        %v1065 = vld [vmem:[%s848 + $0x122] sm:$0xff]
        %v1066 = vld [vmem:[%s848 + $0x12a] sm:$0xff]
        %v1067 = vld [vmem:[%s848 + $0x13a] sm:$0xff]
        %v1068 = vld [vmem:[%s848 + $0x142] sm:$0xff]
        %v1069 = vld [vmem:[%s848 + $0x152] sm:$0xff]
        %v1070 = vld [vmem:[%s848 + $0x15a] sm:$0xff]
        %v1071 = vld [vmem:[%s848 + $0x16a] sm:$0xff]
        %v1072 = vld [vmem:[%s848 + $0x172] sm:$0xff]
        %s1073 = scalar_lea.vmem [#allocation2], 48
        %v1074 = vld [vmem:[%s1073] sm:$0xff]
        %v1075 = vld [vmem:[%s1073 + $0x8] sm:$0xff]
        %v1076 = vld [vmem:[%s1073 + $0x18] sm:$0xff]
        %v1077 = vld [vmem:[%s1073 + $0x20] sm:$0xff]
        %v1078 = vld [vmem:[%s1073 + $0x30] sm:$0xff]
        %v1079 = vld [vmem:[%s1073 + $0x38] sm:$0xff]
        %v1080 = vld [vmem:[%s1073 + $0x48] sm:$0xff]
        %v1081 = vld [vmem:[%s1073 + $0x50] sm:$0xff]
        %v1082 = vld [vmem:[%s1073 + $0x60] sm:$0xff]
        %v1083 = vld [vmem:[%s1073 + $0x68] sm:$0xff]
        %v1084 = vld [vmem:[%s1073 + $0x78] sm:$0xff]
        %v1085 = vld [vmem:[%s1073 + $0x80] sm:$0xff]
        %v1086 = vld [vmem:[%s1073 + $0x90] sm:$0xff]
        %v1087 = vld [vmem:[%s1073 + $0x98] sm:$0xff]
        %v1088 = vld [vmem:[%s1073 + $0xa8] sm:$0xff]
        %v1089 = vld [vmem:[%s1073 + $0xb0] sm:$0xff]
        %v1090 = vld [vmem:[%s1073 + $0xc0] sm:$0xff]
        %v1091 = vld [vmem:[%s1073 + $0xc8] sm:$0xff]
        %v1092 = vld [vmem:[%s1073 + $0xd8] sm:$0xff]
        %v1093 = vld [vmem:[%s1073 + $0xe0] sm:$0xff]
        %v1094 = vld [vmem:[%s1073 + $0xf0] sm:$0xff]
        %v1095 = vld [vmem:[%s1073 + $0xf8] sm:$0xff]
        %v1096 = vld [vmem:[%s1073 + $0x108] sm:$0xff]
        %v1097 = vld [vmem:[%s1073 + $0x110] sm:$0xff]
        %v1098 = vld [vmem:[%s1073 + $0x120] sm:$0xff]
        %v1099 = vld [vmem:[%s1073 + $0x128] sm:$0xff]
        %v1100 = vld [vmem:[%s1073 + $0x138] sm:$0xff]
        %v1101 = vld [vmem:[%s1073 + $0x140] sm:$0xff]
        %v1102 = vld [vmem:[%s1073 + $0x150] sm:$0xff]
        %v1103 = vld [vmem:[%s1073 + $0x158] sm:$0xff]
        %v1104 = vld [vmem:[%s1073 + $0x168] sm:$0xff]
        %v1105 = vld [vmem:[%s1073 + $0x170] sm:$0xff]
        %v1106 = vld [vmem:[%s1073 + $0x1] sm:$0xff]
        %v1107 = vld [vmem:[%s1073 + $0x9] sm:$0xff]
        %v1108 = vld [vmem:[%s1073 + $0x19] sm:$0xff]
        %v1109 = vld [vmem:[%s1073 + $0x21] sm:$0xff]
        %v1110 = vld [vmem:[%s1073 + $0x31] sm:$0xff]
        %v1111 = vld [vmem:[%s1073 + $0x39] sm:$0xff]
        %v1112 = vld [vmem:[%s1073 + $0x49] sm:$0xff]
        %v1113 = vld [vmem:[%s1073 + $0x51] sm:$0xff]
        %v1114 = vld [vmem:[%s1073 + $0x61] sm:$0xff]
        %v1115 = vld [vmem:[%s1073 + $0x69] sm:$0xff]
        %v1116 = vld [vmem:[%s1073 + $0x79] sm:$0xff]
        %v1117 = vld [vmem:[%s1073 + $0x81] sm:$0xff]
        %v1118 = vld [vmem:[%s1073 + $0x91] sm:$0xff]
        %v1119 = vld [vmem:[%s1073 + $0x99] sm:$0xff]
        %v1120 = vld [vmem:[%s1073 + $0xa9] sm:$0xff]
        %v1121 = vld [vmem:[%s1073 + $0xb1] sm:$0xff]
        %v1122 = vld [vmem:[%s1073 + $0xc1] sm:$0xff]
        %v1123 = vld [vmem:[%s1073 + $0xc9] sm:$0xff]
        %v1124 = vld [vmem:[%s1073 + $0xd9] sm:$0xff]
        %v1125 = vld [vmem:[%s1073 + $0xe1] sm:$0xff]
        %v1126 = vld [vmem:[%s1073 + $0xf1] sm:$0xff]
        %v1127 = vld [vmem:[%s1073 + $0xf9] sm:$0xff]
        %v1128 = vld [vmem:[%s1073 + $0x109] sm:$0xff]
        %v1129 = vld [vmem:[%s1073 + $0x111] sm:$0xff]
        %v1130 = vld [vmem:[%s1073 + $0x121] sm:$0xff]
        %v1131 = vld [vmem:[%s1073 + $0x129] sm:$0xff]
        %v1132 = vld [vmem:[%s1073 + $0x139] sm:$0xff]
        %v1133 = vld [vmem:[%s1073 + $0x141] sm:$0xff]
        %v1134 = vld [vmem:[%s1073 + $0x151] sm:$0xff]
        %v1135 = vld [vmem:[%s1073 + $0x159] sm:$0xff]
        %v1136 = vld [vmem:[%s1073 + $0x169] sm:$0xff]
        %v1137 = vld [vmem:[%s1073 + $0x171] sm:$0xff]
        %v1138 = vld [vmem:[%s1073 + $0x2] sm:$0xff]
        %v1139 = vld [vmem:[%s1073 + $0xa] sm:$0xff]
        %v1140 = vld [vmem:[%s1073 + $0x1a] sm:$0xff]
        %v1141 = vld [vmem:[%s1073 + $0x22] sm:$0xff]
        %v1142 = vld [vmem:[%s1073 + $0x32] sm:$0xff]
        %v1143 = vld [vmem:[%s1073 + $0x3a] sm:$0xff]
        %v1144 = vld [vmem:[%s1073 + $0x4a] sm:$0xff]
        %v1145 = vld [vmem:[%s1073 + $0x52] sm:$0xff]
        %v1146 = vld [vmem:[%s1073 + $0x62] sm:$0xff]
        %v1147 = vld [vmem:[%s1073 + $0x6a] sm:$0xff]
        %v1148 = vld [vmem:[%s1073 + $0x7a] sm:$0xff]
        %v1149 = vld [vmem:[%s1073 + $0x82] sm:$0xff]
        %v1150 = vld [vmem:[%s1073 + $0x92] sm:$0xff]
        %v1151 = vld [vmem:[%s1073 + $0x9a] sm:$0xff]
        %v1152 = vld [vmem:[%s1073 + $0xaa] sm:$0xff]
        %v1153 = vld [vmem:[%s1073 + $0xb2] sm:$0xff]
        %v1154 = vld [vmem:[%s1073 + $0xc2] sm:$0xff]
        %v1155 = vld [vmem:[%s1073 + $0xca] sm:$0xff]
        %v1156 = vld [vmem:[%s1073 + $0xda] sm:$0xff]
        %v1157 = vld [vmem:[%s1073 + $0xe2] sm:$0xff]
        %v1158 = vld [vmem:[%s1073 + $0xf2] sm:$0xff]
        %v1159 = vld [vmem:[%s1073 + $0xfa] sm:$0xff]
        %v1160 = vld [vmem:[%s1073 + $0x10a] sm:$0xff]
        %v1161 = vld [vmem:[%s1073 + $0x112] sm:$0xff]
        %v1162 = vld [vmem:[%s1073 + $0x122] sm:$0xff]
        %v1163 = vld [vmem:[%s1073 + $0x12a] sm:$0xff]
        %v1164 = vld [vmem:[%s1073 + $0x13a] sm:$0xff]
        %v1165 = vld [vmem:[%s1073 + $0x142] sm:$0xff]
        %v1166 = vld [vmem:[%s1073 + $0x152] sm:$0xff]
        %v1167 = vld [vmem:[%s1073 + $0x15a] sm:$0xff]
        %v1168 = vld [vmem:[%s1073 + $0x16a] sm:$0xff]
        %v1169 = vld [vmem:[%s1073 + $0x172] sm:$0xff]
        %v1170 = vld [vmem:[#allocation8] sm:$0xff]
        %v1171 = vld [vmem:[#allocation8 + $0x8] sm:$0xff]
        %v1172 = vld [vmem:[#allocation8 + $0x10] sm:$0xff]
        %v1173 = vld [vmem:[#allocation8 + $0x18] sm:$0xff]
        %v1174 = vld [vmem:[#allocation8 + $0x20] sm:$0xff]
        %v1175 = vld [vmem:[#allocation8 + $0x28] sm:$0xff]
        %v1176 = vld [vmem:[#allocation8 + $0x30] sm:$0xff]
        %v1177 = vld [vmem:[#allocation8 + $0x38] sm:$0xff]
        %v1178 = vld [vmem:[#allocation8 + $0x40] sm:$0xff]
        %v1179 = vld [vmem:[#allocation8 + $0x48] sm:$0xff]
        %v1180 = vld [vmem:[#allocation8 + $0x50] sm:$0xff]
        %v1181 = vld [vmem:[#allocation8 + $0x58] sm:$0xff]
        %v1182 = vld [vmem:[#allocation8 + $0x60] sm:$0xff]
        %v1183 = vld [vmem:[#allocation8 + $0x68] sm:$0xff]
        %v1184 = vld [vmem:[#allocation8 + $0x70] sm:$0xff]
        %v1185 = vld [vmem:[#allocation8 + $0x78] sm:$0xff]
        %v1186 = vld [vmem:[#allocation8 + $0x80] sm:$0xff]
        %v1187 = vld [vmem:[#allocation8 + $0x88] sm:$0xff]
        %v1188 = vld [vmem:[#allocation8 + $0x90] sm:$0xff]
        %v1189 = vld [vmem:[#allocation8 + $0x98] sm:$0xff]
        %v1190 = vld [vmem:[#allocation8 + $0xa0] sm:$0xff]
        %v1191 = vld [vmem:[#allocation8 + $0xa8] sm:$0xff]
        %v1192 = vld [vmem:[#allocation8 + $0xb0] sm:$0xff]
        %v1193 = vld [vmem:[#allocation8 + $0xb8] sm:$0xff]
        %v1194 = vld [vmem:[#allocation8 + $0xc0] sm:$0xff]
        %v1195 = vld [vmem:[#allocation8 + $0xc8] sm:$0xff]
        %v1196 = vld [vmem:[#allocation8 + $0xd0] sm:$0xff]
        %v1197 = vld [vmem:[#allocation8 + $0xd8] sm:$0xff]
        %v1198 = vld [vmem:[#allocation8 + $0xe0] sm:$0xff]
        %v1199 = vld [vmem:[#allocation8 + $0xe8] sm:$0xff]
        %v1200 = vld [vmem:[#allocation8 + $0xf0] sm:$0xff]
        %v1201 = vld [vmem:[#allocation8 + $0xf8] sm:$0xff]
        %v1202 = vld [vmem:[#allocation8 + $0x100] sm:$0xff]
        %v1203 = vld [vmem:[#allocation8 + $0x108] sm:$0xff]
        %v1204 = vld [vmem:[#allocation8 + $0x110] sm:$0xff]
        %v1205 = vld [vmem:[#allocation8 + $0x118] sm:$0xff]
        %v1206 = vld [vmem:[#allocation8 + $0x120] sm:$0xff]
        %v1207 = vld [vmem:[#allocation8 + $0x128] sm:$0xff]
        %v1208 = vld [vmem:[#allocation8 + $0x130] sm:$0xff]
        %v1209 = vld [vmem:[#allocation8 + $0x138] sm:$0xff]
        %v1210 = vld [vmem:[#allocation8 + $0x140] sm:$0xff]
        %v1211 = vld [vmem:[#allocation8 + $0x148] sm:$0xff]
        %v1212 = vld [vmem:[#allocation8 + $0x150] sm:$0xff]
        %v1213 = vld [vmem:[#allocation8 + $0x158] sm:$0xff]
        %v1214 = vld [vmem:[#allocation8 + $0x160] sm:$0xff]
        %v1215 = vld [vmem:[#allocation8 + $0x168] sm:$0xff]
        %v1216 = vld [vmem:[#allocation8 + $0x170] sm:$0xff]
        %v1217 = vld [vmem:[#allocation8 + $0x178] sm:$0xff]
        %v1218 = vld [vmem:[#allocation8 + $0x180] sm:$0xff]
        %v1219 = vld [vmem:[#allocation8 + $0x188] sm:$0xff]
        %v1220 = vld [vmem:[#allocation8 + $0x190] sm:$0xff]
        %v1221 = vld [vmem:[#allocation8 + $0x198] sm:$0xff]
        %v1222 = vld [vmem:[#allocation8 + $0x1a0] sm:$0xff]
        %v1223 = vld [vmem:[#allocation8 + $0x1a8] sm:$0xff]
        %v1224 = vld [vmem:[#allocation8 + $0x1b0] sm:$0xff]
        %v1225 = vld [vmem:[#allocation8 + $0x1b8] sm:$0xff]
        %v1226 = vld [vmem:[#allocation8 + $0x1c0] sm:$0xff]
        %v1227 = vld [vmem:[#allocation8 + $0x1c8] sm:$0xff]
        %v1228 = vld [vmem:[#allocation8 + $0x1d0] sm:$0xff]
        %v1229 = vld [vmem:[#allocation8 + $0x1d8] sm:$0xff]
        %v1230 = vld [vmem:[#allocation8 + $0x1e0] sm:$0xff]
        %v1231 = vld [vmem:[#allocation8 + $0x1e8] sm:$0xff]
        %v1232 = vld [vmem:[#allocation8 + $0x1f0] sm:$0xff]
        %v1233 = vld [vmem:[#allocation8 + $0x1f8] sm:$0xff]
        %v1234 = vld [vmem:[#allocation8 + $0x200] sm:$0xff]
        %v1235 = vld [vmem:[#allocation8 + $0x208] sm:$0xff]
        %v1236 = vld [vmem:[#allocation8 + $0x210] sm:$0xff]
        %v1237 = vld [vmem:[#allocation8 + $0x218] sm:$0xff]
        %v1238 = vld [vmem:[#allocation8 + $0x220] sm:$0xff]
        %v1239 = vld [vmem:[#allocation8 + $0x228] sm:$0xff]
        %v1240 = vld [vmem:[#allocation8 + $0x230] sm:$0xff]
        %v1241 = vld [vmem:[#allocation8 + $0x238] sm:$0xff]
        %v1242 = vld [vmem:[#allocation8 + $0x240] sm:$0xff]
        %v1243 = vld [vmem:[#allocation8 + $0x248] sm:$0xff]
        %v1244 = vld [vmem:[#allocation8 + $0x250] sm:$0xff]
        %v1245 = vld [vmem:[#allocation8 + $0x258] sm:$0xff]
        %v1246 = vld [vmem:[#allocation8 + $0x260] sm:$0xff]
        %v1247 = vld [vmem:[#allocation8 + $0x268] sm:$0xff]
        %v1248 = vld [vmem:[#allocation8 + $0x270] sm:$0xff]
        %v1249 = vld [vmem:[#allocation8 + $0x278] sm:$0xff]
        %v1250 = vld [vmem:[#allocation8 + $0x280] sm:$0xff]
        %v1251 = vld [vmem:[#allocation8 + $0x288] sm:$0xff]
        %v1252 = vld [vmem:[#allocation8 + $0x290] sm:$0xff]
        %v1253 = vld [vmem:[#allocation8 + $0x298] sm:$0xff]
        %v1254 = vld [vmem:[#allocation8 + $0x2a0] sm:$0xff]
        %v1255 = vld [vmem:[#allocation8 + $0x2a8] sm:$0xff]
        %v1256 = vld [vmem:[#allocation8 + $0x2b0] sm:$0xff]
        %v1257 = vld [vmem:[#allocation8 + $0x2b8] sm:$0xff]
        %v1258 = vld [vmem:[#allocation8 + $0x2c0] sm:$0xff]
        %v1259 = vld [vmem:[#allocation8 + $0x2c8] sm:$0xff]
        %v1260 = vld [vmem:[#allocation8 + $0x2d0] sm:$0xff]
        %v1261 = vld [vmem:[#allocation8 + $0x2d8] sm:$0xff]
        %v1262 = vld [vmem:[#allocation8 + $0x2e0] sm:$0xff]
        %v1263 = vld [vmem:[#allocation8 + $0x2e8] sm:$0xff]
        %v1264 = vld [vmem:[#allocation8 + $0x2f0] sm:$0xff]
        %v1265 = vld [vmem:[#allocation8 + $0x2f8] sm:$0xff]
        %v1266 = vld [vmem:[#allocation8 + $0x300] sm:$0xff]
        %v1267 = vld [vmem:[#allocation8 + $0x308] sm:$0xff]
        %v1268 = vld [vmem:[#allocation8 + $0x310] sm:$0xff]
        %v1269 = vld [vmem:[#allocation8 + $0x318] sm:$0xff]
        %v1270 = vld [vmem:[#allocation8 + $0x320] sm:$0xff]
        %v1271 = vld [vmem:[#allocation8 + $0x328] sm:$0xff]
        %v1272 = vld [vmem:[#allocation8 + $0x330] sm:$0xff]
        %v1273 = vld [vmem:[#allocation8 + $0x338] sm:$0xff]
        %v1274 = vld [vmem:[#allocation8 + $0x340] sm:$0xff]
        %v1275 = vld [vmem:[#allocation8 + $0x348] sm:$0xff]
        %v1276 = vld [vmem:[#allocation8 + $0x350] sm:$0xff]
        %v1277 = vld [vmem:[#allocation8 + $0x358] sm:$0xff]
        %v1278 = vld [vmem:[#allocation8 + $0x360] sm:$0xff]
        %v1279 = vld [vmem:[#allocation8 + $0x368] sm:$0xff]
        %v1280 = vld [vmem:[#allocation8 + $0x370] sm:$0xff]
        %v1281 = vld [vmem:[#allocation8 + $0x378] sm:$0xff]
        %v1282 = vld [vmem:[#allocation8 + $0x380] sm:$0xff]
        %v1283 = vld [vmem:[#allocation8 + $0x388] sm:$0xff]
        %v1284 = vld [vmem:[#allocation8 + $0x390] sm:$0xff]
        %v1285 = vld [vmem:[#allocation8 + $0x398] sm:$0xff]
        %v1286 = vld [vmem:[#allocation8 + $0x3a0] sm:$0xff]
        %v1287 = vld [vmem:[#allocation8 + $0x3a8] sm:$0xff]
        %v1288 = vld [vmem:[#allocation8 + $0x3b0] sm:$0xff]
        %v1289 = vld [vmem:[#allocation8 + $0x3b8] sm:$0xff]
        %v1290 = vld [vmem:[#allocation8 + $0x3c0] sm:$0xff]
        %v1291 = vld [vmem:[#allocation8 + $0x3c8] sm:$0xff]
        %v1292 = vld [vmem:[#allocation8 + $0x3d0] sm:$0xff]
        %v1293 = vld [vmem:[#allocation8 + $0x3d8] sm:$0xff]
        %v1294 = vld [vmem:[#allocation8 + $0x3e0] sm:$0xff]
        %v1295 = vld [vmem:[#allocation8 + $0x3e8] sm:$0xff]
        %v1296 = vld [vmem:[#allocation8 + $0x3f0] sm:$0xff]
        %v1297 = vld [vmem:[#allocation8 + $0x3f8] sm:$0xff]
        %v1298 = vld [vmem:[#allocation8 + $0x400] sm:$0xff]
        %v1299 = vld [vmem:[#allocation8 + $0x408] sm:$0xff]
        %v1300 = vld [vmem:[#allocation8 + $0x410] sm:$0xff]
        %v1301 = vld [vmem:[#allocation8 + $0x418] sm:$0xff]
        %v1302 = vld [vmem:[#allocation8 + $0x420] sm:$0xff]
        %v1303 = vld [vmem:[#allocation8 + $0x428] sm:$0xff]
        %v1304 = vld [vmem:[#allocation8 + $0x430] sm:$0xff]
        %v1305 = vld [vmem:[#allocation8 + $0x438] sm:$0xff]
        %v1306 = vld [vmem:[#allocation8 + $0x440] sm:$0xff]
        %v1307 = vld [vmem:[#allocation8 + $0x448] sm:$0xff]
        %v1308 = vld [vmem:[#allocation8 + $0x450] sm:$0xff]
        %v1309 = vld [vmem:[#allocation8 + $0x458] sm:$0xff]
        %v1310 = vld [vmem:[#allocation8 + $0x460] sm:$0xff]
        %v1311 = vld [vmem:[#allocation8 + $0x468] sm:$0xff]
        %v1312 = vld [vmem:[#allocation8 + $0x470] sm:$0xff]
        %v1313 = vld [vmem:[#allocation8 + $0x478] sm:$0xff]
        %1314 = vmatprep.subr.mxu0 0.0
        %1315 = vmatpush1.msra.mxu0 %v1170
        %1316 = vmatprep.subr.mxu0 0.0
        %1317 = vmatpush1.msra.mxu0 %v1171
        %1318 = vmatprep.subr.mxu0 0.0
        %1319 = vmatpush1.msra.mxu0 %v1172
        %1320 = vmatprep.subr.mxu0 0.0
        %1321 = vmatpush1.msra.mxu0 %v1173
        %1322 = vmatprep.subr.mxu0 0.0
        %1323 = vmatpush1.msra.mxu0 %v1174
        %1324 = vmatprep.subr.mxu0 0.0
        %1325 = vmatpush1.msra.mxu0 %v1175
        %1326 = vmatprep.subr.mxu0 0.0
        %1327 = vmatpush1.msra.mxu0 %v1176
        %1328 = vmatprep.subr.mxu0 0.0
        %1329 = vmatpush1.msra.mxu0 %v1177
        %1330 = vmatprep.subr.mxu0 0.0
        %1331 = vmatpush1.msra.mxu0 %v1178
        %1332 = vmatprep.subr.mxu0 0.0
        %1333 = vmatpush1.msra.mxu0 %v1179
        %1334 = vmatprep.subr.mxu0 0.0
        %1335 = vmatpush1.msra.mxu0 %v1180
        %1336 = vmatprep.subr.mxu0 0.0
        %1337 = vmatpush1.msra.mxu0 %v1181
        %1338 = vmatprep.subr.mxu0 0.0
        %1339 = vmatpush1.msra.mxu0 %v1182
        %1340 = vmatprep.subr.mxu0 0.0
        %1341 = vmatpush1.msra.mxu0 %v1183
        %1342 = vmatprep.subr.mxu0 0.0
        %1343 = vmatpush1.msra.mxu0 %v1184
        %1344 = vmatprep.subr.mxu0 0.0
        %1345 = vmatpush1.msra.mxu0 %v1185
        %1346 = vmatprep.subr.mxu0 0.0
        %1347 = vmatpush1.msra.mxu0 %v1186
        %1348 = vmatprep.subr.mxu0 0.0
        %1349 = vmatpush1.msra.mxu0 %v1187
        %1350 = vmatprep.subr.mxu0 0.0
        %1351 = vmatpush1.msra.mxu0 %v1188
        %1352 = vmatprep.subr.mxu0 0.0
        %1353 = vmatpush1.msra.mxu0 %v1189
        %1354 = vmatprep.subr.mxu0 0.0
        %1355 = vmatpush1.msra.mxu0 %v1190
        %1356 = vmatprep.subr.mxu0 0.0
        %1357 = vmatpush1.msra.mxu0 %v1191
        %1358 = vmatprep.subr.mxu0 0.0
        %1359 = vmatpush1.msra.mxu0 %v1192
        %1360 = vmatprep.subr.mxu0 0.0
        %1361 = vmatpush1.msra.mxu0 %v1193
        %1362 = vmatprep.subr.mxu0 0.0
        %1363 = vmatpush1.msra.mxu0 %v1194
        %1364 = vmatprep.subr.mxu0 0.0
        %1365 = vmatpush1.msra.mxu0 %v1195
        %1366 = vmatprep.subr.mxu0 0.0
        %1367 = vmatpush1.msra.mxu0 %v1196
        %1368 = vmatprep.subr.mxu0 0.0
        %1369 = vmatpush1.msra.mxu0 %v1197
        %1370 = vmatprep.subr.mxu0 0.0
        %1371 = vmatpush1.msra.mxu0 %v1198
        %1372 = vmatprep.subr.mxu0 0.0
        %1373 = vmatpush1.msra.mxu0 %v1199
        %1374 = vmatprep.subr.mxu0 0.0
        %1375 = vmatpush1.msra.mxu0 %v1200
        %1376 = vmatprep.subr.mxu0 0.0
        %1377 = vmatpush1.msra.mxu0 %v1201
        %1378 = vmatprep.mubr.f32.mxu0 %v913
        %1379 = vmatmul.mubr.f32.gmra.mrb[0].mxu0 %v881
        %v1380 = vpop.f32.mrb[0].mxu0
        %v1381 = vadd.f32 0.0, %v1380
        %v1382 = vpop.f32.mrb[0].mxu0
        %1383 = vmatprep.mubr.f32.mxu0 %v914
        %1384 = vmatmul.mubr.f32.gmra.mrb[0].mxu0 %v882
        %v1385 = vpop.f32.mrb[0].mxu0
        %v1386 = vadd.f32 0.0, %v1385
        %v1387 = vpop.f32.mrb[0].mxu0
        %1388 = vmatprep.mubr.f32.mxu0 %v915
        %1389 = vmatmul.mubr.f32.gmra.mrb[0].mxu0 %v883
        %v1390 = vpop.f32.mrb[0].mxu0
        %v1391 = vadd.f32 0.0, %v1390
        %v1392 = vpop.f32.mrb[0].mxu0
        %1393 = vmatprep.mubr.f32.mxu0 %v916
        %1394 = vmatmul.mubr.f32.gmra.mrb[0].mxu0 %v884
        %v1395 = vpop.f32.mrb[0].mxu0
        %v1396 = vadd.f32 0.0, %v1395
        %v1397 = vpop.f32.mrb[0].mxu0
        %1398 = vmatprep.mubr.f32.mxu0 %v917
        %1399 = vmatmul.mubr.f32.gmra.mrb[0].mxu0 %v885
        %v1400 = vpop.f32.mrb[0].mxu0
        %v1401 = vadd.f32 0.0, %v1400
        %v1402 = vpop.f32.mrb[0].mxu0
        %1403 = vmatprep.mubr.f32.mxu0 %v918
        %1404 = vmatmul.mubr.f32.gmra.mrb[0].mxu0 %v886
        %v1405 = vpop.f32.mrb[0].mxu0
        %v1406 = vadd.f32 0.0, %v1405
        %v1407 = vpop.f32.mrb[0].mxu0
        %1408 = vmatprep.mubr.f32.mxu0 %v919
        %1409 = vmatmul.mubr.f32.gmra.mrb[0].mxu0 %v887
        %v1410 = vpop.f32.mrb[0].mxu0
        %v1411 = vadd.f32 0.0, %v1410
        %v1412 = vpop.f32.mrb[0].mxu0
        %1413 = vmatprep.mubr.f32.mxu0 %v920
        %1414 = vmatmul.mubr.f32.gmra.mrb[0].mxu0 %v888
        %v1415 = vpop.f32.mrb[0].mxu0
        %v1416 = vadd.f32 0.0, %v1415
        %v1417 = vpop.f32.mrb[0].mxu0
        %1418 = vmatprep.mubr.f32.mxu0 %v921
        %1419 = vmatmul.mubr.f32.gmra.mrb[0].mxu0 %v889
        %v1420 = vpop.f32.mrb[0].mxu0
        %v1421 = vadd.f32 0.0, %v1420
        %v1422 = vpop.f32.mrb[0].mxu0
        %1423 = vmatprep.mubr.f32.mxu0 %v922
        %1424 = vmatmul.mubr.f32.gmra.mrb[0].mxu0 %v890
        %v1425 = vpop.f32.mrb[0].mxu0
        %v1426 = vadd.f32 0.0, %v1425
        %v1427 = vpop.f32.mrb[0].mxu0
        %1428 = vmatprep.mubr.f32.mxu0 %v923
        %1429 = vmatmul.mubr.f32.gmra.mrb[0].mxu0 %v891
        %v1430 = vpop.f32.mrb[0].mxu0
        %v1431 = vadd.f32 0.0, %v1430
        %v1432 = vpop.f32.mrb[0].mxu0
        %1433 = vmatprep.mubr.f32.mxu0 %v924
        %1434 = vmatmul.mubr.f32.gmra.mrb[0].mxu0 %v892
        %v1435 = vpop.f32.mrb[0].mxu0
        %v1436 = vadd.f32 0.0, %v1435
        %v1437 = vpop.f32.mrb[0].mxu0
        %1438 = vmatprep.mubr.f32.mxu0 %v925
        %1439 = vmatmul.mubr.f32.gmra.mrb[0].mxu0 %v893
        %v1440 = vpop.f32.mrb[0].mxu0
        %v1441 = vadd.f32 0.0, %v1440
        %v1442 = vpop.f32.mrb[0].mxu0
        %1443 = vmatprep.mubr.f32.mxu0 %v926
        %1444 = vmatmul.mubr.f32.gmra.mrb[0].mxu0 %v894
        %v1445 = vpop.f32.mrb[0].mxu0
        %v1446 = vadd.f32 0.0, %v1445
        %v1447 = vpop.f32.mrb[0].mxu0
        %1448 = vmatprep.mubr.f32.mxu0 %v927
        %1449 = vmatmul.mubr.f32.gmra.mrb[0].mxu0 %v895
        %v1450 = vpop.f32.mrb[0].mxu0
        %v1451 = vadd.f32 0.0, %v1450
        %v1452 = vpop.f32.mrb[0].mxu0
        %1453 = vmatprep.mubr.f32.mxu0 %v928
        %1454 = vmatmul.mubr.f32.gmra.mrb[0].mxu0 %v896
        %v1455 = vpop.f32.mrb[0].mxu0
        %v1456 = vadd.f32 0.0, %v1455
        %v1457 = vpop.f32.mrb[0].mxu0
        %1458 = vmatprep.mubr.f32.mxu0 %v929
        %1459 = vmatmul.mubr.f32.gmra.mrb[0].mxu0 %v897
        %v1460 = vpop.f32.mrb[0].mxu0
        %v1461 = vadd.f32 0.0, %v1460
        %v1462 = vpop.f32.mrb[0].mxu0
        %1463 = vmatprep.mubr.f32.mxu0 %v930
        %1464 = vmatmul.mubr.f32.gmra.mrb[0].mxu0 %v898
        %v1465 = vpop.f32.mrb[0].mxu0
        %v1466 = vadd.f32 0.0, %v1465
        %v1467 = vpop.f32.mrb[0].mxu0
        %1468 = vmatprep.mubr.f32.mxu0 %v931
        %1469 = vmatmul.mubr.f32.gmra.mrb[0].mxu0 %v899
        %v1470 = vpop.f32.mrb[0].mxu0
        %v1471 = vadd.f32 0.0, %v1470
        %v1472 = vpop.f32.mrb[0].mxu0
        %1473 = vmatprep.mubr.f32.mxu0 %v932
        %1474 = vmatmul.mubr.f32.gmra.mrb[0].mxu0 %v900
        %v1475 = vpop.f32.mrb[0].mxu0
        %v1476 = vadd.f32 0.0, %v1475
        %v1477 = vpop.f32.mrb[0].mxu0
        %1478 = vmatprep.mubr.f32.mxu0 %v933
        %1479 = vmatmul.mubr.f32.gmra.mrb[0].mxu0 %v901
        %v1480 = vpop.f32.mrb[0].mxu0
        %v1481 = vadd.f32 0.0, %v1480
        %v1482 = vpop.f32.mrb[0].mxu0
        %1483 = vmatprep.mubr.f32.mxu0 %v934
        %1484 = vmatmul.mubr.f32.gmra.mrb[0].mxu0 %v902
        %v1485 = vpop.f32.mrb[0].mxu0
        %v1486 = vadd.f32 0.0, %v1485
        %v1487 = vpop.f32.mrb[0].mxu0
        %1488 = vmatprep.mubr.f32.mxu0 %v935
        %1489 = vmatmul.mubr.f32.gmra.mrb[0].mxu0 %v903
        %v1490 = vpop.f32.mrb[0].mxu0
        %v1491 = vadd.f32 0.0, %v1490
        %v1492 = vpop.f32.mrb[0].mxu0
        %1493 = vmatprep.mubr.f32.mxu0 %v936
        %1494 = vmatmul.mubr.f32.gmra.mrb[0].mxu0 %v904
        %v1495 = vpop.f32.mrb[0].mxu0
        %v1496 = vadd.f32 0.0, %v1495
        %v1497 = vpop.f32.mrb[0].mxu0
        %1498 = vmatprep.mubr.f32.mxu0 %v937
        %1499 = vmatmul.mubr.f32.gmra.mrb[0].mxu0 %v905
        %v1500 = vpop.f32.mrb[0].mxu0
        %v1501 = vadd.f32 0.0, %v1500
        %v1502 = vpop.f32.mrb[0].mxu0
        %1503 = vmatprep.mubr.f32.mxu0 %v938
        %1504 = vmatmul.mubr.f32.gmra.mrb[0].mxu0 %v906
        %v1505 = vpop.f32.mrb[0].mxu0
        %v1506 = vadd.f32 0.0, %v1505
        %v1507 = vpop.f32.mrb[0].mxu0
        %1508 = vmatprep.mubr.f32.mxu0 %v939
        %1509 = vmatmul.mubr.f32.gmra.mrb[0].mxu0 %v907
        %v1510 = vpop.f32.mrb[0].mxu0
        %v1511 = vadd.f32 0.0, %v1510
        %v1512 = vpop.f32.mrb[0].mxu0
        %1513 = vmatprep.mubr.f32.mxu0 %v940
        %1514 = vmatmul.mubr.f32.gmra.mrb[0].mxu0 %v908
        %v1515 = vpop.f32.mrb[0].mxu0
        %v1516 = vadd.f32 0.0, %v1515
        %v1517 = vpop.f32.mrb[0].mxu0
        %1518 = vmatprep.mubr.f32.mxu0 %v941
        %1519 = vmatmul.mubr.f32.gmra.mrb[0].mxu0 %v909
        %v1520 = vpop.f32.mrb[0].mxu0
        %v1521 = vadd.f32 0.0, %v1520
        %v1522 = vpop.f32.mrb[0].mxu0
        %1523 = vmatprep.mubr.f32.mxu0 %v942
        %1524 = vmatmul.mubr.f32.gmra.mrb[0].mxu0 %v910
        %v1525 = vpop.f32.mrb[0].mxu0
        %v1526 = vadd.f32 0.0, %v1525
        %v1527 = vpop.f32.mrb[0].mxu0
        %1528 = vmatprep.mubr.f32.mxu0 %v943
        %1529 = vmatmul.mubr.f32.gmra.mrb[0].mxu0 %v911
        %v1530 = vpop.f32.mrb[0].mxu0
        %v1531 = vadd.f32 0.0, %v1530
        %v1532 = vpop.f32.mrb[0].mxu0
        %1533 = vmatprep.mubr.f32.mxu0 %v944
        %1534 = vmatmul.mubr.f32.gmra.mrb[0].mxu0 %v912
        %v1535 = vpop.f32.mrb[0].mxu0
        %v1536 = vadd.f32 0.0, %v1535
        %v1537 = vpop.f32.mrb[0].mxu0
        %1538 = vdwg.mxu0
        %1539 = vmatprep.subr.mxu0 0.0
        %1540 = vmatpush1.msra.mxu0 %v1202
        %1541 = vmatprep.subr.mxu0 0.0
        %1542 = vmatpush1.msra.mxu0 %v1203
        %1543 = vmatprep.subr.mxu0 0.0
        %1544 = vmatpush1.msra.mxu0 %v1204
        %1545 = vmatprep.subr.mxu0 0.0
        %1546 = vmatpush1.msra.mxu0 %v1205
        %1547 = vmatprep.subr.mxu0 0.0
        %1548 = vmatpush1.msra.mxu0 %v1206
        %1549 = vmatprep.subr.mxu0 0.0
        %1550 = vmatpush1.msra.mxu0 %v1207
        %1551 = vmatprep.subr.mxu0 0.0
        %1552 = vmatpush1.msra.mxu0 %v1208
        %1553 = vmatprep.subr.mxu0 0.0
        %1554 = vmatpush1.msra.mxu0 %v1209
        %1555 = vmatprep.subr.mxu0 0.0
        %1556 = vmatpush1.msra.mxu0 %v1210
        %1557 = vmatprep.subr.mxu0 0.0
        %1558 = vmatpush1.msra.mxu0 %v1211
        %1559 = vmatprep.subr.mxu0 0.0
        %1560 = vmatpush1.msra.mxu0 %v1212
        %1561 = vmatprep.subr.mxu0 0.0
        %1562 = vmatpush1.msra.mxu0 %v1213
        %1563 = vmatprep.subr.mxu0 0.0
        %1564 = vmatpush1.msra.mxu0 %v1214
        %1565 = vmatprep.subr.mxu0 0.0
        %1566 = vmatpush1.msra.mxu0 %v1215
        %1567 = vmatprep.subr.mxu0 0.0
        %1568 = vmatpush1.msra.mxu0 %v1216
        %1569 = vmatprep.subr.mxu0 0.0
        %1570 = vmatpush1.msra.mxu0 %v1217
        %1571 = vmatprep.subr.mxu0 0.0
        %1572 = vmatpush1.msra.mxu0 %v1218
        %1573 = vmatprep.subr.mxu0 0.0
        %1574 = vmatpush1.msra.mxu0 %v1219
        %1575 = vmatprep.subr.mxu0 0.0
        %1576 = vmatpush1.msra.mxu0 %v1220
        %1577 = vmatprep.subr.mxu0 0.0
        %1578 = vmatpush1.msra.mxu0 %v1221
        %1579 = vmatprep.subr.mxu0 0.0
        %1580 = vmatpush1.msra.mxu0 %v1222
        %1581 = vmatprep.subr.mxu0 0.0
        %1582 = vmatpush1.msra.mxu0 %v1223
        %1583 = vmatprep.subr.mxu0 0.0
        %1584 = vmatpush1.msra.mxu0 %v1224
        %1585 = vmatprep.subr.mxu0 0.0
        %1586 = vmatpush1.msra.mxu0 %v1225
        %1587 = vmatprep.subr.mxu0 0.0
        %1588 = vmatpush1.msra.mxu0 %v1226
        %1589 = vmatprep.subr.mxu0 0.0
        %1590 = vmatpush1.msra.mxu0 %v1227
        %1591 = vmatprep.subr.mxu0 0.0
        %1592 = vmatpush1.msra.mxu0 %v1228
        %1593 = vmatprep.subr.mxu0 0.0
        %1594 = vmatpush1.msra.mxu0 %v1229
        %1595 = vmatprep.subr.mxu0 0.0
        %1596 = vmatpush1.msra.mxu0 %v1230
        %1597 = vmatprep.subr.mxu0 0.0
        %1598 = vmatpush1.msra.mxu0 %v1231
        %1599 = vmatprep.subr.mxu0 0.0
        %1600 = vmatpush1.msra.mxu0 %v1232
        %1601 = vmatprep.subr.mxu0 0.0
        %1602 = vmatpush1.msra.mxu0 %v1233
        %1603 = vmatprep.mubr.f32.mxu0 %v977
        %1604 = vmatmul.mubr.f32.gmra.mrb[0].mxu0 %v945
        %v1605 = vpop.f32.mrb[0].mxu0
        %v1606 = vadd.f32 %v1381, %v1605
        %v1607 = vpop.f32.mrb[0].mxu0
        %1608 = vmatprep.mubr.f32.mxu0 %v978
        %1609 = vmatmul.mubr.f32.gmra.mrb[0].mxu0 %v946
        %v1610 = vpop.f32.mrb[0].mxu0
        %v1611 = vadd.f32 %v1386, %v1610
        %v1612 = vpop.f32.mrb[0].mxu0
        %1613 = vmatprep.mubr.f32.mxu0 %v979
        %1614 = vmatmul.mubr.f32.gmra.mrb[0].mxu0 %v947
        %v1615 = vpop.f32.mrb[0].mxu0
        %v1616 = vadd.f32 %v1391, %v1615
        %v1617 = vpop.f32.mrb[0].mxu0
        %1618 = vmatprep.mubr.f32.mxu0 %v980
        %1619 = vmatmul.mubr.f32.gmra.mrb[0].mxu0 %v948
        %v1620 = vpop.f32.mrb[0].mxu0
        %v1621 = vadd.f32 %v1396, %v1620
        %v1622 = vpop.f32.mrb[0].mxu0
        %1623 = vmatprep.mubr.f32.mxu0 %v981
        %1624 = vmatmul.mubr.f32.gmra.mrb[0].mxu0 %v949
        %v1625 = vpop.f32.mrb[0].mxu0
        %v1626 = vadd.f32 %v1401, %v1625
        %v1627 = vpop.f32.mrb[0].mxu0
        %1628 = vmatprep.mubr.f32.mxu0 %v982
        %1629 = vmatmul.mubr.f32.gmra.mrb[0].mxu0 %v950
        %v1630 = vpop.f32.mrb[0].mxu0
        %v1631 = vadd.f32 %v1406, %v1630
        %v1632 = vpop.f32.mrb[0].mxu0
        %1633 = vmatprep.mubr.f32.mxu0 %v983
        %1634 = vmatmul.mubr.f32.gmra.mrb[0].mxu0 %v951
        %v1635 = vpop.f32.mrb[0].mxu0
        %v1636 = vadd.f32 %v1411, %v1635
        %v1637 = vpop.f32.mrb[0].mxu0
        %1638 = vmatprep.mubr.f32.mxu0 %v984
        %1639 = vmatmul.mubr.f32.gmra.mrb[0].mxu0 %v952
        %v1640 = vpop.f32.mrb[0].mxu0
        %v1641 = vadd.f32 %v1416, %v1640
        %v1642 = vpop.f32.mrb[0].mxu0
        %1643 = vmatprep.mubr.f32.mxu0 %v985
        %1644 = vmatmul.mubr.f32.gmra.mrb[0].mxu0 %v953
        %v1645 = vpop.f32.mrb[0].mxu0
        %v1646 = vadd.f32 %v1421, %v1645
        %v1647 = vpop.f32.mrb[0].mxu0
        %1648 = vmatprep.mubr.f32.mxu0 %v986
        %1649 = vmatmul.mubr.f32.gmra.mrb[0].mxu0 %v954
        %v1650 = vpop.f32.mrb[0].mxu0
        %v1651 = vadd.f32 %v1426, %v1650
        %v1652 = vpop.f32.mrb[0].mxu0
        %1653 = vmatprep.mubr.f32.mxu0 %v987
        %1654 = vmatmul.mubr.f32.gmra.mrb[0].mxu0 %v955
        %v1655 = vpop.f32.mrb[0].mxu0
        %v1656 = vadd.f32 %v1431, %v1655
        %v1657 = vpop.f32.mrb[0].mxu0
        %1658 = vmatprep.mubr.f32.mxu0 %v988
        %1659 = vmatmul.mubr.f32.gmra.mrb[0].mxu0 %v956
        %v1660 = vpop.f32.mrb[0].mxu0
        %v1661 = vadd.f32 %v1436, %v1660
        %v1662 = vpop.f32.mrb[0].mxu0
        %1663 = vmatprep.mubr.f32.mxu0 %v989
        %1664 = vmatmul.mubr.f32.gmra.mrb[0].mxu0 %v957
        %v1665 = vpop.f32.mrb[0].mxu0
        %v1666 = vadd.f32 %v1441, %v1665
        %v1667 = vpop.f32.mrb[0].mxu0
        %1668 = vmatprep.mubr.f32.mxu0 %v990
        %1669 = vmatmul.mubr.f32.gmra.mrb[0].mxu0 %v958
        %v1670 = vpop.f32.mrb[0].mxu0
        %v1671 = vadd.f32 %v1446, %v1670
        %v1672 = vpop.f32.mrb[0].mxu0
        %1673 = vmatprep.mubr.f32.mxu0 %v991
        %1674 = vmatmul.mubr.f32.gmra.mrb[0].mxu0 %v959
        %v1675 = vpop.f32.mrb[0].mxu0
        %v1676 = vadd.f32 %v1451, %v1675
        %v1677 = vpop.f32.mrb[0].mxu0
        %1678 = vmatprep.mubr.f32.mxu0 %v992
        %1679 = vmatmul.mubr.f32.gmra.mrb[0].mxu0 %v960
        %v1680 = vpop.f32.mrb[0].mxu0
        %v1681 = vadd.f32 %v1456, %v1680
        %v1682 = vpop.f32.mrb[0].mxu0
        %1683 = vmatprep.mubr.f32.mxu0 %v993
        %1684 = vmatmul.mubr.f32.gmra.mrb[0].mxu0 %v961
        %v1685 = vpop.f32.mrb[0].mxu0
        %v1686 = vadd.f32 %v1461, %v1685
        %v1687 = vpop.f32.mrb[0].mxu0
        %1688 = vmatprep.mubr.f32.mxu0 %v994
        %1689 = vmatmul.mubr.f32.gmra.mrb[0].mxu0 %v962
        %v1690 = vpop.f32.mrb[0].mxu0
        %v1691 = vadd.f32 %v1466, %v1690
        %v1692 = vpop.f32.mrb[0].mxu0
        %1693 = vmatprep.mubr.f32.mxu0 %v995
        %1694 = vmatmul.mubr.f32.gmra.mrb[0].mxu0 %v963
        %v1695 = vpop.f32.mrb[0].mxu0
        %v1696 = vadd.f32 %v1471, %v1695
        %v1697 = vpop.f32.mrb[0].mxu0
        %1698 = vmatprep.mubr.f32.mxu0 %v996
        %1699 = vmatmul.mubr.f32.gmra.mrb[0].mxu0 %v964
        %v1700 = vpop.f32.mrb[0].mxu0
        %v1701 = vadd.f32 %v1476, %v1700
        %v1702 = vpop.f32.mrb[0].mxu0
        %1703 = vmatprep.mubr.f32.mxu0 %v997
        %1704 = vmatmul.mubr.f32.gmra.mrb[0].mxu0 %v965
        %v1705 = vpop.f32.mrb[0].mxu0
        %v1706 = vadd.f32 %v1481, %v1705
        %v1707 = vpop.f32.mrb[0].mxu0
        %1708 = vmatprep.mubr.f32.mxu0 %v998
        %1709 = vmatmul.mubr.f32.gmra.mrb[0].mxu0 %v966
        %v1710 = vpop.f32.mrb[0].mxu0
        %v1711 = vadd.f32 %v1486, %v1710
        %v1712 = vpop.f32.mrb[0].mxu0
        %1713 = vmatprep.mubr.f32.mxu0 %v999
        %1714 = vmatmul.mubr.f32.gmra.mrb[0].mxu0 %v967
        %v1715 = vpop.f32.mrb[0].mxu0
        %v1716 = vadd.f32 %v1491, %v1715
        %v1717 = vpop.f32.mrb[0].mxu0
        %1718 = vmatprep.mubr.f32.mxu0 %v1000
        %1719 = vmatmul.mubr.f32.gmra.mrb[0].mxu0 %v968
        %v1720 = vpop.f32.mrb[0].mxu0
        %v1721 = vadd.f32 %v1496, %v1720
        %v1722 = vpop.f32.mrb[0].mxu0
        %1723 = vmatprep.mubr.f32.mxu0 %v1001
        %1724 = vmatmul.mubr.f32.gmra.mrb[0].mxu0 %v969
        %v1725 = vpop.f32.mrb[0].mxu0
        %v1726 = vadd.f32 %v1501, %v1725
        %v1727 = vpop.f32.mrb[0].mxu0
        %1728 = vmatprep.mubr.f32.mxu0 %v1002
        %1729 = vmatmul.mubr.f32.gmra.mrb[0].mxu0 %v970
        %v1730 = vpop.f32.mrb[0].mxu0
        %v1731 = vadd.f32 %v1506, %v1730
        %v1732 = vpop.f32.mrb[0].mxu0
        %1733 = vmatprep.mubr.f32.mxu0 %v1003
        %1734 = vmatmul.mubr.f32.gmra.mrb[0].mxu0 %v971
        %v1735 = vpop.f32.mrb[0].mxu0
        %v1736 = vadd.f32 %v1511, %v1735
        %v1737 = vpop.f32.mrb[0].mxu0
        %1738 = vmatprep.mubr.f32.mxu0 %v1004
        %1739 = vmatmul.mubr.f32.gmra.mrb[0].mxu0 %v972
        %v1740 = vpop.f32.mrb[0].mxu0
        %v1741 = vadd.f32 %v1516, %v1740
        %v1742 = vpop.f32.mrb[0].mxu0
        %1743 = vmatprep.mubr.f32.mxu0 %v1005
        %1744 = vmatmul.mubr.f32.gmra.mrb[0].mxu0 %v973
        %v1745 = vpop.f32.mrb[0].mxu0
        %v1746 = vadd.f32 %v1521, %v1745
        %v1747 = vpop.f32.mrb[0].mxu0
        %1748 = vmatprep.mubr.f32.mxu0 %v1006
        %1749 = vmatmul.mubr.f32.gmra.mrb[0].mxu0 %v974
        %v1750 = vpop.f32.mrb[0].mxu0
        %v1751 = vadd.f32 %v1526, %v1750
        %v1752 = vpop.f32.mrb[0].mxu0
        %1753 = vmatprep.mubr.f32.mxu0 %v1007
        %1754 = vmatmul.mubr.f32.gmra.mrb[0].mxu0 %v975
        %v1755 = vpop.f32.mrb[0].mxu0
        %v1756 = vadd.f32 %v1531, %v1755
        %v1757 = vpop.f32.mrb[0].mxu0
        %1758 = vmatprep.mubr.f32.mxu0 %v1008
        %1759 = vmatmul.mubr.f32.gmra.mrb[0].mxu0 %v976
        %v1760 = vpop.f32.mrb[0].mxu0
        %v1761 = vadd.f32 %v1536, %v1760
        %v1762 = vpop.f32.mrb[0].mxu0
        %1763 = vdwg.mxu0
        %1764 = vmatprep.subr.mxu0 0.0
        %1765 = vmatpush1.msra.mxu0 %v1234
        %1766 = vmatprep.subr.mxu0 0.0
        %1767 = vmatpush1.msra.mxu0 %v1235
        %1768 = vmatprep.subr.mxu0 0.0
        %1769 = vmatpush1.msra.mxu0 %v1236
        %1770 = vmatprep.subr.mxu0 0.0
        %1771 = vmatpush1.msra.mxu0 %v1237
        %1772 = vmatprep.subr.mxu0 0.0
        %1773 = vmatpush1.msra.mxu0 %v1238
        %1774 = vmatprep.subr.mxu0 0.0
        %1775 = vmatpush1.msra.mxu0 %v1239
        %1776 = vmatprep.subr.mxu0 0.0
        %1777 = vmatpush1.msra.mxu0 %v1240
        %1778 = vmatprep.subr.mxu0 0.0
        %1779 = vmatpush1.msra.mxu0 %v1241
        %1780 = vmatprep.subr.mxu0 0.0
        %1781 = vmatpush1.msra.mxu0 %v1242
        %1782 = vmatprep.subr.mxu0 0.0
        %1783 = vmatpush1.msra.mxu0 %v1243
        %1784 = vmatprep.subr.mxu0 0.0
        %1785 = vmatpush1.msra.mxu0 %v1244
        %1786 = vmatprep.subr.mxu0 0.0
        %1787 = vmatpush1.msra.mxu0 %v1245
        %1788 = vmatprep.subr.mxu0 0.0
        %1789 = vmatpush1.msra.mxu0 %v1246
        %1790 = vmatprep.subr.mxu0 0.0
        %1791 = vmatpush1.msra.mxu0 %v1247
        %1792 = vmatprep.subr.mxu0 0.0
        %1793 = vmatpush1.msra.mxu0 %v1248
        %1794 = vmatprep.subr.mxu0 0.0
        %1795 = vmatpush1.msra.mxu0 %v1249
        %1796 = vmatprep.subr.mxu0 0.0
        %1797 = vmatpush1.msra.mxu0 %v1250
        %1798 = vmatprep.subr.mxu0 0.0
        %1799 = vmatpush1.msra.mxu0 %v1251
        %1800 = vmatprep.subr.mxu0 0.0
        %1801 = vmatpush1.msra.mxu0 %v1252
        %1802 = vmatprep.subr.mxu0 0.0
        %1803 = vmatpush1.msra.mxu0 %v1253
        %1804 = vmatprep.subr.mxu0 0.0
        %1805 = vmatpush1.msra.mxu0 %v1254
        %1806 = vmatprep.subr.mxu0 0.0
        %1807 = vmatpush1.msra.mxu0 %v1255
        %1808 = vmatprep.subr.mxu0 0.0
        %1809 = vmatpush1.msra.mxu0 %v1256
        %1810 = vmatprep.subr.mxu0 0.0
        %1811 = vmatpush1.msra.mxu0 %v1257
        %1812 = vmatprep.subr.mxu0 0.0
        %1813 = vmatpush1.msra.mxu0 %v1258
        %1814 = vmatprep.subr.mxu0 0.0
        %1815 = vmatpush1.msra.mxu0 %v1259
        %1816 = vmatprep.subr.mxu0 0.0
        %1817 = vmatpush1.msra.mxu0 %v1260
        %1818 = vmatprep.subr.mxu0 0.0
        %1819 = vmatpush1.msra.mxu0 %v1261
        %1820 = vmatprep.subr.mxu0 0.0
        %1821 = vmatpush1.msra.mxu0 %v1262
        %1822 = vmatprep.subr.mxu0 0.0
        %1823 = vmatpush1.msra.mxu0 %v1263
        %1824 = vmatprep.subr.mxu0 0.0
        %1825 = vmatpush1.msra.mxu0 %v1264
        %1826 = vmatprep.subr.mxu0 0.0
        %1827 = vmatpush1.msra.mxu0 %v1265
        %1828 = vmatprep.mubr.f32.mxu0 %v1041
        %1829 = vmatmul.mubr.f32.gmra.mrb[0].mxu0 %v1009
        %v1830 = vpop.f32.mrb[0].mxu0
        %v1831 = vadd.f32 %v1606, %v1830
        %v1832 = vpop.f32.mrb[0].mxu0
        %1833 = vmatprep.mubr.f32.mxu0 %v1042
        %1834 = vmatmul.mubr.f32.gmra.mrb[0].mxu0 %v1010
        %v1835 = vpop.f32.mrb[0].mxu0
        %v1836 = vadd.f32 %v1611, %v1835
        %v1837 = vpop.f32.mrb[0].mxu0
        %1838 = vmatprep.mubr.f32.mxu0 %v1043
        %1839 = vmatmul.mubr.f32.gmra.mrb[0].mxu0 %v1011
        %v1840 = vpop.f32.mrb[0].mxu0
        %v1841 = vadd.f32 %v1616, %v1840
        %v1842 = vpop.f32.mrb[0].mxu0
        %1843 = vmatprep.mubr.f32.mxu0 %v1044
        %1844 = vmatmul.mubr.f32.gmra.mrb[0].mxu0 %v1012
        %v1845 = vpop.f32.mrb[0].mxu0
        %v1846 = vadd.f32 %v1621, %v1845
        %v1847 = vpop.f32.mrb[0].mxu0
        %1848 = vmatprep.mubr.f32.mxu0 %v1045
        %1849 = vmatmul.mubr.f32.gmra.mrb[0].mxu0 %v1013
        %v1850 = vpop.f32.mrb[0].mxu0
        %v1851 = vadd.f32 %v1626, %v1850
        %v1852 = vpop.f32.mrb[0].mxu0
        %1853 = vmatprep.mubr.f32.mxu0 %v1046
        %1854 = vmatmul.mubr.f32.gmra.mrb[0].mxu0 %v1014
        %v1855 = vpop.f32.mrb[0].mxu0
        %v1856 = vadd.f32 %v1631, %v1855
        %v1857 = vpop.f32.mrb[0].mxu0
        %1858 = vmatprep.mubr.f32.mxu0 %v1047
        %1859 = vmatmul.mubr.f32.gmra.mrb[0].mxu0 %v1015
        %v1860 = vpop.f32.mrb[0].mxu0
        %v1861 = vadd.f32 %v1636, %v1860
        %v1862 = vpop.f32.mrb[0].mxu0
        %1863 = vmatprep.mubr.f32.mxu0 %v1048
        %1864 = vmatmul.mubr.f32.gmra.mrb[0].mxu0 %v1016
        %v1865 = vpop.f32.mrb[0].mxu0
        %v1866 = vadd.f32 %v1641, %v1865
        %v1867 = vpop.f32.mrb[0].mxu0
        %1868 = vmatprep.mubr.f32.mxu0 %v1049
        %1869 = vmatmul.mubr.f32.gmra.mrb[0].mxu0 %v1017
        %v1870 = vpop.f32.mrb[0].mxu0
        %v1871 = vadd.f32 %v1646, %v1870
        %v1872 = vpop.f32.mrb[0].mxu0
        %1873 = vmatprep.mubr.f32.mxu0 %v1050
        %1874 = vmatmul.mubr.f32.gmra.mrb[0].mxu0 %v1018
        %v1875 = vpop.f32.mrb[0].mxu0
        %v1876 = vadd.f32 %v1651, %v1875
        %v1877 = vpop.f32.mrb[0].mxu0
        %1878 = vmatprep.mubr.f32.mxu0 %v1051
        %1879 = vmatmul.mubr.f32.gmra.mrb[0].mxu0 %v1019
        %v1880 = vpop.f32.mrb[0].mxu0
        %v1881 = vadd.f32 %v1656, %v1880
        %v1882 = vpop.f32.mrb[0].mxu0
        %1883 = vmatprep.mubr.f32.mxu0 %v1052
        %1884 = vmatmul.mubr.f32.gmra.mrb[0].mxu0 %v1020
        %v1885 = vpop.f32.mrb[0].mxu0
        %v1886 = vadd.f32 %v1661, %v1885
        %v1887 = vpop.f32.mrb[0].mxu0
        %1888 = vmatprep.mubr.f32.mxu0 %v1053
        %1889 = vmatmul.mubr.f32.gmra.mrb[0].mxu0 %v1021
        %v1890 = vpop.f32.mrb[0].mxu0
        %v1891 = vadd.f32 %v1666, %v1890
        %v1892 = vpop.f32.mrb[0].mxu0
        %1893 = vmatprep.mubr.f32.mxu0 %v1054
        %1894 = vmatmul.mubr.f32.gmra.mrb[0].mxu0 %v1022
        %v1895 = vpop.f32.mrb[0].mxu0
        %v1896 = vadd.f32 %v1671, %v1895
        %v1897 = vpop.f32.mrb[0].mxu0
        %1898 = vmatprep.mubr.f32.mxu0 %v1055
        %1899 = vmatmul.mubr.f32.gmra.mrb[0].mxu0 %v1023
        %v1900 = vpop.f32.mrb[0].mxu0
        %v1901 = vadd.f32 %v1676, %v1900
        %v1902 = vpop.f32.mrb[0].mxu0
        %1903 = vmatprep.mubr.f32.mxu0 %v1056
        %1904 = vmatmul.mubr.f32.gmra.mrb[0].mxu0 %v1024
        %v1905 = vpop.f32.mrb[0].mxu0
        %v1906 = vadd.f32 %v1681, %v1905
        %v1907 = vpop.f32.mrb[0].mxu0
        %1908 = vmatprep.mubr.f32.mxu0 %v1057
        %1909 = vmatmul.mubr.f32.gmra.mrb[0].mxu0 %v1025
        %v1910 = vpop.f32.mrb[0].mxu0
        %v1911 = vadd.f32 %v1686, %v1910
        %v1912 = vpop.f32.mrb[0].mxu0
        %1913 = vmatprep.mubr.f32.mxu0 %v1058
        %1914 = vmatmul.mubr.f32.gmra.mrb[0].mxu0 %v1026
        %v1915 = vpop.f32.mrb[0].mxu0
        %v1916 = vadd.f32 %v1691, %v1915
        %v1917 = vpop.f32.mrb[0].mxu0
        %1918 = vmatprep.mubr.f32.mxu0 %v1059
        %1919 = vmatmul.mubr.f32.gmra.mrb[0].mxu0 %v1027
        %v1920 = vpop.f32.mrb[0].mxu0
        %v1921 = vadd.f32 %v1696, %v1920
        %v1922 = vpop.f32.mrb[0].mxu0
        %1923 = vmatprep.mubr.f32.mxu0 %v1060
        %1924 = vmatmul.mubr.f32.gmra.mrb[0].mxu0 %v1028
        %v1925 = vpop.f32.mrb[0].mxu0
        %v1926 = vadd.f32 %v1701, %v1925
        %v1927 = vpop.f32.mrb[0].mxu0
        %1928 = vmatprep.mubr.f32.mxu0 %v1061
        %1929 = vmatmul.mubr.f32.gmra.mrb[0].mxu0 %v1029
        %v1930 = vpop.f32.mrb[0].mxu0
        %v1931 = vadd.f32 %v1706, %v1930
        %v1932 = vpop.f32.mrb[0].mxu0
        %1933 = vmatprep.mubr.f32.mxu0 %v1062
        %1934 = vmatmul.mubr.f32.gmra.mrb[0].mxu0 %v1030
        %v1935 = vpop.f32.mrb[0].mxu0
        %v1936 = vadd.f32 %v1711, %v1935
        %v1937 = vpop.f32.mrb[0].mxu0
        %1938 = vmatprep.mubr.f32.mxu0 %v1063
        %1939 = vmatmul.mubr.f32.gmra.mrb[0].mxu0 %v1031
        %v1940 = vpop.f32.mrb[0].mxu0
        %v1941 = vadd.f32 %v1716, %v1940
        %v1942 = vpop.f32.mrb[0].mxu0
        %1943 = vmatprep.mubr.f32.mxu0 %v1064
        %1944 = vmatmul.mubr.f32.gmra.mrb[0].mxu0 %v1032
        %v1945 = vpop.f32.mrb[0].mxu0
        %v1946 = vadd.f32 %v1721, %v1945
        %v1947 = vpop.f32.mrb[0].mxu0
        %1948 = vmatprep.mubr.f32.mxu0 %v1065
        %1949 = vmatmul.mubr.f32.gmra.mrb[0].mxu0 %v1033
        %v1950 = vpop.f32.mrb[0].mxu0
        %v1951 = vadd.f32 %v1726, %v1950
        %v1952 = vpop.f32.mrb[0].mxu0
        %1953 = vmatprep.mubr.f32.mxu0 %v1066
        %1954 = vmatmul.mubr.f32.gmra.mrb[0].mxu0 %v1034
        %v1955 = vpop.f32.mrb[0].mxu0
        %v1956 = vadd.f32 %v1731, %v1955
        %v1957 = vpop.f32.mrb[0].mxu0
        %1958 = vmatprep.mubr.f32.mxu0 %v1067
        %1959 = vmatmul.mubr.f32.gmra.mrb[0].mxu0 %v1035
        %v1960 = vpop.f32.mrb[0].mxu0
        %v1961 = vadd.f32 %v1736, %v1960
        %v1962 = vpop.f32.mrb[0].mxu0
        %1963 = vmatprep.mubr.f32.mxu0 %v1068
        %1964 = vmatmul.mubr.f32.gmra.mrb[0].mxu0 %v1036
        %v1965 = vpop.f32.mrb[0].mxu0
        %v1966 = vadd.f32 %v1741, %v1965
        %v1967 = vpop.f32.mrb[0].mxu0
        %1968 = vmatprep.mubr.f32.mxu0 %v1069
        %1969 = vmatmul.mubr.f32.gmra.mrb[0].mxu0 %v1037
        %v1970 = vpop.f32.mrb[0].mxu0
        %v1971 = vadd.f32 %v1746, %v1970
        %v1972 = vpop.f32.mrb[0].mxu0
        %1973 = vmatprep.mubr.f32.mxu0 %v1070
        %1974 = vmatmul.mubr.f32.gmra.mrb[0].mxu0 %v1038
        %v1975 = vpop.f32.mrb[0].mxu0
        %v1976 = vadd.f32 %v1751, %v1975
        %v1977 = vpop.f32.mrb[0].mxu0
        %1978 = vmatprep.mubr.f32.mxu0 %v1071
        %1979 = vmatmul.mubr.f32.gmra.mrb[0].mxu0 %v1039
        %v1980 = vpop.f32.mrb[0].mxu0
        %v1981 = vadd.f32 %v1756, %v1980
        %v1982 = vpop.f32.mrb[0].mxu0
        %1983 = vmatprep.mubr.f32.mxu0 %v1072
        %1984 = vmatmul.mubr.f32.gmra.mrb[0].mxu0 %v1040
        %v1985 = vpop.f32.mrb[0].mxu0
        %v1986 = vadd.f32 %v1761, %v1985
        %v1987 = vpop.f32.mrb[0].mxu0
        %1988 = vdwg.mxu0
        %1989 = vmatprep.subr.mxu0 0.0
        %1990 = vmatpush1.msra.mxu0 %v1266
        %1991 = vmatprep.subr.mxu0 0.0
        %1992 = vmatpush1.msra.mxu0 %v1267
        %1993 = vmatprep.subr.mxu0 0.0
        %1994 = vmatpush1.msra.mxu0 %v1268
        %1995 = vmatprep.subr.mxu0 0.0
        %1996 = vmatpush1.msra.mxu0 %v1269
        %1997 = vmatprep.subr.mxu0 0.0
        %1998 = vmatpush1.msra.mxu0 %v1270
        %1999 = vmatprep.subr.mxu0 0.0
        %2000 = vmatpush1.msra.mxu0 %v1271
        %2001 = vmatprep.subr.mxu0 0.0
        %2002 = vmatpush1.msra.mxu0 %v1272
        %2003 = vmatprep.subr.mxu0 0.0
        %2004 = vmatpush1.msra.mxu0 %v1273
        %2005 = vmatprep.subr.mxu0 0.0
        %2006 = vmatpush1.msra.mxu0 %v1274
        %2007 = vmatprep.subr.mxu0 0.0
        %2008 = vmatpush1.msra.mxu0 %v1275
        %2009 = vmatprep.subr.mxu0 0.0
        %2010 = vmatpush1.msra.mxu0 %v1276
        %2011 = vmatprep.subr.mxu0 0.0
        %2012 = vmatpush1.msra.mxu0 %v1277
        %2013 = vmatprep.subr.mxu0 0.0
        %2014 = vmatpush1.msra.mxu0 %v1278
        %2015 = vmatprep.subr.mxu0 0.0
        %2016 = vmatpush1.msra.mxu0 %v1279
        %2017 = vmatprep.subr.mxu0 0.0
        %2018 = vmatpush1.msra.mxu0 %v1280
        %2019 = vmatprep.subr.mxu0 0.0
        %2020 = vmatpush1.msra.mxu0 %v1281
        %2021 = vmatprep.subr.mxu0 0.0
        %2022 = vmatpush1.msra.mxu0 %v1282
        %2023 = vmatprep.subr.mxu0 0.0
        %2024 = vmatpush1.msra.mxu0 %v1283
        %2025 = vmatprep.subr.mxu0 0.0
        %2026 = vmatpush1.msra.mxu0 %v1284
        %2027 = vmatprep.subr.mxu0 0.0
        %2028 = vmatpush1.msra.mxu0 %v1285
        %2029 = vmatprep.subr.mxu0 0.0
        %2030 = vmatpush1.msra.mxu0 %v1286
        %2031 = vmatprep.subr.mxu0 0.0
        %2032 = vmatpush1.msra.mxu0 %v1287
        %2033 = vmatprep.subr.mxu0 0.0
        %2034 = vmatpush1.msra.mxu0 %v1288
        %2035 = vmatprep.subr.mxu0 0.0
        %2036 = vmatpush1.msra.mxu0 %v1289
        %2037 = vmatprep.subr.mxu0 0.0
        %2038 = vmatpush1.msra.mxu0 %v1290
        %2039 = vmatprep.subr.mxu0 0.0
        %2040 = vmatpush1.msra.mxu0 %v1291
        %2041 = vmatprep.subr.mxu0 0.0
        %2042 = vmatpush1.msra.mxu0 %v1292
        %2043 = vmatprep.subr.mxu0 0.0
        %2044 = vmatpush1.msra.mxu0 %v1293
        %2045 = vmatprep.subr.mxu0 0.0
        %2046 = vmatpush1.msra.mxu0 %v1294
        %2047 = vmatprep.subr.mxu0 0.0
        %2048 = vmatpush1.msra.mxu0 %v1295
        %2049 = vmatprep.subr.mxu0 0.0
        %2050 = vmatpush1.msra.mxu0 %v1296
        %2051 = vmatprep.subr.mxu0 0.0
        %2052 = vmatpush1.msra.mxu0 %v1297
        %2053 = vmatprep.mubr.f32.mxu0 %v1106
        %2054 = vmatmul.mubr.f32.gmra.mrb[0].mxu0 %v1074
        %v2055 = vpop.f32.mrb[0].mxu0
        %v2056 = vadd.f32 %v1831, %v2055
        %v2057 = vpop.f32.mrb[0].mxu0
        %2058 = vmatprep.mubr.f32.mxu0 %v1107
        %2059 = vmatmul.mubr.f32.gmra.mrb[0].mxu0 %v1075
        %v2060 = vpop.f32.mrb[0].mxu0
        %v2061 = vadd.f32 %v1836, %v2060
        %v2062 = vpop.f32.mrb[0].mxu0
        %2063 = vmatprep.mubr.f32.mxu0 %v1108
        %2064 = vmatmul.mubr.f32.gmra.mrb[0].mxu0 %v1076
        %v2065 = vpop.f32.mrb[0].mxu0
        %v2066 = vadd.f32 %v1841, %v2065
        %v2067 = vpop.f32.mrb[0].mxu0
        %2068 = vmatprep.mubr.f32.mxu0 %v1109
        %2069 = vmatmul.mubr.f32.gmra.mrb[0].mxu0 %v1077
        %v2070 = vpop.f32.mrb[0].mxu0
        %v2071 = vadd.f32 %v1846, %v2070
        %v2072 = vpop.f32.mrb[0].mxu0
        %2073 = vmatprep.mubr.f32.mxu0 %v1110
        %2074 = vmatmul.mubr.f32.gmra.mrb[0].mxu0 %v1078
        %v2075 = vpop.f32.mrb[0].mxu0
        %v2076 = vadd.f32 %v1851, %v2075
        %v2077 = vpop.f32.mrb[0].mxu0
        %2078 = vmatprep.mubr.f32.mxu0 %v1111
        %2079 = vmatmul.mubr.f32.gmra.mrb[0].mxu0 %v1079
        %v2080 = vpop.f32.mrb[0].mxu0
        %v2081 = vadd.f32 %v1856, %v2080
        %v2082 = vpop.f32.mrb[0].mxu0
        %2083 = vmatprep.mubr.f32.mxu0 %v1112
        %2084 = vmatmul.mubr.f32.gmra.mrb[0].mxu0 %v1080
        %v2085 = vpop.f32.mrb[0].mxu0
        %v2086 = vadd.f32 %v1861, %v2085
        %v2087 = vpop.f32.mrb[0].mxu0
        %2088 = vmatprep.mubr.f32.mxu0 %v1113
        %2089 = vmatmul.mubr.f32.gmra.mrb[0].mxu0 %v1081
        %v2090 = vpop.f32.mrb[0].mxu0
        %v2091 = vadd.f32 %v1866, %v2090
        %v2092 = vpop.f32.mrb[0].mxu0
        %2093 = vmatprep.mubr.f32.mxu0 %v1114
        %2094 = vmatmul.mubr.f32.gmra.mrb[0].mxu0 %v1082
        %v2095 = vpop.f32.mrb[0].mxu0
        %v2096 = vadd.f32 %v1871, %v2095
        %v2097 = vpop.f32.mrb[0].mxu0
        %2098 = vmatprep.mubr.f32.mxu0 %v1115
        %2099 = vmatmul.mubr.f32.gmra.mrb[0].mxu0 %v1083
        %v2100 = vpop.f32.mrb[0].mxu0
        %v2101 = vadd.f32 %v1876, %v2100
        %v2102 = vpop.f32.mrb[0].mxu0
        %2103 = vmatprep.mubr.f32.mxu0 %v1116
        %2104 = vmatmul.mubr.f32.gmra.mrb[0].mxu0 %v1084
        %v2105 = vpop.f32.mrb[0].mxu0
        %v2106 = vadd.f32 %v1881, %v2105
        %v2107 = vpop.f32.mrb[0].mxu0
        %2108 = vmatprep.mubr.f32.mxu0 %v1117
        %2109 = vmatmul.mubr.f32.gmra.mrb[0].mxu0 %v1085
        %v2110 = vpop.f32.mrb[0].mxu0
        %v2111 = vadd.f32 %v1886, %v2110
        %v2112 = vpop.f32.mrb[0].mxu0
        %2113 = vmatprep.mubr.f32.mxu0 %v1118
        %2114 = vmatmul.mubr.f32.gmra.mrb[0].mxu0 %v1086
        %v2115 = vpop.f32.mrb[0].mxu0
        %v2116 = vadd.f32 %v1891, %v2115
        %v2117 = vpop.f32.mrb[0].mxu0
        %2118 = vmatprep.mubr.f32.mxu0 %v1119
        %2119 = vmatmul.mubr.f32.gmra.mrb[0].mxu0 %v1087
        %v2120 = vpop.f32.mrb[0].mxu0
        %v2121 = vadd.f32 %v1896, %v2120
        %v2122 = vpop.f32.mrb[0].mxu0
        %2123 = vmatprep.mubr.f32.mxu0 %v1120
        %2124 = vmatmul.mubr.f32.gmra.mrb[0].mxu0 %v1088
        %v2125 = vpop.f32.mrb[0].mxu0
        %v2126 = vadd.f32 %v1901, %v2125
        %v2127 = vpop.f32.mrb[0].mxu0
        %2128 = vmatprep.mubr.f32.mxu0 %v1121
        %2129 = vmatmul.mubr.f32.gmra.mrb[0].mxu0 %v1089
        %v2130 = vpop.f32.mrb[0].mxu0
        %v2131 = vadd.f32 %v1906, %v2130
        %v2132 = vpop.f32.mrb[0].mxu0
        %2133 = vmatprep.mubr.f32.mxu0 %v1122
        %2134 = vmatmul.mubr.f32.gmra.mrb[0].mxu0 %v1090
        %v2135 = vpop.f32.mrb[0].mxu0
        %v2136 = vadd.f32 %v1911, %v2135
        %v2137 = vpop.f32.mrb[0].mxu0
        %2138 = vmatprep.mubr.f32.mxu0 %v1123
        %2139 = vmatmul.mubr.f32.gmra.mrb[0].mxu0 %v1091
        %v2140 = vpop.f32.mrb[0].mxu0
        %v2141 = vadd.f32 %v1916, %v2140
        %v2142 = vpop.f32.mrb[0].mxu0
        %2143 = vmatprep.mubr.f32.mxu0 %v1124
        %2144 = vmatmul.mubr.f32.gmra.mrb[0].mxu0 %v1092
        %v2145 = vpop.f32.mrb[0].mxu0
        %v2146 = vadd.f32 %v1921, %v2145
        %v2147 = vpop.f32.mrb[0].mxu0
        %2148 = vmatprep.mubr.f32.mxu0 %v1125
        %2149 = vmatmul.mubr.f32.gmra.mrb[0].mxu0 %v1093
        %v2150 = vpop.f32.mrb[0].mxu0
        %v2151 = vadd.f32 %v1926, %v2150
        %v2152 = vpop.f32.mrb[0].mxu0
        %2153 = vmatprep.mubr.f32.mxu0 %v1126
        %2154 = vmatmul.mubr.f32.gmra.mrb[0].mxu0 %v1094
        %v2155 = vpop.f32.mrb[0].mxu0
        %v2156 = vadd.f32 %v1931, %v2155
        %v2157 = vpop.f32.mrb[0].mxu0
        %2158 = vmatprep.mubr.f32.mxu0 %v1127
        %2159 = vmatmul.mubr.f32.gmra.mrb[0].mxu0 %v1095
        %v2160 = vpop.f32.mrb[0].mxu0
        %v2161 = vadd.f32 %v1936, %v2160
        %v2162 = vpop.f32.mrb[0].mxu0
        %2163 = vmatprep.mubr.f32.mxu0 %v1128
        %2164 = vmatmul.mubr.f32.gmra.mrb[0].mxu0 %v1096
        %v2165 = vpop.f32.mrb[0].mxu0
        %v2166 = vadd.f32 %v1941, %v2165
        %v2167 = vpop.f32.mrb[0].mxu0
        %2168 = vmatprep.mubr.f32.mxu0 %v1129
        %2169 = vmatmul.mubr.f32.gmra.mrb[0].mxu0 %v1097
        %v2170 = vpop.f32.mrb[0].mxu0
        %v2171 = vadd.f32 %v1946, %v2170
        %v2172 = vpop.f32.mrb[0].mxu0
        %2173 = vmatprep.mubr.f32.mxu0 %v1130
        %2174 = vmatmul.mubr.f32.gmra.mrb[0].mxu0 %v1098
        %v2175 = vpop.f32.mrb[0].mxu0
        %v2176 = vadd.f32 %v1951, %v2175
        %v2177 = vpop.f32.mrb[0].mxu0
        %2178 = vmatprep.mubr.f32.mxu0 %v1131
        %2179 = vmatmul.mubr.f32.gmra.mrb[0].mxu0 %v1099
        %v2180 = vpop.f32.mrb[0].mxu0
        %v2181 = vadd.f32 %v1956, %v2180
        %v2182 = vpop.f32.mrb[0].mxu0
        %2183 = vmatprep.mubr.f32.mxu0 %v1132
        %2184 = vmatmul.mubr.f32.gmra.mrb[0].mxu0 %v1100
        %v2185 = vpop.f32.mrb[0].mxu0
        %v2186 = vadd.f32 %v1961, %v2185
        %v2187 = vpop.f32.mrb[0].mxu0
        %2188 = vmatprep.mubr.f32.mxu0 %v1133
        %2189 = vmatmul.mubr.f32.gmra.mrb[0].mxu0 %v1101
        %v2190 = vpop.f32.mrb[0].mxu0
        %v2191 = vadd.f32 %v1966, %v2190
        %v2192 = vpop.f32.mrb[0].mxu0
        %2193 = vmatprep.mubr.f32.mxu0 %v1134
        %2194 = vmatmul.mubr.f32.gmra.mrb[0].mxu0 %v1102
        %v2195 = vpop.f32.mrb[0].mxu0
        %v2196 = vadd.f32 %v1971, %v2195
        %v2197 = vpop.f32.mrb[0].mxu0
        %2198 = vmatprep.mubr.f32.mxu0 %v1135
        %2199 = vmatmul.mubr.f32.gmra.mrb[0].mxu0 %v1103
        %v2200 = vpop.f32.mrb[0].mxu0
        %v2201 = vadd.f32 %v1976, %v2200
        %v2202 = vpop.f32.mrb[0].mxu0
        %2203 = vmatprep.mubr.f32.mxu0 %v1136
        %2204 = vmatmul.mubr.f32.gmra.mrb[0].mxu0 %v1104
        %v2205 = vpop.f32.mrb[0].mxu0
        %v2206 = vadd.f32 %v1981, %v2205
        %v2207 = vpop.f32.mrb[0].mxu0
        %2208 = vmatprep.mubr.f32.mxu0 %v1137
        %2209 = vmatmul.mubr.f32.gmra.mrb[0].mxu0 %v1105
        %v2210 = vpop.f32.mrb[0].mxu0
        %v2211 = vadd.f32 %v1986, %v2210
        %v2212 = vpop.f32.mrb[0].mxu0
        %2213 = vdwg.mxu0
        %2214 = vmatprep.subr.mxu0 0.0
        %2215 = vmatpush1.msra.mxu0 %v1298
        %2216 = vmatprep.subr.mxu0 0.0
        %2217 = vmatpush1.msra.mxu0 %v1299
        %2218 = vmatprep.subr.mxu0 0.0
        %2219 = vmatpush1.msra.mxu0 %v1300
        %2220 = vmatprep.subr.mxu0 0.0
        %2221 = vmatpush1.msra.mxu0 %v1301
        %2222 = vmatprep.subr.mxu0 0.0
        %2223 = vmatpush1.msra.mxu0 %v1302
        %2224 = vmatprep.subr.mxu0 0.0
        %2225 = vmatpush1.msra.mxu0 %v1303
        %2226 = vmatprep.subr.mxu0 0.0
        %2227 = vmatpush1.msra.mxu0 %v1304
        %2228 = vmatprep.subr.mxu0 0.0
        %2229 = vmatpush1.msra.mxu0 %v1305
        %2230 = vmatprep.subr.mxu0 0.0
        %2231 = vmatpush1.msra.mxu0 %v1306
        %2232 = vmatprep.subr.mxu0 0.0
        %2233 = vmatpush1.msra.mxu0 %v1307
        %2234 = vmatprep.subr.mxu0 0.0
        %2235 = vmatpush1.msra.mxu0 %v1308
        %2236 = vmatprep.subr.mxu0 0.0
        %2237 = vmatpush1.msra.mxu0 %v1309
        %2238 = vmatprep.subr.mxu0 0.0
        %2239 = vmatpush1.msra.mxu0 %v1310
        %2240 = vmatprep.subr.mxu0 0.0
        %2241 = vmatpush1.msra.mxu0 %v1311
        %2242 = vmatprep.subr.mxu0 0.0
        %2243 = vmatpush1.msra.mxu0 %v1312
        %2244 = vmatprep.subr.mxu0 0.0
        %2245 = vmatpush1.msra.mxu0 %v1313
        %2246 = vmatprep.subr.mxu0 0.0
        %2247 = vmatpush1.msra.mxu0 0.0
        %2248 = vmatprep.subr.mxu0 0.0
        %2249 = vmatpush1.msra.mxu0 0.0
        %2250 = vmatprep.subr.mxu0 0.0
        %2251 = vmatpush1.msra.mxu0 0.0
        %2252 = vmatprep.subr.mxu0 0.0
        %2253 = vmatpush1.msra.mxu0 0.0
        %2254 = vmatprep.subr.mxu0 0.0
        %2255 = vmatpush1.msra.mxu0 0.0
        %2256 = vmatprep.subr.mxu0 0.0
        %2257 = vmatpush1.msra.mxu0 0.0
        %2258 = vmatprep.subr.mxu0 0.0
        %2259 = vmatpush1.msra.mxu0 0.0
        %2260 = vmatprep.subr.mxu0 0.0
        %2261 = vmatpush1.msra.mxu0 0.0
        %2262 = vmatprep.subr.mxu0 0.0
        %2263 = vmatpush1.msra.mxu0 0.0
        %2264 = vmatprep.subr.mxu0 0.0
        %2265 = vmatpush1.msra.mxu0 0.0
        %2266 = vmatprep.subr.mxu0 0.0
        %2267 = vmatpush1.msra.mxu0 0.0
        %2268 = vmatprep.subr.mxu0 0.0
        %2269 = vmatpush1.msra.mxu0 0.0
        %2270 = vmatprep.subr.mxu0 0.0
        %2271 = vmatpush1.msra.mxu0 0.0
        %2272 = vmatprep.subr.mxu0 0.0
        %2273 = vmatpush1.msra.mxu0 0.0
        %2274 = vmatprep.subr.mxu0 0.0
        %2275 = vmatpush1.msra.mxu0 0.0
        %2276 = vmatprep.subr.mxu0 0.0
        %2277 = vmatpush1.msra.mxu0 0.0
        %2278 = vmatprep.mubr.f32.mxu0 0.0
        %2279 = vmatmul.mubr.f32.gmra.mrb[0].mxu0 %v1138
        %v2280 = vpop.f32.mrb[0].mxu0
        %v2281 = vadd.f32 %v2056, %v2280
        %v2282 = vpop.f32.mrb[0].mxu0
        %2283 = vmatprep.mubr.f32.mxu0 0.0
        %2284 = vmatmul.mubr.f32.gmra.mrb[0].mxu0 %v1139
        %v2285 = vpop.f32.mrb[0].mxu0
        %v2286 = vadd.f32 %v2061, %v2285
        %v2287 = vpop.f32.mrb[0].mxu0
        %2288 = vmatprep.mubr.f32.mxu0 0.0
        %2289 = vmatmul.mubr.f32.gmra.mrb[0].mxu0 %v1140
        %v2290 = vpop.f32.mrb[0].mxu0
        %v2291 = vadd.f32 %v2066, %v2290
        %v2292 = vpop.f32.mrb[0].mxu0
        %2293 = vmatprep.mubr.f32.mxu0 0.0
        %2294 = vmatmul.mubr.f32.gmra.mrb[0].mxu0 %v1141
        %v2295 = vpop.f32.mrb[0].mxu0
        %v2296 = vadd.f32 %v2071, %v2295
        %v2297 = vpop.f32.mrb[0].mxu0
        %2298 = vmatprep.mubr.f32.mxu0 0.0
        %2299 = vmatmul.mubr.f32.gmra.mrb[0].mxu0 %v1142
        %v2300 = vpop.f32.mrb[0].mxu0
        %v2301 = vadd.f32 %v2076, %v2300
        %v2302 = vpop.f32.mrb[0].mxu0
        %2303 = vmatprep.mubr.f32.mxu0 0.0
        %2304 = vmatmul.mubr.f32.gmra.mrb[0].mxu0 %v1143
        %v2305 = vpop.f32.mrb[0].mxu0
        %v2306 = vadd.f32 %v2081, %v2305
        %v2307 = vpop.f32.mrb[0].mxu0
        %2308 = vmatprep.mubr.f32.mxu0 0.0
        %2309 = vmatmul.mubr.f32.gmra.mrb[0].mxu0 %v1144
        %v2310 = vpop.f32.mrb[0].mxu0
        %v2311 = vadd.f32 %v2086, %v2310
        %v2312 = vpop.f32.mrb[0].mxu0
        %2313 = vmatprep.mubr.f32.mxu0 0.0
        %2314 = vmatmul.mubr.f32.gmra.mrb[0].mxu0 %v1145
        %v2315 = vpop.f32.mrb[0].mxu0
        %v2316 = vadd.f32 %v2091, %v2315
        %v2317 = vpop.f32.mrb[0].mxu0
        %2318 = vmatprep.mubr.f32.mxu0 0.0
        %2319 = vmatmul.mubr.f32.gmra.mrb[0].mxu0 %v1146
        %v2320 = vpop.f32.mrb[0].mxu0
        %v2321 = vadd.f32 %v2096, %v2320
        %v2322 = vpop.f32.mrb[0].mxu0
        %2323 = vmatprep.mubr.f32.mxu0 0.0
        %2324 = vmatmul.mubr.f32.gmra.mrb[0].mxu0 %v1147
        %v2325 = vpop.f32.mrb[0].mxu0
        %v2326 = vadd.f32 %v2101, %v2325
        %v2327 = vpop.f32.mrb[0].mxu0
        %2328 = vmatprep.mubr.f32.mxu0 0.0
        %2329 = vmatmul.mubr.f32.gmra.mrb[0].mxu0 %v1148
        %v2330 = vpop.f32.mrb[0].mxu0
        %v2331 = vadd.f32 %v2106, %v2330
        %v2332 = vpop.f32.mrb[0].mxu0
        %2333 = vmatprep.mubr.f32.mxu0 0.0
        %2334 = vmatmul.mubr.f32.gmra.mrb[0].mxu0 %v1149
        %v2335 = vpop.f32.mrb[0].mxu0
        %v2336 = vadd.f32 %v2111, %v2335
        %v2337 = vpop.f32.mrb[0].mxu0
        %2338 = vmatprep.mubr.f32.mxu0 0.0
        %2339 = vmatmul.mubr.f32.gmra.mrb[0].mxu0 %v1150
        %v2340 = vpop.f32.mrb[0].mxu0
        %v2341 = vadd.f32 %v2116, %v2340
        %v2342 = vpop.f32.mrb[0].mxu0
        %2343 = vmatprep.mubr.f32.mxu0 0.0
        %2344 = vmatmul.mubr.f32.gmra.mrb[0].mxu0 %v1151
        %v2345 = vpop.f32.mrb[0].mxu0
        %v2346 = vadd.f32 %v2121, %v2345
        %v2347 = vpop.f32.mrb[0].mxu0
        %2348 = vmatprep.mubr.f32.mxu0 0.0
        %2349 = vmatmul.mubr.f32.gmra.mrb[0].mxu0 %v1152
        %v2350 = vpop.f32.mrb[0].mxu0
        %v2351 = vadd.f32 %v2126, %v2350
        %v2352 = vpop.f32.mrb[0].mxu0
        %2353 = vmatprep.mubr.f32.mxu0 0.0
        %2354 = vmatmul.mubr.f32.gmra.mrb[0].mxu0 %v1153
        %v2355 = vpop.f32.mrb[0].mxu0
        %v2356 = vadd.f32 %v2131, %v2355
        %v2357 = vpop.f32.mrb[0].mxu0
        %2358 = vmatprep.mubr.f32.mxu0 0.0
        %2359 = vmatmul.mubr.f32.gmra.mrb[0].mxu0 %v1154
        %v2360 = vpop.f32.mrb[0].mxu0
        %v2361 = vadd.f32 %v2136, %v2360
        %v2362 = vpop.f32.mrb[0].mxu0
        %2363 = vmatprep.mubr.f32.mxu0 0.0
        %2364 = vmatmul.mubr.f32.gmra.mrb[0].mxu0 %v1155
        %v2365 = vpop.f32.mrb[0].mxu0
        %v2366 = vadd.f32 %v2141, %v2365
        %v2367 = vpop.f32.mrb[0].mxu0
        %2368 = vmatprep.mubr.f32.mxu0 0.0
        %2369 = vmatmul.mubr.f32.gmra.mrb[0].mxu0 %v1156
        %v2370 = vpop.f32.mrb[0].mxu0
        %v2371 = vadd.f32 %v2146, %v2370
        %v2372 = vpop.f32.mrb[0].mxu0
        %2373 = vmatprep.mubr.f32.mxu0 0.0
        %2374 = vmatmul.mubr.f32.gmra.mrb[0].mxu0 %v1157
        %v2375 = vpop.f32.mrb[0].mxu0
        %v2376 = vadd.f32 %v2151, %v2375
        %v2377 = vpop.f32.mrb[0].mxu0
        %2378 = vmatprep.mubr.f32.mxu0 0.0
        %2379 = vmatmul.mubr.f32.gmra.mrb[0].mxu0 %v1158
        %v2380 = vpop.f32.mrb[0].mxu0
        %v2381 = vadd.f32 %v2156, %v2380
        %v2382 = vpop.f32.mrb[0].mxu0
        %2383 = vmatprep.mubr.f32.mxu0 0.0
        %2384 = vmatmul.mubr.f32.gmra.mrb[0].mxu0 %v1159
        %v2385 = vpop.f32.mrb[0].mxu0
        %v2386 = vadd.f32 %v2161, %v2385
        %v2387 = vpop.f32.mrb[0].mxu0
        %2388 = vmatprep.mubr.f32.mxu0 0.0
        %2389 = vmatmul.mubr.f32.gmra.mrb[0].mxu0 %v1160
        %v2390 = vpop.f32.mrb[0].mxu0
        %v2391 = vadd.f32 %v2166, %v2390
        %v2392 = vpop.f32.mrb[0].mxu0
        %2393 = vmatprep.mubr.f32.mxu0 0.0
        %2394 = vmatmul.mubr.f32.gmra.mrb[0].mxu0 %v1161
        %v2395 = vpop.f32.mrb[0].mxu0
        %v2396 = vadd.f32 %v2171, %v2395
        %v2397 = vpop.f32.mrb[0].mxu0
        %2398 = vmatprep.mubr.f32.mxu0 0.0
        %2399 = vmatmul.mubr.f32.gmra.mrb[0].mxu0 %v1162
        %v2400 = vpop.f32.mrb[0].mxu0
        %v2401 = vadd.f32 %v2176, %v2400
        %v2402 = vpop.f32.mrb[0].mxu0
        %2403 = vmatprep.mubr.f32.mxu0 0.0
        %2404 = vmatmul.mubr.f32.gmra.mrb[0].mxu0 %v1163
        %v2405 = vpop.f32.mrb[0].mxu0
        %v2406 = vadd.f32 %v2181, %v2405
        %v2407 = vpop.f32.mrb[0].mxu0
        %2408 = vmatprep.mubr.f32.mxu0 0.0
        %2409 = vmatmul.mubr.f32.gmra.mrb[0].mxu0 %v1164
        %v2410 = vpop.f32.mrb[0].mxu0
        %v2411 = vadd.f32 %v2186, %v2410
        %v2412 = vpop.f32.mrb[0].mxu0
        %2413 = vmatprep.mubr.f32.mxu0 0.0
        %2414 = vmatmul.mubr.f32.gmra.mrb[0].mxu0 %v1165
        %v2415 = vpop.f32.mrb[0].mxu0
        %v2416 = vadd.f32 %v2191, %v2415
        %v2417 = vpop.f32.mrb[0].mxu0
        %2418 = vmatprep.mubr.f32.mxu0 0.0
        %2419 = vmatmul.mubr.f32.gmra.mrb[0].mxu0 %v1166
        %v2420 = vpop.f32.mrb[0].mxu0
        %v2421 = vadd.f32 %v2196, %v2420
        %v2422 = vpop.f32.mrb[0].mxu0
        %2423 = vmatprep.mubr.f32.mxu0 0.0
        %2424 = vmatmul.mubr.f32.gmra.mrb[0].mxu0 %v1167
        %v2425 = vpop.f32.mrb[0].mxu0
        %v2426 = vadd.f32 %v2201, %v2425
        %v2427 = vpop.f32.mrb[0].mxu0
        %2428 = vmatprep.mubr.f32.mxu0 0.0
        %2429 = vmatmul.mubr.f32.gmra.mrb[0].mxu0 %v1168
        %v2430 = vpop.f32.mrb[0].mxu0
        %v2431 = vadd.f32 %v2206, %v2430
        %v2432 = vpop.f32.mrb[0].mxu0
        %2433 = vmatprep.mubr.f32.mxu0 0.0
        %2434 = vmatmul.mubr.f32.gmra.mrb[0].mxu0 %v1169
        %v2435 = vpop.f32.mrb[0].mxu0
        %v2436 = vadd.f32 %v2211, %v2435
        %v2437 = vpop.f32.mrb[0].mxu0
        %2438 = vdwg.mxu0
        %v2439 = vld [vmem:[%s5] sm:$0x1]
        %v2441 = vlaneseq
        %v2442 = vshrl.u32 %v2441, 7
        %v2443 = vsub.s32 0, %v2442
        %v2444 = vrot.slane %v2439, %v2443
        %v2446 = vmul.f32 %v2281, %v2444
        %v2447 = vmul.f32 %v2286, %v2444
        %v2448 = vmul.f32 %v2291, %v2444
        %v2449 = vmul.f32 %v2296, %v2444
        %v2450 = vmul.f32 %v2301, %v2444
        %v2451 = vmul.f32 %v2306, %v2444
        %v2452 = vmul.f32 %v2311, %v2444
        %v2453 = vmul.f32 %v2316, %v2444
        %v2454 = vmul.f32 %v2321, %v2444
        %v2455 = vmul.f32 %v2326, %v2444
        %v2456 = vmul.f32 %v2331, %v2444
        %v2457 = vmul.f32 %v2336, %v2444
        %v2458 = vmul.f32 %v2341, %v2444
        %v2459 = vmul.f32 %v2346, %v2444
        %v2460 = vmul.f32 %v2351, %v2444
        %v2461 = vmul.f32 %v2356, %v2444
        %v2462 = vmul.f32 %v2361, %v2444
        %v2463 = vmul.f32 %v2366, %v2444
        %v2464 = vmul.f32 %v2371, %v2444
        %v2465 = vmul.f32 %v2376, %v2444
        %v2466 = vmul.f32 %v2381, %v2444
        %v2467 = vmul.f32 %v2386, %v2444
        %v2468 = vmul.f32 %v2391, %v2444
        %v2469 = vmul.f32 %v2396, %v2444
        %v2470 = vmul.f32 %v2401, %v2444
        %v2471 = vmul.f32 %v2406, %v2444
        %v2472 = vmul.f32 %v2411, %v2444
        %v2473 = vmul.f32 %v2416, %v2444
        %v2474 = vmul.f32 %v2421, %v2444
        %v2475 = vmul.f32 %v2426, %v2444
        %v2476 = vmul.f32 %v2431, %v2444
        %v2477 = vmul.f32 %v2436, %v2444
        %v2478 = vld [vmem:[%s6] sm:$0x1]
        %v2480 = vlaneseq
        %v2481 = vshrl.u32 %v2480, 7
        %v2482 = vsub.s32 0, %v2481
        %v2483 = vrot.slane %v2478, %v2482
        %v2485 = vadd.f32 %v2446, %v2483
        %v2486 = vadd.f32 %v2447, %v2483
        %v2487 = vadd.f32 %v2448, %v2483
        %v2488 = vadd.f32 %v2449, %v2483
        %v2489 = vadd.f32 %v2450, %v2483
        %v2490 = vadd.f32 %v2451, %v2483
        %v2491 = vadd.f32 %v2452, %v2483
        %v2492 = vadd.f32 %v2453, %v2483
        %v2493 = vadd.f32 %v2454, %v2483
        %v2494 = vadd.f32 %v2455, %v2483
        %v2495 = vadd.f32 %v2456, %v2483
        %v2496 = vadd.f32 %v2457, %v2483
        %v2497 = vadd.f32 %v2458, %v2483
        %v2498 = vadd.f32 %v2459, %v2483
        %v2499 = vadd.f32 %v2460, %v2483
        %v2500 = vadd.f32 %v2461, %v2483
        %v2501 = vadd.f32 %v2462, %v2483
        %v2502 = vadd.f32 %v2463, %v2483
        %v2503 = vadd.f32 %v2464, %v2483
        %v2504 = vadd.f32 %v2465, %v2483
        %v2505 = vadd.f32 %v2466, %v2483
        %v2506 = vadd.f32 %v2467, %v2483
        %v2507 = vadd.f32 %v2468, %v2483
        %v2508 = vadd.f32 %v2469, %v2483
        %v2509 = vadd.f32 %v2470, %v2483
        %v2510 = vadd.f32 %v2471, %v2483
        %v2511 = vadd.f32 %v2472, %v2483
        %v2512 = vadd.f32 %v2473, %v2483
        %v2513 = vadd.f32 %v2474, %v2483
        %v2514 = vadd.f32 %v2475, %v2483
        %v2515 = vadd.f32 %v2476, %v2483
        %v2516 = vadd.f32 %v2477, %v2483
        %v2517 = vmax.f32 %v2485, 0.0
        %v2518 = vmax.f32 %v2486, 0.0
        %v2519 = vmax.f32 %v2487, 0.0
        %v2520 = vmax.f32 %v2488, 0.0
        %v2521 = vmax.f32 %v2489, 0.0
        %v2522 = vmax.f32 %v2490, 0.0
        %v2523 = vmax.f32 %v2491, 0.0
        %v2524 = vmax.f32 %v2492, 0.0
        %v2525 = vmax.f32 %v2493, 0.0
        %v2526 = vmax.f32 %v2494, 0.0
        %v2527 = vmax.f32 %v2495, 0.0
        %v2528 = vmax.f32 %v2496, 0.0
        %v2529 = vmax.f32 %v2497, 0.0
        %v2530 = vmax.f32 %v2498, 0.0
        %v2531 = vmax.f32 %v2499, 0.0
        %v2532 = vmax.f32 %v2500, 0.0
        %v2533 = vmax.f32 %v2501, 0.0
        %v2534 = vmax.f32 %v2502, 0.0
        %v2535 = vmax.f32 %v2503, 0.0
        %v2536 = vmax.f32 %v2504, 0.0
        %v2537 = vmax.f32 %v2505, 0.0
        %v2538 = vmax.f32 %v2506, 0.0
        %v2539 = vmax.f32 %v2507, 0.0
        %v2540 = vmax.f32 %v2508, 0.0
        %v2541 = vmax.f32 %v2509, 0.0
        %v2542 = vmax.f32 %v2510, 0.0
        %v2543 = vmax.f32 %v2511, 0.0
        %v2544 = vmax.f32 %v2512, 0.0
        %v2545 = vmax.f32 %v2513, 0.0
        %v2546 = vmax.f32 %v2514, 0.0
        %v2547 = vmax.f32 %v2515, 0.0
        %v2548 = vmax.f32 %v2516, 0.0
        %v2549 = vld [vmem:[#allocation9] sm:$0xff]
        %v2550 = vld [vmem:[#allocation9 + $0x8] sm:$0xff]
        %v2551 = vld [vmem:[#allocation9 + $0x10] sm:$0xff]
        %v2552 = vld [vmem:[#allocation9 + $0x18] sm:$0xff]
        %v2553 = vld [vmem:[#allocation9 + $0x20] sm:$0xff]
        %v2554 = vld [vmem:[#allocation9 + $0x28] sm:$0xff]
        %v2555 = vld [vmem:[#allocation9 + $0x30] sm:$0xff]
        %v2556 = vld [vmem:[#allocation9 + $0x38] sm:$0xff]
        %v2557 = vld [vmem:[#allocation9 + $0x40] sm:$0xff]
        %v2558 = vld [vmem:[#allocation9 + $0x48] sm:$0xff]
        %v2559 = vld [vmem:[#allocation9 + $0x50] sm:$0xff]
        %v2560 = vld [vmem:[#allocation9 + $0x58] sm:$0xff]
        %v2561 = vld [vmem:[#allocation9 + $0x60] sm:$0xff]
        %v2562 = vld [vmem:[#allocation9 + $0x68] sm:$0xff]
        %v2563 = vld [vmem:[#allocation9 + $0x70] sm:$0xff]
        %v2564 = vld [vmem:[#allocation9 + $0x78] sm:$0xff]
        %2565 = vmatprep.subr.mxu0 0.0
        %2566 = vmatpush1.msra.mxu0 %v2549
        %2567 = vmatprep.subr.mxu0 0.0
        %2568 = vmatpush1.msra.mxu0 %v2550
        %2569 = vmatprep.subr.mxu0 0.0
        %2570 = vmatpush1.msra.mxu0 %v2551
        %2571 = vmatprep.subr.mxu0 0.0
        %2572 = vmatpush1.msra.mxu0 %v2552
        %2573 = vmatprep.subr.mxu0 0.0
        %2574 = vmatpush1.msra.mxu0 %v2553
        %2575 = vmatprep.subr.mxu0 0.0
        %2576 = vmatpush1.msra.mxu0 %v2554
        %2577 = vmatprep.subr.mxu0 0.0
        %2578 = vmatpush1.msra.mxu0 %v2555
        %2579 = vmatprep.subr.mxu0 0.0
        %2580 = vmatpush1.msra.mxu0 %v2556
        %2581 = vmatprep.subr.mxu0 0.0
        %2582 = vmatpush1.msra.mxu0 %v2557
        %2583 = vmatprep.subr.mxu0 0.0
        %2584 = vmatpush1.msra.mxu0 %v2558
        %2585 = vmatprep.subr.mxu0 0.0
        %2586 = vmatpush1.msra.mxu0 %v2559
        %2587 = vmatprep.subr.mxu0 0.0
        %2588 = vmatpush1.msra.mxu0 %v2560
        %2589 = vmatprep.subr.mxu0 0.0
        %2590 = vmatpush1.msra.mxu0 %v2561
        %2591 = vmatprep.subr.mxu0 0.0
        %2592 = vmatpush1.msra.mxu0 %v2562
        %2593 = vmatprep.subr.mxu0 0.0
        %2594 = vmatpush1.msra.mxu0 %v2563
        %2595 = vmatprep.subr.mxu0 0.0
        %2596 = vmatpush1.msra.mxu0 %v2564
        %2597 = vmatprep.subr.mxu0 0.0
        %2598 = vmatpush1.msra.mxu0 0.0
        %2599 = vmatprep.subr.mxu0 0.0
        %2600 = vmatpush1.msra.mxu0 0.0
        %2601 = vmatprep.subr.mxu0 0.0
        %2602 = vmatpush1.msra.mxu0 0.0
        %2603 = vmatprep.subr.mxu0 0.0
        %2604 = vmatpush1.msra.mxu0 0.0
        %2605 = vmatprep.subr.mxu0 0.0
        %2606 = vmatpush1.msra.mxu0 0.0
        %2607 = vmatprep.subr.mxu0 0.0
        %2608 = vmatpush1.msra.mxu0 0.0
        %2609 = vmatprep.subr.mxu0 0.0
        %2610 = vmatpush1.msra.mxu0 0.0
        %2611 = vmatprep.subr.mxu0 0.0
        %2612 = vmatpush1.msra.mxu0 0.0
        %2613 = vmatprep.subr.mxu0 0.0
        %2614 = vmatpush1.msra.mxu0 0.0
        %2615 = vmatprep.subr.mxu0 0.0
        %2616 = vmatpush1.msra.mxu0 0.0
        %2617 = vmatprep.subr.mxu0 0.0
        %2618 = vmatpush1.msra.mxu0 0.0
        %2619 = vmatprep.subr.mxu0 0.0
        %2620 = vmatpush1.msra.mxu0 0.0
        %2621 = vmatprep.subr.mxu0 0.0
        %2622 = vmatpush1.msra.mxu0 0.0
        %2623 = vmatprep.subr.mxu0 0.0
        %2624 = vmatpush1.msra.mxu0 0.0
        %2625 = vmatprep.subr.mxu0 0.0
        %2626 = vmatpush1.msra.mxu0 0.0
        %2627 = vmatprep.subr.mxu0 0.0
        %2628 = vmatpush1.msra.mxu0 0.0
        %2629 = vmatprep.mubr.f32.mxu0 0.0
        %2630 = vmatmul.mubr.f32.gmra.mrb[0].mxu0 %v2517
        %v2631 = vpop.f32.mrb[0].mxu0
        %v2632 = vadd.f32 0.0, %v2631
        %v2633 = vpop.f32.mrb[0].mxu0
        %2634 = vmatprep.mubr.f32.mxu0 0.0
        %2635 = vmatmul.mubr.f32.gmra.mrb[0].mxu0 %v2518
        %v2636 = vpop.f32.mrb[0].mxu0
        %v2637 = vadd.f32 0.0, %v2636
        %v2638 = vpop.f32.mrb[0].mxu0
        %2639 = vmatprep.mubr.f32.mxu0 0.0
        %2640 = vmatmul.mubr.f32.gmra.mrb[0].mxu0 %v2519
        %v2641 = vpop.f32.mrb[0].mxu0
        %v2642 = vadd.f32 0.0, %v2641
        %v2643 = vpop.f32.mrb[0].mxu0
        %2644 = vmatprep.mubr.f32.mxu0 0.0
        %2645 = vmatmul.mubr.f32.gmra.mrb[0].mxu0 %v2520
        %v2646 = vpop.f32.mrb[0].mxu0
        %v2647 = vadd.f32 0.0, %v2646
        %v2648 = vpop.f32.mrb[0].mxu0
        %2649 = vmatprep.mubr.f32.mxu0 0.0
        %2650 = vmatmul.mubr.f32.gmra.mrb[0].mxu0 %v2521
        %v2651 = vpop.f32.mrb[0].mxu0
        %v2652 = vadd.f32 0.0, %v2651
        %v2653 = vpop.f32.mrb[0].mxu0
        %2654 = vmatprep.mubr.f32.mxu0 0.0
        %2655 = vmatmul.mubr.f32.gmra.mrb[0].mxu0 %v2522
        %v2656 = vpop.f32.mrb[0].mxu0
        %v2657 = vadd.f32 0.0, %v2656
        %v2658 = vpop.f32.mrb[0].mxu0
        %2659 = vmatprep.mubr.f32.mxu0 0.0
        %2660 = vmatmul.mubr.f32.gmra.mrb[0].mxu0 %v2523
        %v2661 = vpop.f32.mrb[0].mxu0
        %v2662 = vadd.f32 0.0, %v2661
        %v2663 = vpop.f32.mrb[0].mxu0
        %2664 = vmatprep.mubr.f32.mxu0 0.0
        %2665 = vmatmul.mubr.f32.gmra.mrb[0].mxu0 %v2524
        %v2666 = vpop.f32.mrb[0].mxu0
        %v2667 = vadd.f32 0.0, %v2666
        %v2668 = vpop.f32.mrb[0].mxu0
        %2669 = vmatprep.mubr.f32.mxu0 0.0
        %2670 = vmatmul.mubr.f32.gmra.mrb[0].mxu0 %v2525
        %v2671 = vpop.f32.mrb[0].mxu0
        %v2672 = vadd.f32 0.0, %v2671
        %v2673 = vpop.f32.mrb[0].mxu0
        %2674 = vmatprep.mubr.f32.mxu0 0.0
        %2675 = vmatmul.mubr.f32.gmra.mrb[0].mxu0 %v2526
        %v2676 = vpop.f32.mrb[0].mxu0
        %v2677 = vadd.f32 0.0, %v2676
        %v2678 = vpop.f32.mrb[0].mxu0
        %2679 = vmatprep.mubr.f32.mxu0 0.0
        %2680 = vmatmul.mubr.f32.gmra.mrb[0].mxu0 %v2527
        %v2681 = vpop.f32.mrb[0].mxu0
        %v2682 = vadd.f32 0.0, %v2681
        %v2683 = vpop.f32.mrb[0].mxu0
        %2684 = vmatprep.mubr.f32.mxu0 0.0
        %2685 = vmatmul.mubr.f32.gmra.mrb[0].mxu0 %v2528
        %v2686 = vpop.f32.mrb[0].mxu0
        %v2687 = vadd.f32 0.0, %v2686
        %v2688 = vpop.f32.mrb[0].mxu0
        %2689 = vmatprep.mubr.f32.mxu0 0.0
        %2690 = vmatmul.mubr.f32.gmra.mrb[0].mxu0 %v2529
        %v2691 = vpop.f32.mrb[0].mxu0
        %v2692 = vadd.f32 0.0, %v2691
        %v2693 = vpop.f32.mrb[0].mxu0
        %2694 = vmatprep.mubr.f32.mxu0 0.0
        %2695 = vmatmul.mubr.f32.gmra.mrb[0].mxu0 %v2530
        %v2696 = vpop.f32.mrb[0].mxu0
        %v2697 = vadd.f32 0.0, %v2696
        %v2698 = vpop.f32.mrb[0].mxu0
        %2699 = vmatprep.mubr.f32.mxu0 0.0
        %2700 = vmatmul.mubr.f32.gmra.mrb[0].mxu0 %v2531
        %v2701 = vpop.f32.mrb[0].mxu0
        %v2702 = vadd.f32 0.0, %v2701
        %v2703 = vpop.f32.mrb[0].mxu0
        %2704 = vmatprep.mubr.f32.mxu0 0.0
        %2705 = vmatmul.mubr.f32.gmra.mrb[0].mxu0 %v2532
        %v2706 = vpop.f32.mrb[0].mxu0
        %v2707 = vadd.f32 0.0, %v2706
        %v2708 = vpop.f32.mrb[0].mxu0
        %2709 = vmatprep.mubr.f32.mxu0 0.0
        %2710 = vmatmul.mubr.f32.gmra.mrb[0].mxu0 %v2533
        %v2711 = vpop.f32.mrb[0].mxu0
        %v2712 = vadd.f32 0.0, %v2711
        %v2713 = vpop.f32.mrb[0].mxu0
        %2714 = vmatprep.mubr.f32.mxu0 0.0
        %2715 = vmatmul.mubr.f32.gmra.mrb[0].mxu0 %v2534
        %v2716 = vpop.f32.mrb[0].mxu0
        %v2717 = vadd.f32 0.0, %v2716
        %v2718 = vpop.f32.mrb[0].mxu0
        %2719 = vmatprep.mubr.f32.mxu0 0.0
        %2720 = vmatmul.mubr.f32.gmra.mrb[0].mxu0 %v2535
        %v2721 = vpop.f32.mrb[0].mxu0
        %v2722 = vadd.f32 0.0, %v2721
        %v2723 = vpop.f32.mrb[0].mxu0
        %2724 = vmatprep.mubr.f32.mxu0 0.0
        %2725 = vmatmul.mubr.f32.gmra.mrb[0].mxu0 %v2536
        %v2726 = vpop.f32.mrb[0].mxu0
        %v2727 = vadd.f32 0.0, %v2726
        %v2728 = vpop.f32.mrb[0].mxu0
        %2729 = vmatprep.mubr.f32.mxu0 0.0
        %2730 = vmatmul.mubr.f32.gmra.mrb[0].mxu0 %v2537
        %v2731 = vpop.f32.mrb[0].mxu0
        %v2732 = vadd.f32 0.0, %v2731
        %v2733 = vpop.f32.mrb[0].mxu0
        %2734 = vmatprep.mubr.f32.mxu0 0.0
        %2735 = vmatmul.mubr.f32.gmra.mrb[0].mxu0 %v2538
        %v2736 = vpop.f32.mrb[0].mxu0
        %v2737 = vadd.f32 0.0, %v2736
        %v2738 = vpop.f32.mrb[0].mxu0
        %2739 = vmatprep.mubr.f32.mxu0 0.0
        %2740 = vmatmul.mubr.f32.gmra.mrb[0].mxu0 %v2539
        %v2741 = vpop.f32.mrb[0].mxu0
        %v2742 = vadd.f32 0.0, %v2741
        %v2743 = vpop.f32.mrb[0].mxu0
        %2744 = vmatprep.mubr.f32.mxu0 0.0
        %2745 = vmatmul.mubr.f32.gmra.mrb[0].mxu0 %v2540
        %v2746 = vpop.f32.mrb[0].mxu0
        %v2747 = vadd.f32 0.0, %v2746
        %v2748 = vpop.f32.mrb[0].mxu0
        %2749 = vmatprep.mubr.f32.mxu0 0.0
        %2750 = vmatmul.mubr.f32.gmra.mrb[0].mxu0 %v2541
        %v2751 = vpop.f32.mrb[0].mxu0
        %v2752 = vadd.f32 0.0, %v2751
        %v2753 = vpop.f32.mrb[0].mxu0
        %2754 = vmatprep.mubr.f32.mxu0 0.0
        %2755 = vmatmul.mubr.f32.gmra.mrb[0].mxu0 %v2542
        %v2756 = vpop.f32.mrb[0].mxu0
        %v2757 = vadd.f32 0.0, %v2756
        %v2758 = vpop.f32.mrb[0].mxu0
        %2759 = vmatprep.mubr.f32.mxu0 0.0
        %2760 = vmatmul.mubr.f32.gmra.mrb[0].mxu0 %v2543
        %v2761 = vpop.f32.mrb[0].mxu0
        %v2762 = vadd.f32 0.0, %v2761
        %v2763 = vpop.f32.mrb[0].mxu0
        %2764 = vmatprep.mubr.f32.mxu0 0.0
        %2765 = vmatmul.mubr.f32.gmra.mrb[0].mxu0 %v2544
        %v2766 = vpop.f32.mrb[0].mxu0
        %v2767 = vadd.f32 0.0, %v2766
        %v2768 = vpop.f32.mrb[0].mxu0
        %2769 = vmatprep.mubr.f32.mxu0 0.0
        %2770 = vmatmul.mubr.f32.gmra.mrb[0].mxu0 %v2545
        %v2771 = vpop.f32.mrb[0].mxu0
        %v2772 = vadd.f32 0.0, %v2771
        %v2773 = vpop.f32.mrb[0].mxu0
        %2774 = vmatprep.mubr.f32.mxu0 0.0
        %2775 = vmatmul.mubr.f32.gmra.mrb[0].mxu0 %v2546
        %v2776 = vpop.f32.mrb[0].mxu0
        %v2777 = vadd.f32 0.0, %v2776
        %v2778 = vpop.f32.mrb[0].mxu0
        %2779 = vmatprep.mubr.f32.mxu0 0.0
        %2780 = vmatmul.mubr.f32.gmra.mrb[0].mxu0 %v2547
        %v2781 = vpop.f32.mrb[0].mxu0
        %v2782 = vadd.f32 0.0, %v2781
        %v2783 = vpop.f32.mrb[0].mxu0
        %2784 = vmatprep.mubr.f32.mxu0 0.0
        %2785 = vmatmul.mubr.f32.gmra.mrb[0].mxu0 %v2548
        %v2786 = vpop.f32.mrb[0].mxu0
        %v2787 = vadd.f32 0.0, %v2786
        %v2788 = vpop.f32.mrb[0].mxu0
        %2789 = vdwg.mxu0
        %v2790 = vld [vmem:[%s8] sm:$0x1]
        %v2792 = vlaneseq
        %v2793 = vshrl.u32 %v2792, 7
        %v2794 = vsub.s32 0, %v2793
        %v2795 = vrot.slane %v2790, %v2794
        %v2797 = vmul.f32 %v2632, %v2795
        %v2798 = vmul.f32 %v2637, %v2795
        %v2799 = vmul.f32 %v2642, %v2795
        %v2800 = vmul.f32 %v2647, %v2795
        %v2801 = vmul.f32 %v2652, %v2795
        %v2802 = vmul.f32 %v2657, %v2795
        %v2803 = vmul.f32 %v2662, %v2795
        %v2804 = vmul.f32 %v2667, %v2795
        %v2805 = vmul.f32 %v2672, %v2795
        %v2806 = vmul.f32 %v2677, %v2795
        %v2807 = vmul.f32 %v2682, %v2795
        %v2808 = vmul.f32 %v2687, %v2795
        %v2809 = vmul.f32 %v2692, %v2795
        %v2810 = vmul.f32 %v2697, %v2795
        %v2811 = vmul.f32 %v2702, %v2795
        %v2812 = vmul.f32 %v2707, %v2795
        %v2813 = vmul.f32 %v2712, %v2795
        %v2814 = vmul.f32 %v2717, %v2795
        %v2815 = vmul.f32 %v2722, %v2795
        %v2816 = vmul.f32 %v2727, %v2795
        %v2817 = vmul.f32 %v2732, %v2795
        %v2818 = vmul.f32 %v2737, %v2795
        %v2819 = vmul.f32 %v2742, %v2795
        %v2820 = vmul.f32 %v2747, %v2795
        %v2821 = vmul.f32 %v2752, %v2795
        %v2822 = vmul.f32 %v2757, %v2795
        %v2823 = vmul.f32 %v2762, %v2795
        %v2824 = vmul.f32 %v2767, %v2795
        %v2825 = vmul.f32 %v2772, %v2795
        %v2826 = vmul.f32 %v2777, %v2795
        %v2827 = vmul.f32 %v2782, %v2795
        %v2828 = vmul.f32 %v2787, %v2795
        %v2829 = vld [vmem:[%s9] sm:$0x1]
        %v2831 = vlaneseq
        %v2832 = vshrl.u32 %v2831, 7
        %v2833 = vsub.s32 0, %v2832
        %v2834 = vrot.slane %v2829, %v2833
        %v2836 = vadd.f32 %v2797, %v2834
        %v2837 = vadd.f32 %v2798, %v2834
        %v2838 = vadd.f32 %v2799, %v2834
        %v2839 = vadd.f32 %v2800, %v2834
        %v2840 = vadd.f32 %v2801, %v2834
        %v2841 = vadd.f32 %v2802, %v2834
        %v2842 = vadd.f32 %v2803, %v2834
        %v2843 = vadd.f32 %v2804, %v2834
        %v2844 = vadd.f32 %v2805, %v2834
        %v2845 = vadd.f32 %v2806, %v2834
        %v2846 = vadd.f32 %v2807, %v2834
        %v2847 = vadd.f32 %v2808, %v2834
        %v2848 = vadd.f32 %v2809, %v2834
        %v2849 = vadd.f32 %v2810, %v2834
        %v2850 = vadd.f32 %v2811, %v2834
        %v2851 = vadd.f32 %v2812, %v2834
        %v2852 = vadd.f32 %v2813, %v2834
        %v2853 = vadd.f32 %v2814, %v2834
        %v2854 = vadd.f32 %v2815, %v2834
        %v2855 = vadd.f32 %v2816, %v2834
        %v2856 = vadd.f32 %v2817, %v2834
        %v2857 = vadd.f32 %v2818, %v2834
        %v2858 = vadd.f32 %v2819, %v2834
        %v2859 = vadd.f32 %v2820, %v2834
        %v2860 = vadd.f32 %v2821, %v2834
        %v2861 = vadd.f32 %v2822, %v2834
        %v2862 = vadd.f32 %v2823, %v2834
        %v2863 = vadd.f32 %v2824, %v2834
        %v2864 = vadd.f32 %v2825, %v2834
        %v2865 = vadd.f32 %v2826, %v2834
        %v2866 = vadd.f32 %v2827, %v2834
        %v2867 = vadd.f32 %v2828, %v2834
        %v2868 = vadd.f32 %v2836, %v465
        %v2869 = vadd.f32 %v2837, %v466
        %v2870 = vadd.f32 %v2838, %v467
        %v2871 = vadd.f32 %v2839, %v468
        %v2872 = vadd.f32 %v2840, %v469
        %v2873 = vadd.f32 %v2841, %v470
        %v2874 = vadd.f32 %v2842, %v471
        %v2875 = vadd.f32 %v2843, %v472
        %v2876 = vadd.f32 %v2844, %v473
        %v2877 = vadd.f32 %v2845, %v474
        %v2878 = vadd.f32 %v2846, %v475
        %v2879 = vadd.f32 %v2847, %v476
        %v2880 = vadd.f32 %v2848, %v477
        %v2881 = vadd.f32 %v2849, %v478
        %v2882 = vadd.f32 %v2850, %v479
        %v2883 = vadd.f32 %v2851, %v480
        %v2884 = vadd.f32 %v2852, %v481
        %v2885 = vadd.f32 %v2853, %v482
        %v2886 = vadd.f32 %v2854, %v483
        %v2887 = vadd.f32 %v2855, %v484
        %v2888 = vadd.f32 %v2856, %v485
        %v2889 = vadd.f32 %v2857, %v486
        %v2890 = vadd.f32 %v2858, %v487
        %v2891 = vadd.f32 %v2859, %v488
        %v2892 = vadd.f32 %v2860, %v489
        %v2893 = vadd.f32 %v2861, %v490
        %v2894 = vadd.f32 %v2862, %v491
        %v2895 = vadd.f32 %v2863, %v492
        %v2896 = vadd.f32 %v2864, %v493
        %v2897 = vadd.f32 %v2865, %v494
        %v2898 = vadd.f32 %v2866, %v495
        %v2899 = vadd.f32 %v2867, %v496
        %v2900 = vmax.f32 %v2868, 0.0
        %v2901 = vmax.f32 %v2869, 0.0
        %v2902 = vmax.f32 %v2870, 0.0
        %v2903 = vmax.f32 %v2871, 0.0
        %v2904 = vmax.f32 %v2872, 0.0
        %v2905 = vmax.f32 %v2873, 0.0
        %v2906 = vmax.f32 %v2874, 0.0
        %v2907 = vmax.f32 %v2875, 0.0
        %v2908 = vmax.f32 %v2876, 0.0
        %v2909 = vmax.f32 %v2877, 0.0
        %v2910 = vmax.f32 %v2878, 0.0
        %v2911 = vmax.f32 %v2879, 0.0
        %v2912 = vmax.f32 %v2880, 0.0
        %v2913 = vmax.f32 %v2881, 0.0
        %v2914 = vmax.f32 %v2882, 0.0
        %v2915 = vmax.f32 %v2883, 0.0
        %v2916 = vmax.f32 %v2884, 0.0
        %v2917 = vmax.f32 %v2885, 0.0
        %v2918 = vmax.f32 %v2886, 0.0
        %v2919 = vmax.f32 %v2887, 0.0
        %v2920 = vmax.f32 %v2888, 0.0
        %v2921 = vmax.f32 %v2889, 0.0
        %v2922 = vmax.f32 %v2890, 0.0
        %v2923 = vmax.f32 %v2891, 0.0
        %v2924 = vmax.f32 %v2892, 0.0
        %v2925 = vmax.f32 %v2893, 0.0
        %v2926 = vmax.f32 %v2894, 0.0
        %v2927 = vmax.f32 %v2895, 0.0
        %v2928 = vmax.f32 %v2896, 0.0
        %v2929 = vmax.f32 %v2897, 0.0
        %v2930 = vmax.f32 %v2898, 0.0
        %v2931 = vmax.f32 %v2899, 0.0
        %2932 = vst [vmem:[%s421] sm:$0xff] %v2900
        %2933 = vst [vmem:[%s421 + $0x8] sm:$0xff] %v2901
        %2934 = vst [vmem:[%s421 + $0x10] sm:$0xff] %v2902
        %2935 = vst [vmem:[%s421 + $0x18] sm:$0xff] %v2903
        %2936 = vst [vmem:[%s421 + $0x20] sm:$0xff] %v2904
        %2937 = vst [vmem:[%s421 + $0x28] sm:$0xff] %v2905
        %2938 = vst [vmem:[%s421 + $0x30] sm:$0xff] %v2906
        %2939 = vst [vmem:[%s421 + $0x38] sm:$0xff] %v2907
        %2940 = vst [vmem:[%s421 + $0x40] sm:$0xff] %v2908
        %2941 = vst [vmem:[%s421 + $0x48] sm:$0xff] %v2909
        %2942 = vst [vmem:[%s421 + $0x50] sm:$0xff] %v2910
        %2943 = vst [vmem:[%s421 + $0x58] sm:$0xff] %v2911
        %2944 = vst [vmem:[%s421 + $0x60] sm:$0xff] %v2912
        %2945 = vst [vmem:[%s421 + $0x68] sm:$0xff] %v2913
        %2946 = vst [vmem:[%s421 + $0x70] sm:$0xff] %v2914
        %2947 = vst [vmem:[%s421 + $0x78] sm:$0xff] %v2915
        %2948 = vst [vmem:[%s421 + $0x80] sm:$0xff] %v2916
        %2949 = vst [vmem:[%s421 + $0x88] sm:$0xff] %v2917
        %2950 = vst [vmem:[%s421 + $0x90] sm:$0xff] %v2918
        %2951 = vst [vmem:[%s421 + $0x98] sm:$0xff] %v2919
        %2952 = vst [vmem:[%s421 + $0xa0] sm:$0xff] %v2920
        %2953 = vst [vmem:[%s421 + $0xa8] sm:$0xff] %v2921
        %2954 = vst [vmem:[%s421 + $0xb0] sm:$0xff] %v2922
        %2955 = vst [vmem:[%s421 + $0xb8] sm:$0xff] %v2923
        %2956 = vst [vmem:[%s421 + $0xc0] sm:$0xff] %v2924
        %2957 = vst [vmem:[%s421 + $0xc8] sm:$0xff] %v2925
        %2958 = vst [vmem:[%s421 + $0xd0] sm:$0xff] %v2926
        %2959 = vst [vmem:[%s421 + $0xd8] sm:$0xff] %v2927
        %2960 = vst [vmem:[%s421 + $0xe0] sm:$0xff] %v2928
        %2961 = vst [vmem:[%s421 + $0xe8] sm:$0xff] %v2929
        %2962 = vst [vmem:[%s421 + $0xf0] sm:$0xff] %v2930
        %2963 = vst [vmem:[%s421 + $0xf8] sm:$0xff] %v2931
        %s2964 = sand.u32 %s252, 1
        %s2965 = scalar_lea.sflag [#allocation5], %s2964
        %s2966 = sand.u32 %s252, 1
        %s2967 = smul.addr %s2966, 256
        %s2968 = scalar_lea.vmem [#allocation11], %s2967
        // Predicated region
        $region77: #{tpu_custom_call.1} parent=59 // pred_check
          %p2969 = pneg %p262
        $region78: #{tpu_custom_call.1} parent=59 // pred_check_branch
          %2971 = sbr.rel (%p2969) target = $region80
        $region79: #{tpu_custom_call.1} parent=59 // pred_region
          %s2973 = ssub.s32 4096, 4096
          %2974 = vsyncadd %s2965, %s2973
          %s2975 = smul.addr %s29, 32
          %s2976 = smul.addr %s2975, 128
          %s2977 = scalar_lea.hbm %s10, %s2976
          %s2978 = sshll.u32 %s2968, 4
          %s2979 = int_to_ptr.vmem [resolvable:$true] %s2978
          %2984 = dma.vmem_to_hbm [thread:$0]  %s2979, 4096, %s2977, %s2965, 128, 128, 8
        $region80: #{tpu_custom_call.1} parent=59 // pred_fallthru
          _
      $region60: #{tpu_custom_call.1} parent=5 // pred_fallthru
        _
      %p2985 = scmp.le.s32.totalorder 2, %s24
      // Predicated region
      $region81: #{tpu_custom_call.1} parent=5 // pred_check
        %p2986 = pneg %p2985
      $region82: #{tpu_custom_call.1} parent=5 // pred_check_branch
        %2988 = sbr.rel (%p2986) target = $region84
      $region83: #{tpu_custom_call.1} parent=5 // pred_region
        %s2989 = ssub.s32 %s24, 2
        // Predicated region
        $region85: #{tpu_custom_call.1} parent=83 // pred_check
          %p2990 = pneg %p268
        $region86: #{tpu_custom_call.1} parent=83 // pred_check_branch
          %2992 = sbr.rel (%p2990) target = $region88
        $region87: #{tpu_custom_call.1} parent=83 // pred_region
          %s2993 = sand.u32 %s253, 1
          %s2994 = scalar_lea.sflag [#allocation5], %s2993
          %s2995 = sand.u32 %s253, 1
          %s2996 = smul.addr %s2995, 256
          %s2997 = scalar_lea.vmem [#allocation11], %s2996
          %2998 = dma.done %s2994, 4096
        $region88: #{tpu_custom_call.1} parent=83 // pred_fallthru
          _
      $region84: #{tpu_custom_call.1} parent=5 // pred_fallthru
        _
    $region6: #{tpu_custom_call.1} parent=1 // loop_footer
      %s28 = sadd.s32 1, %s24
    $region7: #{tpu_custom_call.1} parent=1 // loop_footer_branch
      %23 = sbr.rel target = $region3
    $region8: #{tpu_custom_call.1} parent=1 // loop_exit
      _
    %2999 = vsyncpa [#allocation4], 1
    %s3000 = scalar_lea.sflag [#allocation4], 1
    %3001 = vsyncpa %s3000, 1
    %3002 = vsyncpa [#allocation7], 1
    %3003 = vsyncpa [#allocation10], 1
    %3004 = vsyncpa [#allocation5], 1
    %s3005 = scalar_lea.sflag [#allocation5], 1
    %3006 = vsyncpa %s3005, 1

</llo_original>
